<compile_context>
chip_gen: v5e
topology: v5e:2x2
jax: 0.10.0
libtpu: 0.0.40
codegen_flags: <defaults>
</compile_context>

<pallas_src>
import functools
import math

import jax
import jax.numpy as jnp
from jax.experimental import pallas as pl
from jax.experimental.pallas import tpu as pltpu


def _ln(x, g, b, eps=1e-5):
    mu = jnp.mean(x, axis=-1, keepdims=True)
    c = x - mu
    var = jnp.mean(c * c, axis=-1, keepdims=True)
    return c * jax.lax.rsqrt(var + eps) * g + b


# ---------------------------------------------------------------------------
# Fully fused transformer kernel: all encoder layers + classifier head.
# Grid = (n_layer,), activations carried in VMEM scratch across grid steps.
# ---------------------------------------------------------------------------

def _fused_transformer_kernel(
        x_in_ref, mask_ref,
        w_in_ref, b_in_ref, w_out_ref, b_out_ref, ln1_g_ref, ln1_b_ref,
        w_ff1_ref, b_ff1_ref, w_ff2_ref, b_ff2_ref, ln2_g_ref, ln2_b_ref,
        fc1_w_ref, fc1_b_ref, fc2_w_ref, fc2_b_ref,
        o_ref, x_scr, *, batch, seq, n_head, eps=1e-5):
    layer = pl.program_id(0)
    n_layers = pl.num_programs(0)

    # Layer 0: load the embeddings into the resident activation scratch.
    @pl.when(layer == 0)
    def _():
        x_scr[...] = x_in_ref[...]

    x = x_scr[...]                               # (M, E) f32, M = B*S
    M, E = x.shape
    hd = E // n_head

    # --- QKV projection (1/sqrt(hd) already folded into the q columns) ------
    qkv = jnp.dot(x.astype(jnp.bfloat16), w_in_ref[0],
                  preferred_element_type=jnp.float32) + b_in_ref[0]
    q, k, v = qkv[:, :E], qkv[:, E:2 * E], qkv[:, 2 * E:]

    # --- multi-head self-attention: single head-batched contraction ---------
    def split_heads(t):                          # (M, E) -> (H, M, hd) bf16
        return jnp.stack(
            [t[:, h * hd:(h + 1) * hd] for h in range(n_head)],
            axis=0).astype(jnp.bfloat16)

    qs, ks, vs = split_heads(q), split_heads(k), split_heads(v)

    s = jnp.einsum('hqd,hkd->hqk', qs, ks,
                   preferred_element_type=jnp.float32)       # (H, M, M)
    s = s + mask_ref[...][None]                  # block-diag cross-batch mask
    m = jnp.max(s, axis=-1, keepdims=True)
    p = jnp.exp(s - m)
    p = p * pl.reciprocal(jnp.sum(p, axis=-1, keepdims=True), approx=True)
    a = jnp.einsum('hqk,hkd->hqd', p.astype(jnp.bfloat16), vs,
                   preferred_element_type=jnp.float32)       # (H, M, hd)
    attn = jnp.concatenate([a[h] for h in range(n_head)], axis=-1)  # (M, E)

    attn = jnp.dot(attn.astype(jnp.bfloat16), w_out_ref[0],
                   preferred_element_type=jnp.float32) + b_out_ref[0]

    # --- residual + LayerNorm 1 ---------------------------------------------
    h1 = _ln(x + attn, ln1_g_ref[0], ln1_b_ref[0], eps)

    # --- feed forward (ReLU) -------------------------------------------------
    ff = jnp.dot(h1.astype(jnp.bfloat16), w_ff1_ref[0],
                 preferred_element_type=jnp.float32) + b_ff1_ref[0]
    ff = jnp.maximum(ff, 0.0)
    ff = jnp.dot(ff.astype(jnp.bfloat16), w_ff2_ref[0],
                 preferred_element_type=jnp.float32) + b_ff2_ref[0]

    # --- residual + LayerNorm 2 ----------------------------------------------
    out = _ln(h1 + ff, ln2_g_ref[0], ln2_b_ref[0], eps)
    x_scr[...] = out                             # carry to next layer

    # --- last layer: fused classifier head on the last-token rows ------------
    @pl.when(layer == n_layers - 1)
    def _():
        rows = out.reshape(batch, seq, E)[:, seq - 1, :]     # (B, E)
        y = jnp.dot(rows.astype(jnp.bfloat16), fc1_w_ref[...],
                    preferred_element_type=jnp.float32) + fc1_b_ref[...]
        # dropout -> identity at inference
        o_ref[...] = jnp.dot(y.astype(jnp.bfloat16), fc2_w_ref[...],
                             preferred_element_type=jnp.float32) + fc2_b_ref[...]


def fused_transformer(x2d, attn_mask, p, *, batch, seq, n_head):
    """x2d: (B*S, E) f32 embeddings -> (B, output_dim) f32 logits."""
    M, E = x2d.shape
    n_layer = p["w_in"].shape[0]
    d_ff = p["w_ff1"].shape[2]
    vanila = p["fc1_w"].shape[1]
    out_dim = p["fc2_w"].shape[1]

    def const(shape):                      # same block every grid step
        return pl.BlockSpec(shape, lambda l: (0,) * len(shape))

    def per_layer(shape):                  # one layer slice per grid step
        return pl.BlockSpec((1,) + shape, lambda l: (l,) + (0,) * len(shape))

    kernel = functools.partial(_fused_transformer_kernel,
                               batch=batch, seq=seq, n_head=n_head)
    return pl.pallas_call(
        kernel,
        out_shape=jax.ShapeDtypeStruct((batch, out_dim), jnp.float32),
        grid=(n_layer,),
        in_specs=[
            const((M, E)),                 # embeddings
            const((M, M)),                 # cross-batch additive mask
            per_layer((E, 3 * E)), per_layer((1, 3 * E)),
            per_layer((E, E)), per_layer((1, E)),
            per_layer((1, E)), per_layer((1, E)),
            per_layer((E, d_ff)), per_layer((1, d_ff)),
            per_layer((d_ff, E)), per_layer((1, E)),
            per_layer((1, E)), per_layer((1, E)),
            const((E, vanila)), const((1, vanila)),
            const((vanila, out_dim)), const((1, out_dim)),
        ],
        out_specs=pl.BlockSpec((batch, out_dim), lambda l: (0, 0)),
        scratch_shapes=[pltpu.VMEM((M, E), jnp.float32)],
        compiler_params=pltpu.CompilerParams(
            dimension_semantics=("arbitrary",)),
    )(x2d, attn_mask,
      p["w_in"], p["b_in"], p["w_out"], p["b_out"],
      p["ln1_g"], p["ln1_b"], p["w_ff1"], p["b_ff1"],
      p["w_ff2"], p["b_ff2"], p["ln2_g"], p["ln2_b"],
      p["fc1_w"], p["fc1_b"], p["fc2_w"], p["fc2_b"])


# ---------------------------------------------------------------------------
# Model glue: embedding gather outside, everything else in the fused kernel.
# ---------------------------------------------------------------------------

def transformer_forward(inputs, prepped, *, n_head, seq):
    B = inputs.shape[0]
    x = jnp.take(prepped["embedding"], inputs, axis=0)      # (B, S, E)
    E = x.shape[-1]
    x2d = x.reshape(B * seq, E)
    # Block-diagonal additive mask: row i may only attend to columns in the
    # same batch element (batch is flattened into the row dimension).
    ids = jnp.arange(B * seq, dtype=jnp.int32) // seq
    attn_mask = jnp.where(ids[:, None] == ids[None, :], 0.0, -1e30)
    attn_mask = attn_mask.astype(jnp.float32)
    return fused_transformer(x2d, attn_mask, prepped,
                             batch=B, seq=seq, n_head=n_head)


# ---------------------------------------------------------------------------
# Parameters: module-style f32 params + one-time kernel preparation
# (stack per-layer weights, fold 1/sqrt(hd) into q, cast matmul weights bf16).
# ---------------------------------------------------------------------------

def init_params(key, vocab_size, emb_dim, n_head, n_layer, d_ff, output_dim):
    vanila = 2 * output_dim
    ks = iter(jax.random.split(key, 4 + 4 * n_layer))

    def w(shape):
        return 0.02 * jax.random.normal(next(ks), shape, dtype=jnp.float32)

    params = {
        "embedding": w((vocab_size + 1, emb_dim)),
        "fc1_w": w((emb_dim, vanila)),
        "fc1_b": jnp.zeros((vanila,), jnp.float32),
        "fc2_w": w((vanila, output_dim)),
        "fc2_b": jnp.zeros((output_dim,), jnp.float32),
        "layers": [],
    }
    for _ in range(n_layer):
        params["layers"].append({
            "w_in": w((emb_dim, 3 * emb_dim)),
            "b_in": jnp.zeros((3 * emb_dim,), jnp.float32),
            "w_out": w((emb_dim, emb_dim)),
            "b_out": jnp.zeros((emb_dim,), jnp.float32),
            "ln1_g": jnp.ones((emb_dim,), jnp.float32),
            "ln1_b": jnp.zeros((emb_dim,), jnp.float32),
            "w_ff1": w((emb_dim, d_ff)),
            "b_ff1": jnp.zeros((d_ff,), jnp.float32),
            "w_ff2": w((d_ff, emb_dim)),
            "b_ff2": jnp.zeros((emb_dim,), jnp.float32),
            "ln2_g": jnp.ones((emb_dim,), jnp.float32),
            "ln2_b": jnp.zeros((emb_dim,), jnp.float32),
        })
    return params


def prepare_params(params, n_head):
    E = params["embedding"].shape[1]
    hd = E // n_head
    scale = 1.0 / math.sqrt(hd)

    def stk(name):
        return jnp.stack([lp[name] for lp in params["layers"]], axis=0)

    def rowb(a):                                   # (L, D) -> (L, 1, D)
        return a[:, None, :]

    # Fold attention scale into the q columns of the in-projection.
    w_in = stk("w_in").at[:, :, :E].multiply(scale)
    b_in = stk("b_in").at[:, :E].multiply(scale)

    return {
        "embedding": params["embedding"],
        "w_in": w_in.astype(jnp.bfloat16),
        "b_in": rowb(b_in),
        "w_out": stk("w_out").astype(jnp.bfloat16),
        "b_out": rowb(stk("b_out")),
        "ln1_g": rowb(stk("ln1_g")), "ln1_b": rowb(stk("ln1_b")),
        "w_ff1": stk("w_ff1").astype(jnp.bfloat16),
        "b_ff1": rowb(stk("b_ff1")),
        "w_ff2": stk("w_ff2").astype(jnp.bfloat16),
        "b_ff2": rowb(stk("b_ff2")),
        "ln2_g": rowb(stk("ln2_g")), "ln2_b": rowb(stk("ln2_b")),
        "fc1_w": params["fc1_w"].astype(jnp.bfloat16),
        "fc1_b": params["fc1_b"][None, :],
        "fc2_w": params["fc2_w"].astype(jnp.bfloat16),
        "fc2_b": params["fc2_b"][None, :],
    }


# ---------------------------------------------------------------------------
# Pure-JAX f32 reference (PyTorch eval-mode semantics) for a sanity check.
# ---------------------------------------------------------------------------

def reference_forward(inputs, params, n_head):
    x = jnp.take(params["embedding"], inputs, axis=0)       # (B, S, E)
    B, S, E = x.shape
    hd = E // n_head
    for lp in params["layers"]:
        qkv = x @ lp["w_in"] + lp["b_in"]
        q, k, v = qkv[..., :E], qkv[..., E:2 * E], qkv[..., 2 * E:]
        q = q / math.sqrt(hd)

        def heads(t):
            return t.reshape(B, S, n_head, hd).transpose(0, 2, 1, 3)

        s = jnp.einsum('bhqd,bhkd->bhqk', heads(q), heads(k))
        p = jax.nn.softmax(s, axis=-1)
        a = jnp.einsum('bhqk,bhkd->bhqd', p, heads(v))
        a = a.transpose(0, 2, 1, 3).reshape(B, S, E)
        a = a @ lp["w_out"] + lp["b_out"]
        x = _ln(x + a, lp["ln1_g"], lp["ln1_b"])
        f = jnp.maximum(x @ lp["w_ff1"] + lp["b_ff1"], 0.0)
        f = f @ lp["w_ff2"] + lp["b_ff2"]
        x = _ln(x + f, lp["ln2_g"], lp["ln2_b"])
    xl = x[:, -1, :]
    y = xl @ params["fc1_w"] + params["fc1_b"]
    return y @ params["fc2_w"] + params["fc2_b"]


# ---------------------------------------------------------------------------
# Main
# ---------------------------------------------------------------------------

if __name__ == "__main__":
    B = 2                 # batch
    S = 8                 # max_len / sequence length
    vocab_size = 50
    emb_dim = 32          # d_model
    n_head = 4
    n_layer = 2
    output_dim = 16
    d_ff = 2048           # nn.TransformerEncoderLayer default dim_feedforward
    # dropout_rate = 0.1  -> identity at inference

    key = jax.random.PRNGKey(0)
    k_param, k_data = jax.random.split(key)

    params = init_params(k_param, vocab_size, emb_dim, n_head, n_layer,
                         d_ff, output_dim)
    prepped = prepare_params(params, n_head)
    inputs = jax.random.randint(k_data, (B, S), 0, vocab_size + 1,
                                dtype=jnp.int32)

    fwd = jax.jit(functools.partial(transformer_forward,
                                    n_head=n_head, seq=S))
    out = fwd(inputs, prepped)
    jax.block_until_ready(out)

    assert out.shape == (B, output_dim), out.shape
    assert out.dtype == jnp.float32

    ref = reference_forward(inputs, params, n_head)
    err = float(jnp.max(jnp.abs(out - ref)))
    assert err < 5e-2, f"max abs err vs f32 reference: {err}"
    print("KERNEL_OK")
</pallas_src>

<mosaic_0001>
module attributes {stable_mosaic.version = 11 : i64} {
  func.func @_fused_transformer_kernel(%arg0: i32, %arg1: memref<16x32xf32, #tpu.memory_space<vmem>>, %arg2: memref<16x16xf32, #tpu.memory_space<vmem>>, %arg3: memref<1x32x96xbf16, #tpu.memory_space<vmem>>, %arg4: memref<1x1x96xf32, #tpu.memory_space<vmem>>, %arg5: memref<1x32x32xbf16, #tpu.memory_space<vmem>>, %arg6: memref<1x1x32xf32, #tpu.memory_space<vmem>>, %arg7: memref<1x1x32xf32, #tpu.memory_space<vmem>>, %arg8: memref<1x1x32xf32, #tpu.memory_space<vmem>>, %arg9: memref<1x32x2048xbf16, #tpu.memory_space<vmem>>, %arg10: memref<1x1x2048xf32, #tpu.memory_space<vmem>>, %arg11: memref<1x2048x32xbf16, #tpu.memory_space<vmem>>, %arg12: memref<1x1x32xf32, #tpu.memory_space<vmem>>, %arg13: memref<1x1x32xf32, #tpu.memory_space<vmem>>, %arg14: memref<1x1x32xf32, #tpu.memory_space<vmem>>, %arg15: memref<32x32xbf16, #tpu.memory_space<vmem>>, %arg16: memref<1x32xf32, #tpu.memory_space<vmem>>, %arg17: memref<32x16xbf16, #tpu.memory_space<vmem>>, %arg18: memref<1x16xf32, #tpu.memory_space<vmem>>, %arg19: memref<2x16xf32, #tpu.memory_space<vmem>>, %arg20: memref<16x32xf32, #tpu.memory_space<vmem>>) attributes {dimension_semantics = [#tpu.dimension_semantics<arbitrary>], iteration_bounds = array<i64: 2>, scalar_prefetch = 0 : i64, scratch_operands = 1 : i64, tpu.core_type = #tpu.core_type<tc>, window_params = [{pipeline_mode = #tpu.pipeline_mode<synchronous>, transform_indices = @transform_0, window_bounds = array<i64: 16, 32>}, {pipeline_mode = #tpu.pipeline_mode<synchronous>, transform_indices = @transform_1, window_bounds = array<i64: 16, 16>}, {transform_indices = @transform_2, window_bounds = array<i64: 1, 32, 96>}, {transform_indices = @transform_3, window_bounds = array<i64: 1, 1, 96>}, {transform_indices = @transform_4, window_bounds = array<i64: 1, 32, 32>}, {transform_indices = @transform_5, window_bounds = array<i64: 1, 1, 32>}, {transform_indices = @transform_6, window_bounds = array<i64: 1, 1, 32>}, {transform_indices = @transform_7, window_bounds = array<i64: 1, 1, 32>}, {transform_indices = @transform_8, window_bounds = array<i64: 1, 32, 2048>}, {transform_indices = @transform_9, window_bounds = array<i64: 1, 1, 2048>}, {transform_indices = @transform_10, window_bounds = array<i64: 1, 2048, 32>}, {transform_indices = @transform_11, window_bounds = array<i64: 1, 1, 32>}, {transform_indices = @transform_12, window_bounds = array<i64: 1, 1, 32>}, {transform_indices = @transform_13, window_bounds = array<i64: 1, 1, 32>}, {pipeline_mode = #tpu.pipeline_mode<synchronous>, transform_indices = @transform_14, window_bounds = array<i64: 32, 32>}, {pipeline_mode = #tpu.pipeline_mode<synchronous>, transform_indices = @transform_15, window_bounds = array<i64: 1, 32>}, {pipeline_mode = #tpu.pipeline_mode<synchronous>, transform_indices = @transform_16, window_bounds = array<i64: 32, 16>}, {pipeline_mode = #tpu.pipeline_mode<synchronous>, transform_indices = @transform_17, window_bounds = array<i64: 1, 16>}, {pipeline_mode = #tpu.pipeline_mode<synchronous>, transform_indices = @transform_18, window_bounds = array<i64: 2, 16>}]} {
    %c0_i32 = arith.constant 0 : i32
    %0 = arith.cmpi eq, %arg0, %c0_i32 : i32
    %1 = arith.extui %0 : i1 to i32
    %c0_i32_0 = arith.constant 0 : i32
    %2 = arith.cmpi ne, %1, %c0_i32_0 : i32
    scf.if %2 {
      %c0_61 = arith.constant 0 : index
      %c0_62 = arith.constant 0 : index
      %151 = vector.load %arg1[%c0_61, %c0_62] : memref<16x32xf32, #tpu.memory_space<vmem>>, vector<16x32xf32>
      %c0_63 = arith.constant 0 : index
      %c0_64 = arith.constant 0 : index
      %152 = vector.load %arg20[%c0_63, %c0_64] : memref<16x32xf32, #tpu.memory_space<vmem>>, vector<16x32xf32>
      tpu.vector_store %arg20[%c0_63, %c0_64], %151 {strides = array<i32>} : memref<16x32xf32, #tpu.memory_space<vmem>>, vector<16x32xf32>,
    } else {
    }
    %c0 = arith.constant 0 : index
    %c0_1 = arith.constant 0 : index
    %3 = vector.load %arg20[%c0, %c0_1] : memref<16x32xf32, #tpu.memory_space<vmem>>, vector<16x32xf32>
    %4 = arith.truncf %3 : vector<16x32xf32> to vector<16x32xbf16>
    %c0_2 = arith.constant 0 : index
    %c0_3 = arith.constant 0 : index
    %c0_4 = arith.constant 0 : index
    %5 = vector.load %arg3[%c0_2, %c0_3, %c0_4] : memref<1x32x96xbf16, #tpu.memory_space<vmem>>, vector<1x32x96xbf16>
    %6 = vector.shape_cast %5 : vector<1x32x96xbf16> to vector<32x96xbf16>
    %cst = arith.constant dense<0.000000e+00> : vector<16x96xf32>
    %7 = tpu.matmul %4, %6, %cst {dimension_numbers = #tpu.dot_dimension_numbers<[1], [0], [0], [1], [0, 0, 1, 1], [], []>} : vector<16x32xbf16>, vector<32x96xbf16>, vector<16x96xf32> -> vector<16x96xf32>
    %c0_5 = arith.constant 0 : index
    %c0_6 = arith.constant 0 : index
    %c0_7 = arith.constant 0 : index
    %8 = vector.load %arg4[%c0_5, %c0_6, %c0_7] : memref<1x1x96xf32, #tpu.memory_space<vmem>>, vector<1x1x96xf32>
    %9 = vector.shape_cast %8 : vector<1x1x96xf32> to vector<1x96xf32>
    %10 = vector.broadcast %9 : vector<1x96xf32> to vector<16x96xf32>
    %11 = arith.addf %7, %10 : vector<16x96xf32>
    %12 = vector.extract_strided_slice %11 {offsets = [0, 0], sizes = [16, 32], strides = [1, 1]} : vector<16x96xf32> to vector<16x32xf32>
    %13 = vector.extract_strided_slice %11 {offsets = [0, 32], sizes = [16, 32], strides = [1, 1]} : vector<16x96xf32> to vector<16x32xf32>
    %14 = vector.extract_strided_slice %11 {offsets = [0, 64], sizes = [16, 32], strides = [1, 1]} : vector<16x96xf32> to vector<16x32xf32>
    %15 = vector.extract_strided_slice %12 {offsets = [0, 0], sizes = [16, 8], strides = [1, 1]} : vector<16x32xf32> to vector<16x8xf32>
    %16 = vector.extract_strided_slice %12 {offsets = [0, 8], sizes = [16, 8], strides = [1, 1]} : vector<16x32xf32> to vector<16x8xf32>
    %17 = vector.extract_strided_slice %12 {offsets = [0, 16], sizes = [16, 8], strides = [1, 1]} : vector<16x32xf32> to vector<16x8xf32>
    %18 = vector.extract_strided_slice %12 {offsets = [0, 24], sizes = [16, 8], strides = [1, 1]} : vector<16x32xf32> to vector<16x8xf32>
    %19 = vector.shape_cast %15 : vector<16x8xf32> to vector<1x16x8xf32>
    %20 = vector.shape_cast %16 : vector<16x8xf32> to vector<1x16x8xf32>
    %21 = vector.shape_cast %17 : vector<16x8xf32> to vector<1x16x8xf32>
    %22 = vector.shape_cast %18 : vector<16x8xf32> to vector<1x16x8xf32>
    %23 = tpu.concatenate %19, %20, %21, %22 in 0 : vector<1x16x8xf32>, vector<1x16x8xf32>, vector<1x16x8xf32>, vector<1x16x8xf32> -> vector<4x16x8xf32>
    %24 = arith.truncf %23 : vector<4x16x8xf32> to vector<4x16x8xbf16>
    %25 = vector.extract_strided_slice %13 {offsets = [0, 0], sizes = [16, 8], strides = [1, 1]} : vector<16x32xf32> to vector<16x8xf32>
    %26 = vector.extract_strided_slice %13 {offsets = [0, 8], sizes = [16, 8], strides = [1, 1]} : vector<16x32xf32> to vector<16x8xf32>
    %27 = vector.extract_strided_slice %13 {offsets = [0, 16], sizes = [16, 8], strides = [1, 1]} : vector<16x32xf32> to vector<16x8xf32>
    %28 = vector.extract_strided_slice %13 {offsets = [0, 24], sizes = [16, 8], strides = [1, 1]} : vector<16x32xf32> to vector<16x8xf32>
    %29 = vector.shape_cast %25 : vector<16x8xf32> to vector<1x16x8xf32>
    %30 = vector.shape_cast %26 : vector<16x8xf32> to vector<1x16x8xf32>
    %31 = vector.shape_cast %27 : vector<16x8xf32> to vector<1x16x8xf32>
    %32 = vector.shape_cast %28 : vector<16x8xf32> to vector<1x16x8xf32>
    %33 = tpu.concatenate %29, %30, %31, %32 in 0 : vector<1x16x8xf32>, vector<1x16x8xf32>, vector<1x16x8xf32>, vector<1x16x8xf32> -> vector<4x16x8xf32>
    %34 = arith.truncf %33 : vector<4x16x8xf32> to vector<4x16x8xbf16>
    %35 = vector.extract_strided_slice %14 {offsets = [0, 0], sizes = [16, 8], strides = [1, 1]} : vector<16x32xf32> to vector<16x8xf32>
    %36 = vector.extract_strided_slice %14 {offsets = [0, 8], sizes = [16, 8], strides = [1, 1]} : vector<16x32xf32> to vector<16x8xf32>
    %37 = vector.extract_strided_slice %14 {offsets = [0, 16], sizes = [16, 8], strides = [1, 1]} : vector<16x32xf32> to vector<16x8xf32>
    %38 = vector.extract_strided_slice %14 {offsets = [0, 24], sizes = [16, 8], strides = [1, 1]} : vector<16x32xf32> to vector<16x8xf32>
    %39 = vector.shape_cast %35 : vector<16x8xf32> to vector<1x16x8xf32>
    %40 = vector.shape_cast %36 : vector<16x8xf32> to vector<1x16x8xf32>
    %41 = vector.shape_cast %37 : vector<16x8xf32> to vector<1x16x8xf32>
    %42 = vector.shape_cast %38 : vector<16x8xf32> to vector<1x16x8xf32>
    %43 = tpu.concatenate %39, %40, %41, %42 in 0 : vector<1x16x8xf32>, vector<1x16x8xf32>, vector<1x16x8xf32>, vector<1x16x8xf32> -> vector<4x16x8xf32>
    %44 = arith.truncf %43 : vector<4x16x8xf32> to vector<4x16x8xbf16>
    "tpu.trace_start"() <{level = 10 : i32, message = "hqd,hkd->hqk"}> : () -> ()
    %cst_8 = arith.constant dense<0.000000e+00> : vector<4x16x16xf32>
    %45 = tpu.matmul %24, %34, %cst_8 {dimension_numbers = #tpu.dot_dimension_numbers<[2], [2], [1], [1], [0, 0, 0, 1, 1, 1], [0], [0]>} : vector<4x16x8xbf16>, vector<4x16x8xbf16>, vector<4x16x16xf32> -> vector<4x16x16xf32>
    "tpu.trace_stop"() : () -> ()
    %c0_9 = arith.constant 0 : index
    %c0_10 = arith.constant 0 : index
    %46 = vector.load %arg2[%c0_9, %c0_10] : memref<16x16xf32, #tpu.memory_space<vmem>>, vector<16x16xf32>
    %47 = vector.shape_cast %46 : vector<16x16xf32> to vector<1x16x16xf32>
    %48 = vector.broadcast %47 : vector<1x16x16xf32> to vector<4x16x16xf32>
    %49 = arith.addf %45, %48 : vector<4x16x16xf32>
    %cst_11 = arith.constant dense<0xFF800000> : vector<4x16xf32>
    %50 = vector.multi_reduction <maximumf>, %49, %cst_11 [2] : vector<4x16x16xf32> to vector<4x16xf32>
    %51 = vector.shape_cast %50 : vector<4x16xf32> to vector<4x16x1xf32>
    %52 = vector.broadcast %51 : vector<4x16x1xf32> to vector<4x16x16xf32>
    %53 = arith.subf %49, %52 : vector<4x16x16xf32>
    %54 = math.exp %53 : vector<4x16x16xf32>
    %cst_12 = arith.constant dense<0.000000e+00> : vector<4x16xf32>
    %55 = vector.multi_reduction <add>, %54, %cst_12 [2] : vector<4x16x16xf32> to vector<4x16xf32>
    %56 = vector.shape_cast %55 : vector<4x16xf32> to vector<4x16x1xf32>
    %57 = tpu.reciprocal %56 {approx = true} : vector<4x16x1xf32> -> vector<4x16x1xf32>
    %58 = vector.broadcast %57 : vector<4x16x1xf32> to vector<4x16x16xf32>
    %59 = arith.mulf %54, %58 : vector<4x16x16xf32>
    %60 = arith.truncf %59 : vector<4x16x16xf32> to vector<4x16x16xbf16>
    "tpu.trace_start"() <{level = 10 : i32, message = "hqk,hkd->hqd"}> : () -> ()
    %cst_13 = arith.constant dense<0.000000e+00> : vector<4x16x8xf32>
    %61 = tpu.matmul %60, %44, %cst_13 {dimension_numbers = #tpu.dot_dimension_numbers<[2], [1], [1], [2], [0, 0, 0, 1, 1, 2], [0], [0]>} : vector<4x16x16xbf16>, vector<4x16x8xbf16>, vector<4x16x8xf32> -> vector<4x16x8xf32>
    "tpu.trace_stop"() : () -> ()
    %62 = vector.extract_strided_slice %61 {offsets = [0, 0, 0], sizes = [1, 16, 8], strides = [1, 1, 1]} : vector<4x16x8xf32> to vector<1x16x8xf32>
    %63 = vector.shape_cast %62 : vector<1x16x8xf32> to vector<16x8xf32>
    %64 = vector.extract_strided_slice %61 {offsets = [1, 0, 0], sizes = [1, 16, 8], strides = [1, 1, 1]} : vector<4x16x8xf32> to vector<1x16x8xf32>
    %65 = vector.shape_cast %64 : vector<1x16x8xf32> to vector<16x8xf32>
    %66 = vector.extract_strided_slice %61 {offsets = [2, 0, 0], sizes = [1, 16, 8], strides = [1, 1, 1]} : vector<4x16x8xf32> to vector<1x16x8xf32>
    %67 = vector.shape_cast %66 : vector<1x16x8xf32> to vector<16x8xf32>
    %68 = vector.extract_strided_slice %61 {offsets = [3, 0, 0], sizes = [1, 16, 8], strides = [1, 1, 1]} : vector<4x16x8xf32> to vector<1x16x8xf32>
    %69 = vector.shape_cast %68 : vector<1x16x8xf32> to vector<16x8xf32>
    %70 = tpu.concatenate %63, %65, %67, %69 in 1 : vector<16x8xf32>, vector<16x8xf32>, vector<16x8xf32>, vector<16x8xf32> -> vector<16x32xf32>
    %71 = arith.truncf %70 : vector<16x32xf32> to vector<16x32xbf16>
    %c0_14 = arith.constant 0 : index
    %c0_15 = arith.constant 0 : index
    %c0_16 = arith.constant 0 : index
    %72 = vector.load %arg5[%c0_14, %c0_15, %c0_16] : memref<1x32x32xbf16, #tpu.memory_space<vmem>>, vector<1x32x32xbf16>
    %73 = vector.shape_cast %72 : vector<1x32x32xbf16> to vector<32x32xbf16>
    %cst_17 = arith.constant dense<0.000000e+00> : vector<16x32xf32>
    %74 = tpu.matmul %71, %73, %cst_17 {dimension_numbers = #tpu.dot_dimension_numbers<[1], [0], [0], [1], [0, 0, 1, 1], [], []>} : vector<16x32xbf16>, vector<32x32xbf16>, vector<16x32xf32> -> vector<16x32xf32>
    %c0_18 = arith.constant 0 : index
    %c0_19 = arith.constant 0 : index
    %c0_20 = arith.constant 0 : index
    %75 = vector.load %arg6[%c0_18, %c0_19, %c0_20] : memref<1x1x32xf32, #tpu.memory_space<vmem>>, vector<1x1x32xf32>
    %76 = vector.shape_cast %75 : vector<1x1x32xf32> to vector<1x32xf32>
    %77 = vector.broadcast %76 : vector<1x32xf32> to vector<16x32xf32>
    %78 = arith.addf %74, %77 : vector<16x32xf32>
    %79 = arith.addf %3, %78 : vector<16x32xf32>
    %c0_21 = arith.constant 0 : index
    %c0_22 = arith.constant 0 : index
    %c0_23 = arith.constant 0 : index
    %80 = vector.load %arg7[%c0_21, %c0_22, %c0_23] : memref<1x1x32xf32, #tpu.memory_space<vmem>>, vector<1x1x32xf32>
    %81 = vector.shape_cast %80 : vector<1x1x32xf32> to vector<1x32xf32>
    %c0_24 = arith.constant 0 : index
    %c0_25 = arith.constant 0 : index
    %c0_26 = arith.constant 0 : index
    %82 = vector.load %arg8[%c0_24, %c0_25, %c0_26] : memref<1x1x32xf32, #tpu.memory_space<vmem>>, vector<1x1x32xf32>
    %83 = vector.shape_cast %82 : vector<1x1x32xf32> to vector<1x32xf32>
    %cst_27 = arith.constant dense<0.000000e+00> : vector<16xf32>
    %84 = vector.multi_reduction <add>, %79, %cst_27 [1] : vector<16x32xf32> to vector<16xf32>
    %85 = vector.shape_cast %84 : vector<16xf32> to vector<16x1xf32>
    %cst_28 = arith.constant 3.200000e+01 : f32
    %86 = vector.broadcast %cst_28 : f32 to vector<16x1xf32>
    %87 = arith.divf %85, %86 : vector<16x1xf32>
    %88 = vector.broadcast %87 : vector<16x1xf32> to vector<16x32xf32>
    %89 = arith.subf %79, %88 : vector<16x32xf32>
    %90 = arith.mulf %89, %89 : vector<16x32xf32>
    %cst_29 = arith.constant dense<0.000000e+00> : vector<16xf32>
    %91 = vector.multi_reduction <add>, %90, %cst_29 [1] : vector<16x32xf32> to vector<16xf32>
    %92 = vector.shape_cast %91 : vector<16xf32> to vector<16x1xf32>
    %cst_30 = arith.constant 3.200000e+01 : f32
    %93 = vector.broadcast %cst_30 : f32 to vector<16x1xf32>
    %94 = arith.divf %92, %93 : vector<16x1xf32>
    %cst_31 = arith.constant 9.99999974E-6 : f32
    %95 = vector.broadcast %cst_31 : f32 to vector<16x1xf32>
    %96 = arith.addf %94, %95 : vector<16x1xf32>
    %97 = math.rsqrt %96 : vector<16x1xf32>
    %98 = vector.broadcast %97 : vector<16x1xf32> to vector<16x32xf32>
    %99 = arith.mulf %89, %98 : vector<16x32xf32>
    %100 = vector.broadcast %81 : vector<1x32xf32> to vector<16x32xf32>
    %101 = arith.mulf %99, %100 : vector<16x32xf32>
    %102 = vector.broadcast %83 : vector<1x32xf32> to vector<16x32xf32>
    %103 = arith.addf %101, %102 : vector<16x32xf32>
    %104 = arith.truncf %103 : vector<16x32xf32> to vector<16x32xbf16>
    %c0_32 = arith.constant 0 : index
    %c0_33 = arith.constant 0 : index
    %c0_34 = arith.constant 0 : index
    %105 = vector.load %arg9[%c0_32, %c0_33, %c0_34] : memref<1x32x2048xbf16, #tpu.memory_space<vmem>>, vector<1x32x2048xbf16>
    %106 = vector.shape_cast %105 : vector<1x32x2048xbf16> to vector<32x2048xbf16>
    %cst_35 = arith.constant dense<0.000000e+00> : vector<16x2048xf32>
    %107 = tpu.matmul %104, %106, %cst_35 {dimension_numbers = #tpu.dot_dimension_numbers<[1], [0], [0], [1], [0, 0, 1, 1], [], []>} : vector<16x32xbf16>, vector<32x2048xbf16>, vector<16x2048xf32> -> vector<16x2048xf32>
    %c0_36 = arith.constant 0 : index
    %c0_37 = arith.constant 0 : index
    %c0_38 = arith.constant 0 : index
    %108 = vector.load %arg10[%c0_36, %c0_37, %c0_38] : memref<1x1x2048xf32, #tpu.memory_space<vmem>>, vector<1x1x2048xf32>
    %109 = vector.shape_cast %108 : vector<1x1x2048xf32> to vector<1x2048xf32>
    %110 = vector.broadcast %109 : vector<1x2048xf32> to vector<16x2048xf32>
    %111 = arith.addf %107, %110 : vector<16x2048xf32>
    %cst_39 = arith.constant 0.000000e+00 : f32
    %112 = vector.broadcast %cst_39 : f32 to vector<16x2048xf32>
    %113 = arith.maximumf %111, %112 : vector<16x2048xf32>
    %114 = arith.truncf %113 : vector<16x2048xf32> to vector<16x2048xbf16>
    %c0_40 = arith.constant 0 : index
    %c0_41 = arith.constant 0 : index
    %c0_42 = arith.constant 0 : index
    %115 = vector.load %arg11[%c0_40, %c0_41, %c0_42] : memref<1x2048x32xbf16, #tpu.memory_space<vmem>>, vector<1x2048x32xbf16>
    %116 = vector.shape_cast %115 : vector<1x2048x32xbf16> to vector<2048x32xbf16>
    %cst_43 = arith.constant dense<0.000000e+00> : vector<16x32xf32>
    %117 = tpu.matmul %114, %116, %cst_43 {dimension_numbers = #tpu.dot_dimension_numbers<[1], [0], [0], [1], [0, 0, 1, 1], [], []>} : vector<16x2048xbf16>, vector<2048x32xbf16>, vector<16x32xf32> -> vector<16x32xf32>
    %c0_44 = arith.constant 0 : index
    %c0_45 = arith.constant 0 : index
    %c0_46 = arith.constant 0 : index
    %118 = vector.load %arg12[%c0_44, %c0_45, %c0_46] : memref<1x1x32xf32, #tpu.memory_space<vmem>>, vector<1x1x32xf32>
    %119 = vector.shape_cast %118 : vector<1x1x32xf32> to vector<1x32xf32>
    %120 = vector.broadcast %119 : vector<1x32xf32> to vector<16x32xf32>
    %121 = arith.addf %117, %120 : vector<16x32xf32>
    %122 = arith.addf %103, %121 : vector<16x32xf32>
    %c0_47 = arith.constant 0 : index
    %c0_48 = arith.constant 0 : index
    %c0_49 = arith.constant 0 : index
    %123 = vector.load %arg13[%c0_47, %c0_48, %c0_49] : memref<1x1x32xf32, #tpu.memory_space<vmem>>, vector<1x1x32xf32>
    %124 = vector.shape_cast %123 : vector<1x1x32xf32> to vector<1x32xf32>
    %c0_50 = arith.constant 0 : index
    %c0_51 = arith.constant 0 : index
    %c0_52 = arith.constant 0 : index
    %125 = vector.load %arg14[%c0_50, %c0_51, %c0_52] : memref<1x1x32xf32, #tpu.memory_space<vmem>>, vector<1x1x32xf32>
    %126 = vector.shape_cast %125 : vector<1x1x32xf32> to vector<1x32xf32>
    %cst_53 = arith.constant dense<0.000000e+00> : vector<16xf32>
    %127 = vector.multi_reduction <add>, %122, %cst_53 [1] : vector<16x32xf32> to vector<16xf32>
    %128 = vector.shape_cast %127 : vector<16xf32> to vector<16x1xf32>
    %cst_54 = arith.constant 3.200000e+01 : f32
    %129 = vector.broadcast %cst_54 : f32 to vector<16x1xf32>
    %130 = arith.divf %128, %129 : vector<16x1xf32>
    %131 = vector.broadcast %130 : vector<16x1xf32> to vector<16x32xf32>
    %132 = arith.subf %122, %131 : vector<16x32xf32>
    %133 = arith.mulf %132, %132 : vector<16x32xf32>
    %cst_55 = arith.constant dense<0.000000e+00> : vector<16xf32>
    %134 = vector.multi_reduction <add>, %133, %cst_55 [1] : vector<16x32xf32> to vector<16xf32>
    %135 = vector.shape_cast %134 : vector<16xf32> to vector<16x1xf32>
    %cst_56 = arith.constant 3.200000e+01 : f32
    %136 = vector.broadcast %cst_56 : f32 to vector<16x1xf32>
    %137 = arith.divf %135, %136 : vector<16x1xf32>
    %cst_57 = arith.constant 9.99999974E-6 : f32
    %138 = vector.broadcast %cst_57 : f32 to vector<16x1xf32>
    %139 = arith.addf %137, %138 : vector<16x1xf32>
    %140 = math.rsqrt %139 : vector<16x1xf32>
    %141 = vector.broadcast %140 : vector<16x1xf32> to vector<16x32xf32>
    %142 = arith.mulf %132, %141 : vector<16x32xf32>
    %143 = vector.broadcast %124 : vector<1x32xf32> to vector<16x32xf32>
    %144 = arith.mulf %142, %143 : vector<16x32xf32>
    %145 = vector.broadcast %126 : vector<1x32xf32> to vector<16x32xf32>
    %146 = arith.addf %144, %145 : vector<16x32xf32>
    %c0_58 = arith.constant 0 : index
    %c0_59 = arith.constant 0 : index
    %147 = vector.load %arg20[%c0_58, %c0_59] : memref<16x32xf32, #tpu.memory_space<vmem>>, vector<16x32xf32>
    tpu.vector_store %arg20[%c0_58, %c0_59], %146 {strides = array<i32>} : memref<16x32xf32, #tpu.memory_space<vmem>>, vector<16x32xf32>,
    %c1_i32 = arith.constant 1 : i32
    %148 = arith.cmpi eq, %arg0, %c1_i32 : i32
    %149 = arith.extui %148 : i1 to i32
    %c0_i32_60 = arith.constant 0 : i32
    %150 = arith.cmpi ne, %149, %c0_i32_60 : i32
    scf.if %150 {
      %151 = vector.shape_cast %146 : vector<16x32xf32> to vector<2x8x32xf32>
      %152 = vector.extract_strided_slice %151 {offsets = [0, 7, 0], sizes = [2, 1, 32], strides = [1, 1, 1]} : vector<2x8x32xf32> to vector<2x1x32xf32>
      %153 = vector.shape_cast %152 : vector<2x1x32xf32> to vector<2x32xf32>
      %154 = arith.truncf %153 : vector<2x32xf32> to vector<2x32xbf16>
      %c0_61 = arith.constant 0 : index
      %c0_62 = arith.constant 0 : index
      %155 = vector.load %arg15[%c0_61, %c0_62] : memref<32x32xbf16, #tpu.memory_space<vmem>>, vector<32x32xbf16>
      %cst_63 = arith.constant dense<0.000000e+00> : vector<2x32xf32>
      %156 = tpu.matmul %154, %155, %cst_63 {dimension_numbers = #tpu.dot_dimension_numbers<[1], [0], [0], [1], [0, 0, 1, 1], [], []>} : vector<2x32xbf16>, vector<32x32xbf16>, vector<2x32xf32> -> vector<2x32xf32>
      %c0_64 = arith.constant 0 : index
      %c0_65 = arith.constant 0 : index
      %157 = vector.load %arg16[%c0_64, %c0_65] : memref<1x32xf32, #tpu.memory_space<vmem>>, vector<1x32xf32>
      %158 = vector.broadcast %157 : vector<1x32xf32> to vector<2x32xf32>
      %159 = arith.addf %156, %158 : vector<2x32xf32>
      %160 = arith.truncf %159 : vector<2x32xf32> to vector<2x32xbf16>
      %c0_66 = arith.constant 0 : index
      %c0_67 = arith.constant 0 : index
      %161 = vector.load %arg17[%c0_66, %c0_67] : memref<32x16xbf16, #tpu.memory_space<vmem>>, vector<32x16xbf16>
      %cst_68 = arith.constant dense<0.000000e+00> : vector<2x16xf32>
      %162 = tpu.matmul %160, %161, %cst_68 {dimension_numbers = #tpu.dot_dimension_numbers<[1], [0], [0], [1], [0, 0, 1, 1], [], []>} : vector<2x32xbf16>, vector<32x16xbf16>, vector<2x16xf32> -> vector<2x16xf32>
      %c0_69 = arith.constant 0 : index
      %c0_70 = arith.constant 0 : index
      %163 = vector.load %arg18[%c0_69, %c0_70] : memref<1x16xf32, #tpu.memory_space<vmem>>, vector<1x16xf32>
      %164 = vector.broadcast %163 : vector<1x16xf32> to vector<2x16xf32>
      %165 = arith.addf %162, %164 : vector<2x16xf32>
      %c0_71 = arith.constant 0 : index
      %c0_72 = arith.constant 0 : index
      %166 = vector.load %arg19[%c0_71, %c0_72] : memref<2x16xf32, #tpu.memory_space<vmem>>, vector<2x16xf32>
      tpu.vector_store %arg19[%c0_71, %c0_72], %165 {strides = array<i32>} : memref<2x16xf32, #tpu.memory_space<vmem>>, vector<2x16xf32>,
    } else {
    }
    return
  }
  func.func @transform_0(%arg0: i32) -> (i32, i32) {
    %c0_i32 = arith.constant 0 : i32
    %c0_i32_0 = arith.constant 0 : i32
    %c0_i32_1 = arith.constant 0 : i32
    return %c0_i32, %c0_i32_0 : i32, i32
  }
  func.func @transform_1(%arg0: i32) -> (i32, i32) {
    %c0_i32 = arith.constant 0 : i32
    %c0_i32_0 = arith.constant 0 : i32
    %c0_i32_1 = arith.constant 0 : i32
    return %c0_i32, %c0_i32_0 : i32, i32
  }
  func.func @transform_2(%arg0: i32) -> (i32, i32, i32) {
    %c0_i32 = arith.constant 0 : i32
    %c0_i32_0 = arith.constant 0 : i32
    %c0_i32_1 = arith.constant 0 : i32
    return %arg0, %c0_i32, %c0_i32_0 : i32, i32, i32
  }
  func.func @transform_3(%arg0: i32) -> (i32, i32, i32) {
    %c0_i32 = arith.constant 0 : i32
    %c0_i32_0 = arith.constant 0 : i32
    %c0_i32_1 = arith.constant 0 : i32
    return %arg0, %c0_i32, %c0_i32_0 : i32, i32, i32
  }
  func.func @transform_4(%arg0: i32) -> (i32, i32, i32) {
    %c0_i32 = arith.constant 0 : i32
    %c0_i32_0 = arith.constant 0 : i32
    %c0_i32_1 = arith.constant 0 : i32
    return %arg0, %c0_i32, %c0_i32_0 : i32, i32, i32
  }
  func.func @transform_5(%arg0: i32) -> (i32, i32, i32) {
    %c0_i32 = arith.constant 0 : i32
    %c0_i32_0 = arith.constant 0 : i32
    %c0_i32_1 = arith.constant 0 : i32
    return %arg0, %c0_i32, %c0_i32_0 : i32, i32, i32
  }
  func.func @transform_6(%arg0: i32) -> (i32, i32, i32) {
    %c0_i32 = arith.constant 0 : i32
    %c0_i32_0 = arith.constant 0 : i32
    %c0_i32_1 = arith.constant 0 : i32
    return %arg0, %c0_i32, %c0_i32_0 : i32, i32, i32
  }
  func.func @transform_7(%arg0: i32) -> (i32, i32, i32) {
    %c0_i32 = arith.constant 0 : i32
    %c0_i32_0 = arith.constant 0 : i32
    %c0_i32_1 = arith.constant 0 : i32
    return %arg0, %c0_i32, %c0_i32_0 : i32, i32, i32
  }
  func.func @transform_8(%arg0: i32) -> (i32, i32, i32) {
    %c0_i32 = arith.constant 0 : i32
    %c0_i32_0 = arith.constant 0 : i32
    %c0_i32_1 = arith.constant 0 : i32
    return %arg0, %c0_i32, %c0_i32_0 : i32, i32, i32
  }
  func.func @transform_9(%arg0: i32) -> (i32, i32, i32) {
    %c0_i32 = arith.constant 0 : i32
    %c0_i32_0 = arith.constant 0 : i32
    %c0_i32_1 = arith.constant 0 : i32
    return %arg0, %c0_i32, %c0_i32_0 : i32, i32, i32
  }
  func.func @transform_10(%arg0: i32) -> (i32, i32, i32) {
    %c0_i32 = arith.constant 0 : i32
    %c0_i32_0 = arith.constant 0 : i32
    %c0_i32_1 = arith.constant 0 : i32
    return %arg0, %c0_i32, %c0_i32_0 : i32, i32, i32
  }
  func.func @transform_11(%arg0: i32) -> (i32, i32, i32) {
    %c0_i32 = arith.constant 0 : i32
    %c0_i32_0 = arith.constant 0 : i32
    %c0_i32_1 = arith.constant 0 : i32
    return %arg0, %c0_i32, %c0_i32_0 : i32, i32, i32
  }
  func.func @transform_12(%arg0: i32) -> (i32, i32, i32) {
    %c0_i32 = arith.constant 0 : i32
    %c0_i32_0 = arith.constant 0 : i32
    %c0_i32_1 = arith.constant 0 : i32
    return %arg0, %c0_i32, %c0_i32_0 : i32, i32, i32
  }
  func.func @transform_13(%arg0: i32) -> (i32, i32, i32) {
    %c0_i32 = arith.constant 0 : i32
    %c0_i32_0 = arith.constant 0 : i32
    %c0_i32_1 = arith.constant 0 : i32
    return %arg0, %c0_i32, %c0_i32_0 : i32, i32, i32
  }
  func.func @transform_14(%arg0: i32) -> (i32, i32) {
    %c0_i32 = arith.constant 0 : i32
    %c0_i32_0 = arith.constant 0 : i32
    %c0_i32_1 = arith.constant 0 : i32
    return %c0_i32, %c0_i32_0 : i32, i32
  }
  func.func @transform_15(%arg0: i32) -> (i32, i32) {
    %c0_i32 = arith.constant 0 : i32
    %c0_i32_0 = arith.constant 0 : i32
    %c0_i32_1 = arith.constant 0 : i32
    return %c0_i32, %c0_i32_0 : i32, i32
  }
  func.func @transform_16(%arg0: i32) -> (i32, i32) {
    %c0_i32 = arith.constant 0 : i32
    %c0_i32_0 = arith.constant 0 : i32
    %c0_i32_1 = arith.constant 0 : i32
    return %c0_i32, %c0_i32_0 : i32, i32
  }
  func.func @transform_17(%arg0: i32) -> (i32, i32) {
    %c0_i32 = arith.constant 0 : i32
    %c0_i32_0 = arith.constant 0 : i32
    %c0_i32_1 = arith.constant 0 : i32
    return %c0_i32, %c0_i32_0 : i32, i32
  }
  func.func @transform_18(%arg0: i32) -> (i32, i32) {
    %c0_i32 = arith.constant 0 : i32
    %c0_i32_0 = arith.constant 0 : i32
    %c0_i32_1 = arith.constant 0 : i32
    return %c0_i32, %c0_i32_0 : i32, i32
  }
}

</mosaic_0001>

<llo_original>
// kernel: transformer_forward.1
$region0: #{transformer_forward.1}
  #allocation0 [shape = 'u32[]', space=smem, size = 0x4, offset = 0x4, fixed_abs, tag = 'smem constant byte address 0x4 - core index']
  #allocation1 [shape = 'u32[72,128]{1,0:T(1,128)}', space=vmem, size = 0x9000, scoped, tag = 'internal scratch']
  #allocation2 [shape = 'f32[16,32]{1,0:T(8,128)}', space=vmem, size = 0x2000, scoped, tag = 'scratch operand']
  %s0 = inlined_call_operand.vmem [shape: f32[16,32], index: 0, kind: input, shape index: {}]
  %s1 = inlined_call_operand.vmem [shape: f32[16,16], index: 1, kind: input, shape index: {}]
  %s2 = inlined_call_operand.vmem [shape: bf16[2,32,96], index: 2, kind: input, shape index: {}]
  %s3 = inlined_call_operand.vmem [shape: f32[2,1,96], index: 3, kind: input, shape index: {}]
  %s4 = inlined_call_operand.vmem [shape: bf16[2,32,32], index: 4, kind: input, shape index: {}]
  %s5 = inlined_call_operand.vmem [shape: f32[2,1,32], index: 5, kind: input, shape index: {}]
  %s6 = inlined_call_operand.vmem [shape: f32[2,1,32], index: 6, kind: input, shape index: {}]
  %s7 = inlined_call_operand.vmem [shape: f32[2,1,32], index: 7, kind: input, shape index: {}]
  %s8 = inlined_call_operand.vmem [shape: bf16[2,32,2048], index: 8, kind: input, shape index: {}]
  %s9 = inlined_call_operand.vmem [shape: f32[2,1,2048], index: 9, kind: input, shape index: {}]
  %s10 = inlined_call_operand.vmem [shape: bf16[2,2048,32], index: 10, kind: input, shape index: {}]
  %s11 = inlined_call_operand.vmem [shape: f32[2,1,32], index: 11, kind: input, shape index: {}]
  %s12 = inlined_call_operand.vmem [shape: f32[2,1,32], index: 12, kind: input, shape index: {}]
  %s13 = inlined_call_operand.vmem [shape: f32[2,1,32], index: 13, kind: input, shape index: {}]
  %s14 = inlined_call_operand.vmem [shape: bf16[32,32], index: 14, kind: input, shape index: {}]
  %s15 = inlined_call_operand.vmem [shape: f32[1,32], index: 15, kind: input, shape index: {}]
  %s16 = inlined_call_operand.vmem [shape: bf16[32,16], index: 16, kind: input, shape index: {}]
  %s17 = inlined_call_operand.vmem [shape: f32[1,16], index: 17, kind: input, shape index: {}]
  %s18 = inlined_call_operand.hbm [shape: f32[2,16], index: 18, kind: output, shape index: {}]
  %s19 = sld [smem:[#allocation0]]
  $region113: #{transformer_forward.1} parent=0
    _
  %s21 = ssub.s32 1, %s19
  %s22 = scalar_select 0, %s21, %s19
  $region1: #{transformer_forward.1} parent=0
    #allocation3 [shape = 'u8[1024]{0}', space=vmem, size = 0x400, scoped, tag = 'output window, operand 0, single buffered']
    #allocation4 [shape = 's32[2]{0}', space=sflag, size = 0x8, scoped, tag = 'scoped memory for transformer_forward.1']
    %23 = vsyncpa [#allocation4], 0
    loop: start=0, step=1, limit=4
    $region2: #{transformer_forward.1} parent=1 // loop_pre_header
      _
    $region3: #{transformer_forward.1} parent=1 // loop_header
      %s25 = sphi 0, %s29
      %p26 = scmp.ge.s32.totalorder %s25, 4
      %s33 = sphi 0, %s33
      %s35 = sphi 0, %s33
      %s36 = sphi 0, %s35
      %s50 = sphi 0, %s36
      %s54 = sphi 0, %s54
      %s56 = sphi 0, %s54
      %s57 = sphi 0, %s56
      %s71 = sphi 0, %s57
      %s77 = sphi 0, %s79
      %s80 = sphi 0, %s77
      %s81 = sphi 0, %s80
      %s97 = sphi 0, %s81
      %s103 = sphi 0, %s105
      %s106 = sphi 0, %s103
      %s107 = sphi 0, %s106
      %s123 = sphi 0, %s107
      %s129 = sphi 0, %s131
      %s132 = sphi 0, %s129
      %s133 = sphi 0, %s132
      %s149 = sphi 0, %s133
      %s155 = sphi 0, %s157
      %s158 = sphi 0, %s155
      %s159 = sphi 0, %s158
      %s175 = sphi 0, %s159
      %s181 = sphi 0, %s183
      %s184 = sphi 0, %s181
      %s185 = sphi 0, %s184
      %s201 = sphi 0, %s185
      %s207 = sphi 0, %s209
      %s210 = sphi 0, %s207
      %s211 = sphi 0, %s210
      %s227 = sphi 0, %s211
      %s233 = sphi 0, %s235
      %s236 = sphi 0, %s233
      %s237 = sphi 0, %s236
      %s253 = sphi 0, %s237
      %s259 = sphi 0, %s261
      %s262 = sphi 0, %s259
      %s263 = sphi 0, %s262
      %s279 = sphi 0, %s263
      %s285 = sphi 0, %s287
      %s288 = sphi 0, %s285
      %s289 = sphi 0, %s288
      %s305 = sphi 0, %s289
      %s311 = sphi 0, %s313
      %s314 = sphi 0, %s311
      %s315 = sphi 0, %s314
      %s331 = sphi 0, %s315
      %s337 = sphi 0, %s339
      %s340 = sphi 0, %s337
      %s341 = sphi 0, %s340
      %s357 = sphi 0, %s341
      %s363 = sphi 0, %s365
      %s366 = sphi 0, %s363
      %s367 = sphi 0, %s366
      %s383 = sphi 0, %s367
      %s387 = sphi 0, %s387
      %s389 = sphi 0, %s387
      %s390 = sphi 0, %s389
      %s404 = sphi 0, %s390
      %s408 = sphi 0, %s408
      %s410 = sphi 0, %s408
      %s411 = sphi 0, %s410
      %s425 = sphi 0, %s411
      %s429 = sphi 0, %s429
      %s431 = sphi 0, %s429
      %s432 = sphi 0, %s431
      %s446 = sphi 0, %s432
      %s450 = sphi 0, %s450
      %s452 = sphi 0, %s450
      %s453 = sphi 0, %s452
      %s467 = sphi 0, %s453
      %s471 = sphi 0, %s471
      %s473 = sphi 0, %s471
      %s474 = sphi 0, %s473
      %s488 = sphi 0, %s474
    $region4: #{transformer_forward.1} parent=1 // loop_header_branch
      %28 = sbr.rel (%p26) target = $region8
    $region5: #{transformer_forward.1} parent=1 // loop_body
      %s30 = ssub.s32 %s25, 1
      %s31 = ssub.s32 %s25, 2
      %s32 = sadd.s32 %s25, 1
      %s34 = sadd.s32 %s33, 1
      %p37 = scmp.eq.s32.totalorder %s25, 1
      %p38 = scmp.ne.s32.totalorder %s33, %s35
      %p39 = scmp.eq.s32.totalorder %s25, 0
      %p40 = por %p38, %p39
      %p41 = scmp.ne.s32.totalorder %s33, %s35
      %p42 = scmp.eq.s32.totalorder %s30, 1
      %p43 = por %p41, %p42
      %p44 = scmp.ne.s32.totalorder %s35, %s36
      %p45 = scmp.eq.s32.totalorder %s30, 0
      %p46 = por %p44, %p45
      %p47 = scmp.ne.s32.totalorder %s35, %s36
      %p48 = scmp.eq.s32.totalorder %s31, 1
      %p49 = por %p47, %p48
      %p51 = scmp.ne.s32.totalorder %s36, %s50
      %p52 = scmp.eq.s32.totalorder %s31, 0
      %p53 = por %p51, %p52
      %s55 = sadd.s32 %s54, 1
      %p58 = scmp.eq.s32.totalorder %s25, 1
      %p59 = scmp.ne.s32.totalorder %s54, %s56
      %p60 = scmp.eq.s32.totalorder %s25, 0
      %p61 = por %p59, %p60
      %p62 = scmp.ne.s32.totalorder %s54, %s56
      %p63 = scmp.eq.s32.totalorder %s30, 1
      %p64 = por %p62, %p63
      %p65 = scmp.ne.s32.totalorder %s56, %s57
      %p66 = scmp.eq.s32.totalorder %s30, 0
      %p67 = por %p65, %p66
      %p68 = scmp.ne.s32.totalorder %s56, %s57
      %p69 = scmp.eq.s32.totalorder %s31, 1
      %p70 = por %p68, %p69
      %p72 = scmp.ne.s32.totalorder %s57, %s71
      %p73 = scmp.eq.s32.totalorder %s31, 0
      %p74 = por %p72, %p73
      %s75 = ssub.s32 %s25, %s32
      %p76 = scmp.eq.s32.totalorder %s75, 0
      %s78 = sadd.s32 %s77, 1
      %s79 = scalar_select %p76, %s77, %s78
      %p82 = pneg %p76
      %p83 = scmp.eq.s32.totalorder %s25, 1
      %p84 = por %p82, %p83
      %p85 = scmp.ne.s32.totalorder %s77, %s80
      %p86 = scmp.eq.s32.totalorder %s25, 0
      %p87 = por %p85, %p86
      %p88 = scmp.ne.s32.totalorder %s77, %s80
      %p89 = scmp.eq.s32.totalorder %s30, 1
      %p90 = por %p88, %p89
      %p91 = scmp.ne.s32.totalorder %s80, %s81
      %p92 = scmp.eq.s32.totalorder %s30, 0
      %p93 = por %p91, %p92
      %p94 = scmp.ne.s32.totalorder %s80, %s81
      %p95 = scmp.eq.s32.totalorder %s31, 1
      %p96 = por %p94, %p95
      %p98 = scmp.ne.s32.totalorder %s81, %s97
      %p99 = scmp.eq.s32.totalorder %s31, 0
      %p100 = por %p98, %p99
      %s101 = ssub.s32 %s25, %s32
      %p102 = scmp.eq.s32.totalorder %s101, 0
      %s104 = sadd.s32 %s103, 1
      %s105 = scalar_select %p102, %s103, %s104
      %p108 = pneg %p102
      %p109 = scmp.eq.s32.totalorder %s25, 1
      %p110 = por %p108, %p109
      %p111 = scmp.ne.s32.totalorder %s103, %s106
      %p112 = scmp.eq.s32.totalorder %s25, 0
      %p113 = por %p111, %p112
      %p114 = scmp.ne.s32.totalorder %s103, %s106
      %p115 = scmp.eq.s32.totalorder %s30, 1
      %p116 = por %p114, %p115
      %p117 = scmp.ne.s32.totalorder %s106, %s107
      %p118 = scmp.eq.s32.totalorder %s30, 0
      %p119 = por %p117, %p118
      %p120 = scmp.ne.s32.totalorder %s106, %s107
      %p121 = scmp.eq.s32.totalorder %s31, 1
      %p122 = por %p120, %p121
      %p124 = scmp.ne.s32.totalorder %s107, %s123
      %p125 = scmp.eq.s32.totalorder %s31, 0
      %p126 = por %p124, %p125
      %s127 = ssub.s32 %s25, %s32
      %p128 = scmp.eq.s32.totalorder %s127, 0
      %s130 = sadd.s32 %s129, 1
      %s131 = scalar_select %p128, %s129, %s130
      %p134 = pneg %p128
      %p135 = scmp.eq.s32.totalorder %s25, 1
      %p136 = por %p134, %p135
      %p137 = scmp.ne.s32.totalorder %s129, %s132
      %p138 = scmp.eq.s32.totalorder %s25, 0
      %p139 = por %p137, %p138
      %p140 = scmp.ne.s32.totalorder %s129, %s132
      %p141 = scmp.eq.s32.totalorder %s30, 1
      %p142 = por %p140, %p141
      %p143 = scmp.ne.s32.totalorder %s132, %s133
      %p144 = scmp.eq.s32.totalorder %s30, 0
      %p145 = por %p143, %p144
      %p146 = scmp.ne.s32.totalorder %s132, %s133
      %p147 = scmp.eq.s32.totalorder %s31, 1
      %p148 = por %p146, %p147
      %p150 = scmp.ne.s32.totalorder %s133, %s149
      %p151 = scmp.eq.s32.totalorder %s31, 0
      %p152 = por %p150, %p151
      %s153 = ssub.s32 %s25, %s32
      %p154 = scmp.eq.s32.totalorder %s153, 0
      %s156 = sadd.s32 %s155, 1
      %s157 = scalar_select %p154, %s155, %s156
      %p160 = pneg %p154
      %p161 = scmp.eq.s32.totalorder %s25, 1
      %p162 = por %p160, %p161
      %p163 = scmp.ne.s32.totalorder %s155, %s158
      %p164 = scmp.eq.s32.totalorder %s25, 0
      %p165 = por %p163, %p164
      %p166 = scmp.ne.s32.totalorder %s155, %s158
      %p167 = scmp.eq.s32.totalorder %s30, 1
      %p168 = por %p166, %p167
      %p169 = scmp.ne.s32.totalorder %s158, %s159
      %p170 = scmp.eq.s32.totalorder %s30, 0
      %p171 = por %p169, %p170
      %p172 = scmp.ne.s32.totalorder %s158, %s159
      %p173 = scmp.eq.s32.totalorder %s31, 1
      %p174 = por %p172, %p173
      %p176 = scmp.ne.s32.totalorder %s159, %s175
      %p177 = scmp.eq.s32.totalorder %s31, 0
      %p178 = por %p176, %p177
      %s179 = ssub.s32 %s25, %s32
      %p180 = scmp.eq.s32.totalorder %s179, 0
      %s182 = sadd.s32 %s181, 1
      %s183 = scalar_select %p180, %s181, %s182
      %p186 = pneg %p180
      %p187 = scmp.eq.s32.totalorder %s25, 1
      %p188 = por %p186, %p187
      %p189 = scmp.ne.s32.totalorder %s181, %s184
      %p190 = scmp.eq.s32.totalorder %s25, 0
      %p191 = por %p189, %p190
      %p192 = scmp.ne.s32.totalorder %s181, %s184
      %p193 = scmp.eq.s32.totalorder %s30, 1
      %p194 = por %p192, %p193
      %p195 = scmp.ne.s32.totalorder %s184, %s185
      %p196 = scmp.eq.s32.totalorder %s30, 0
      %p197 = por %p195, %p196
      %p198 = scmp.ne.s32.totalorder %s184, %s185
      %p199 = scmp.eq.s32.totalorder %s31, 1
      %p200 = por %p198, %p199
      %p202 = scmp.ne.s32.totalorder %s185, %s201
      %p203 = scmp.eq.s32.totalorder %s31, 0
      %p204 = por %p202, %p203
      %s205 = ssub.s32 %s25, %s32
      %p206 = scmp.eq.s32.totalorder %s205, 0
      %s208 = sadd.s32 %s207, 1
      %s209 = scalar_select %p206, %s207, %s208
      %p212 = pneg %p206
      %p213 = scmp.eq.s32.totalorder %s25, 1
      %p214 = por %p212, %p213
      %p215 = scmp.ne.s32.totalorder %s207, %s210
      %p216 = scmp.eq.s32.totalorder %s25, 0
      %p217 = por %p215, %p216
      %p218 = scmp.ne.s32.totalorder %s207, %s210
      %p219 = scmp.eq.s32.totalorder %s30, 1
      %p220 = por %p218, %p219
      %p221 = scmp.ne.s32.totalorder %s210, %s211
      %p222 = scmp.eq.s32.totalorder %s30, 0
      %p223 = por %p221, %p222
      %p224 = scmp.ne.s32.totalorder %s210, %s211
      %p225 = scmp.eq.s32.totalorder %s31, 1
      %p226 = por %p224, %p225
      %p228 = scmp.ne.s32.totalorder %s211, %s227
      %p229 = scmp.eq.s32.totalorder %s31, 0
      %p230 = por %p228, %p229
      %s231 = ssub.s32 %s25, %s32
      %p232 = scmp.eq.s32.totalorder %s231, 0
      %s234 = sadd.s32 %s233, 1
      %s235 = scalar_select %p232, %s233, %s234
      %p238 = pneg %p232
      %p239 = scmp.eq.s32.totalorder %s25, 1
      %p240 = por %p238, %p239
      %p241 = scmp.ne.s32.totalorder %s233, %s236
      %p242 = scmp.eq.s32.totalorder %s25, 0
      %p243 = por %p241, %p242
      %p244 = scmp.ne.s32.totalorder %s233, %s236
      %p245 = scmp.eq.s32.totalorder %s30, 1
      %p246 = por %p244, %p245
      %p247 = scmp.ne.s32.totalorder %s236, %s237
      %p248 = scmp.eq.s32.totalorder %s30, 0
      %p249 = por %p247, %p248
      %p250 = scmp.ne.s32.totalorder %s236, %s237
      %p251 = scmp.eq.s32.totalorder %s31, 1
      %p252 = por %p250, %p251
      %p254 = scmp.ne.s32.totalorder %s237, %s253
      %p255 = scmp.eq.s32.totalorder %s31, 0
      %p256 = por %p254, %p255
      %s257 = ssub.s32 %s25, %s32
      %p258 = scmp.eq.s32.totalorder %s257, 0
      %s260 = sadd.s32 %s259, 1
      %s261 = scalar_select %p258, %s259, %s260
      %p264 = pneg %p258
      %p265 = scmp.eq.s32.totalorder %s25, 1
      %p266 = por %p264, %p265
      %p267 = scmp.ne.s32.totalorder %s259, %s262
      %p268 = scmp.eq.s32.totalorder %s25, 0
      %p269 = por %p267, %p268
      %p270 = scmp.ne.s32.totalorder %s259, %s262
      %p271 = scmp.eq.s32.totalorder %s30, 1
      %p272 = por %p270, %p271
      %p273 = scmp.ne.s32.totalorder %s262, %s263
      %p274 = scmp.eq.s32.totalorder %s30, 0
      %p275 = por %p273, %p274
      %p276 = scmp.ne.s32.totalorder %s262, %s263
      %p277 = scmp.eq.s32.totalorder %s31, 1
      %p278 = por %p276, %p277
      %p280 = scmp.ne.s32.totalorder %s263, %s279
      %p281 = scmp.eq.s32.totalorder %s31, 0
      %p282 = por %p280, %p281
      %s283 = ssub.s32 %s25, %s32
      %p284 = scmp.eq.s32.totalorder %s283, 0
      %s286 = sadd.s32 %s285, 1
      %s287 = scalar_select %p284, %s285, %s286
      %p290 = pneg %p284
      %p291 = scmp.eq.s32.totalorder %s25, 1
      %p292 = por %p290, %p291
      %p293 = scmp.ne.s32.totalorder %s285, %s288
      %p294 = scmp.eq.s32.totalorder %s25, 0
      %p295 = por %p293, %p294
      %p296 = scmp.ne.s32.totalorder %s285, %s288
      %p297 = scmp.eq.s32.totalorder %s30, 1
      %p298 = por %p296, %p297
      %p299 = scmp.ne.s32.totalorder %s288, %s289
      %p300 = scmp.eq.s32.totalorder %s30, 0
      %p301 = por %p299, %p300
      %p302 = scmp.ne.s32.totalorder %s288, %s289
      %p303 = scmp.eq.s32.totalorder %s31, 1
      %p304 = por %p302, %p303
      %p306 = scmp.ne.s32.totalorder %s289, %s305
      %p307 = scmp.eq.s32.totalorder %s31, 0
      %p308 = por %p306, %p307
      %s309 = ssub.s32 %s25, %s32
      %p310 = scmp.eq.s32.totalorder %s309, 0
      %s312 = sadd.s32 %s311, 1
      %s313 = scalar_select %p310, %s311, %s312
      %p316 = pneg %p310
      %p317 = scmp.eq.s32.totalorder %s25, 1
      %p318 = por %p316, %p317
      %p319 = scmp.ne.s32.totalorder %s311, %s314
      %p320 = scmp.eq.s32.totalorder %s25, 0
      %p321 = por %p319, %p320
      %p322 = scmp.ne.s32.totalorder %s311, %s314
      %p323 = scmp.eq.s32.totalorder %s30, 1
      %p324 = por %p322, %p323
      %p325 = scmp.ne.s32.totalorder %s314, %s315
      %p326 = scmp.eq.s32.totalorder %s30, 0
      %p327 = por %p325, %p326
      %p328 = scmp.ne.s32.totalorder %s314, %s315
      %p329 = scmp.eq.s32.totalorder %s31, 1
      %p330 = por %p328, %p329
      %p332 = scmp.ne.s32.totalorder %s315, %s331
      %p333 = scmp.eq.s32.totalorder %s31, 0
      %p334 = por %p332, %p333
      %s335 = ssub.s32 %s25, %s32
      %p336 = scmp.eq.s32.totalorder %s335, 0
      %s338 = sadd.s32 %s337, 1
      %s339 = scalar_select %p336, %s337, %s338
      %p342 = pneg %p336
      %p343 = scmp.eq.s32.totalorder %s25, 1
      %p344 = por %p342, %p343
      %p345 = scmp.ne.s32.totalorder %s337, %s340
      %p346 = scmp.eq.s32.totalorder %s25, 0
      %p347 = por %p345, %p346
      %p348 = scmp.ne.s32.totalorder %s337, %s340
      %p349 = scmp.eq.s32.totalorder %s30, 1
      %p350 = por %p348, %p349
      %p351 = scmp.ne.s32.totalorder %s340, %s341
      %p352 = scmp.eq.s32.totalorder %s30, 0
      %p353 = por %p351, %p352
      %p354 = scmp.ne.s32.totalorder %s340, %s341
      %p355 = scmp.eq.s32.totalorder %s31, 1
      %p356 = por %p354, %p355
      %p358 = scmp.ne.s32.totalorder %s341, %s357
      %p359 = scmp.eq.s32.totalorder %s31, 0
      %p360 = por %p358, %p359
      %s361 = ssub.s32 %s25, %s32
      %p362 = scmp.eq.s32.totalorder %s361, 0
      %s364 = sadd.s32 %s363, 1
      %s365 = scalar_select %p362, %s363, %s364
      %p368 = pneg %p362
      %p369 = scmp.eq.s32.totalorder %s25, 1
      %p370 = por %p368, %p369
      %p371 = scmp.ne.s32.totalorder %s363, %s366
      %p372 = scmp.eq.s32.totalorder %s25, 0
      %p373 = por %p371, %p372
      %p374 = scmp.ne.s32.totalorder %s363, %s366
      %p375 = scmp.eq.s32.totalorder %s30, 1
      %p376 = por %p374, %p375
      %p377 = scmp.ne.s32.totalorder %s366, %s367
      %p378 = scmp.eq.s32.totalorder %s30, 0
      %p379 = por %p377, %p378
      %p380 = scmp.ne.s32.totalorder %s366, %s367
      %p381 = scmp.eq.s32.totalorder %s31, 1
      %p382 = por %p380, %p381
      %p384 = scmp.ne.s32.totalorder %s367, %s383
      %p385 = scmp.eq.s32.totalorder %s31, 0
      %p386 = por %p384, %p385
      %s388 = sadd.s32 %s387, 1
      %p391 = scmp.eq.s32.totalorder %s25, 1
      %p392 = scmp.ne.s32.totalorder %s387, %s389
      %p393 = scmp.eq.s32.totalorder %s25, 0
      %p394 = por %p392, %p393
      %p395 = scmp.ne.s32.totalorder %s387, %s389
      %p396 = scmp.eq.s32.totalorder %s30, 1
      %p397 = por %p395, %p396
      %p398 = scmp.ne.s32.totalorder %s389, %s390
      %p399 = scmp.eq.s32.totalorder %s30, 0
      %p400 = por %p398, %p399
      %p401 = scmp.ne.s32.totalorder %s389, %s390
      %p402 = scmp.eq.s32.totalorder %s31, 1
      %p403 = por %p401, %p402
      %p405 = scmp.ne.s32.totalorder %s390, %s404
      %p406 = scmp.eq.s32.totalorder %s31, 0
      %p407 = por %p405, %p406
      %s409 = sadd.s32 %s408, 1
      %p412 = scmp.eq.s32.totalorder %s25, 1
      %p413 = scmp.ne.s32.totalorder %s408, %s410
      %p414 = scmp.eq.s32.totalorder %s25, 0
      %p415 = por %p413, %p414
      %p416 = scmp.ne.s32.totalorder %s408, %s410
      %p417 = scmp.eq.s32.totalorder %s30, 1
      %p418 = por %p416, %p417
      %p419 = scmp.ne.s32.totalorder %s410, %s411
      %p420 = scmp.eq.s32.totalorder %s30, 0
      %p421 = por %p419, %p420
      %p422 = scmp.ne.s32.totalorder %s410, %s411
      %p423 = scmp.eq.s32.totalorder %s31, 1
      %p424 = por %p422, %p423
      %p426 = scmp.ne.s32.totalorder %s411, %s425
      %p427 = scmp.eq.s32.totalorder %s31, 0
      %p428 = por %p426, %p427
      %s430 = sadd.s32 %s429, 1
      %p433 = scmp.eq.s32.totalorder %s25, 1
      %p434 = scmp.ne.s32.totalorder %s429, %s431
      %p435 = scmp.eq.s32.totalorder %s25, 0
      %p436 = por %p434, %p435
      %p437 = scmp.ne.s32.totalorder %s429, %s431
      %p438 = scmp.eq.s32.totalorder %s30, 1
      %p439 = por %p437, %p438
      %p440 = scmp.ne.s32.totalorder %s431, %s432
      %p441 = scmp.eq.s32.totalorder %s30, 0
      %p442 = por %p440, %p441
      %p443 = scmp.ne.s32.totalorder %s431, %s432
      %p444 = scmp.eq.s32.totalorder %s31, 1
      %p445 = por %p443, %p444
      %p447 = scmp.ne.s32.totalorder %s432, %s446
      %p448 = scmp.eq.s32.totalorder %s31, 0
      %p449 = por %p447, %p448
      %s451 = sadd.s32 %s450, 1
      %p454 = scmp.eq.s32.totalorder %s25, 1
      %p455 = scmp.ne.s32.totalorder %s450, %s452
      %p456 = scmp.eq.s32.totalorder %s25, 0
      %p457 = por %p455, %p456
      %p458 = scmp.ne.s32.totalorder %s450, %s452
      %p459 = scmp.eq.s32.totalorder %s30, 1
      %p460 = por %p458, %p459
      %p461 = scmp.ne.s32.totalorder %s452, %s453
      %p462 = scmp.eq.s32.totalorder %s30, 0
      %p463 = por %p461, %p462
      %p464 = scmp.ne.s32.totalorder %s452, %s453
      %p465 = scmp.eq.s32.totalorder %s31, 1
      %p466 = por %p464, %p465
      %p468 = scmp.ne.s32.totalorder %s453, %s467
      %p469 = scmp.eq.s32.totalorder %s31, 0
      %p470 = por %p468, %p469
      %s472 = sadd.s32 %s471, 1
      %p475 = scmp.eq.s32.totalorder %s25, 1
      %p476 = scmp.ne.s32.totalorder %s471, %s473
      %p477 = scmp.eq.s32.totalorder %s25, 0
      %p478 = por %p476, %p477
      %p479 = scmp.ne.s32.totalorder %s471, %s473
      %p480 = scmp.eq.s32.totalorder %s30, 1
      %p481 = por %p479, %p480
      %p482 = scmp.ne.s32.totalorder %s473, %s474
      %p483 = scmp.eq.s32.totalorder %s30, 0
      %p484 = por %p482, %p483
      %p485 = scmp.ne.s32.totalorder %s473, %s474
      %p486 = scmp.eq.s32.totalorder %s31, 1
      %p487 = por %p485, %p486
      %p489 = scmp.ne.s32.totalorder %s474, %s488
      %p490 = scmp.eq.s32.totalorder %s31, 0
      %p491 = por %p489, %p490
      %p492 = scmp.le.s32.totalorder 1, %s25
      %p493 = scmp.lt.s32.totalorder %s25, 3
      %p494 = pnand %p492, %p493
      %p495 = pneg %p494
      // Predicated region
      $region9: #{transformer_forward.1} parent=5 // pred_check
        _
      $region10: #{transformer_forward.1} parent=5 // pred_check_branch
        %497 = sbr.rel (%p494) target = $region12
      $region11: #{transformer_forward.1} parent=5 // pred_region
        %s498 = ssub.s32 %s25, 1
        // Predicated region
        $region13: #{transformer_forward.1} parent=11 // pred_check
          %p499 = pneg %p46
        $region14: #{transformer_forward.1} parent=11 // pred_check_branch
          %501 = sbr.rel (%p499) target = $region16
        $region15: #{transformer_forward.1} parent=11 // pred_region
          _
        $region16: #{transformer_forward.1} parent=11 // pred_fallthru
          _
        // Predicated region
        $region17: #{transformer_forward.1} parent=11 // pred_check
          %p502 = pneg %p67
        $region18: #{transformer_forward.1} parent=11 // pred_check_branch
          %504 = sbr.rel (%p502) target = $region20
        $region19: #{transformer_forward.1} parent=11 // pred_region
          _
        $region20: #{transformer_forward.1} parent=11 // pred_fallthru
          _
        // Predicated region
        $region21: #{transformer_forward.1} parent=11 // pred_check
          %p505 = pneg %p400
        $region22: #{transformer_forward.1} parent=11 // pred_check_branch
          %507 = sbr.rel (%p505) target = $region24
        $region23: #{transformer_forward.1} parent=11 // pred_region
          _
        $region24: #{transformer_forward.1} parent=11 // pred_fallthru
          _
        // Predicated region
        $region25: #{transformer_forward.1} parent=11 // pred_check
          %p508 = pneg %p421
        $region26: #{transformer_forward.1} parent=11 // pred_check_branch
          %510 = sbr.rel (%p508) target = $region28
        $region27: #{transformer_forward.1} parent=11 // pred_region
          _
        $region28: #{transformer_forward.1} parent=11 // pred_fallthru
          _
        // Predicated region
        $region29: #{transformer_forward.1} parent=11 // pred_check
          %p511 = pneg %p442
        $region30: #{transformer_forward.1} parent=11 // pred_check_branch
          %513 = sbr.rel (%p511) target = $region32
        $region31: #{transformer_forward.1} parent=11 // pred_region
          _
        $region32: #{transformer_forward.1} parent=11 // pred_fallthru
          _
        // Predicated region
        $region33: #{transformer_forward.1} parent=11 // pred_check
          %p514 = pneg %p463
        $region34: #{transformer_forward.1} parent=11 // pred_check_branch
          %516 = sbr.rel (%p514) target = $region36
        $region35: #{transformer_forward.1} parent=11 // pred_region
          _
        $region36: #{transformer_forward.1} parent=11 // pred_fallthru
          _
      $region12: #{transformer_forward.1} parent=5 // pred_fallthru
        _
      %p517 = scmp.lt.s32.totalorder %s25, 2
      // Predicated region
      $region37: #{transformer_forward.1} parent=5 // pred_check
        %p518 = pneg %p517
      $region38: #{transformer_forward.1} parent=5 // pred_check_branch
        %520 = sbr.rel (%p518) target = $region40
      $region39: #{transformer_forward.1} parent=5 // pred_region
        // Predicated region
        $region41: #{transformer_forward.1} parent=39 // pred_check
          %p521 = pneg %p87
        $region42: #{transformer_forward.1} parent=39 // pred_check_branch
          %523 = sbr.rel (%p521) target = $region44
        $region43: #{transformer_forward.1} parent=39 // pred_region
          %p524 = scmp.lt.s32.totalorder %s25, 1
          %s525 = scalar_select %p524, %s25, 1
          %s526 = smul.addr %s525, 4
          %s527 = smul.addr %s526, 4
          %s528 = scalar_lea.vmem %s2, %s527
        $region44: #{transformer_forward.1} parent=39 // pred_fallthru
          _
        // Predicated region
        $region45: #{transformer_forward.1} parent=39 // pred_check
          %p529 = pneg %p113
        $region46: #{transformer_forward.1} parent=39 // pred_check_branch
          %531 = sbr.rel (%p529) target = $region48
        $region47: #{transformer_forward.1} parent=39 // pred_region
          %p532 = scmp.lt.s32.totalorder %s25, 1
          %s533 = scalar_select %p532, %s25, 1
          %s534 = scalar_lea.vmem %s3, %s533
        $region48: #{transformer_forward.1} parent=39 // pred_fallthru
          _
        // Predicated region
        $region49: #{transformer_forward.1} parent=39 // pred_check
          %p535 = pneg %p139
        $region50: #{transformer_forward.1} parent=39 // pred_check_branch
          %537 = sbr.rel (%p535) target = $region52
        $region51: #{transformer_forward.1} parent=39 // pred_region
          %p538 = scmp.lt.s32.totalorder %s25, 1
          %s539 = scalar_select %p538, %s25, 1
          %s540 = smul.addr %s539, 4
          %s541 = smul.addr %s540, 4
          %s542 = scalar_lea.vmem %s4, %s541
        $region52: #{transformer_forward.1} parent=39 // pred_fallthru
          _
        // Predicated region
        $region53: #{transformer_forward.1} parent=39 // pred_check
          %p543 = pneg %p165
        $region54: #{transformer_forward.1} parent=39 // pred_check_branch
          %545 = sbr.rel (%p543) target = $region56
        $region55: #{transformer_forward.1} parent=39 // pred_region
          %p546 = scmp.lt.s32.totalorder %s25, 1
          %s547 = scalar_select %p546, %s25, 1
          %s548 = scalar_lea.vmem %s5, %s547
        $region56: #{transformer_forward.1} parent=39 // pred_fallthru
          _
        // Predicated region
        $region57: #{transformer_forward.1} parent=39 // pred_check
          %p549 = pneg %p191
        $region58: #{transformer_forward.1} parent=39 // pred_check_branch
          %551 = sbr.rel (%p549) target = $region60
        $region59: #{transformer_forward.1} parent=39 // pred_region
          %p552 = scmp.lt.s32.totalorder %s25, 1
          %s553 = scalar_select %p552, %s25, 1
          %s554 = scalar_lea.vmem %s6, %s553
        $region60: #{transformer_forward.1} parent=39 // pred_fallthru
          _
        // Predicated region
        $region61: #{transformer_forward.1} parent=39 // pred_check
          %p555 = pneg %p217
        $region62: #{transformer_forward.1} parent=39 // pred_check_branch
          %557 = sbr.rel (%p555) target = $region64
        $region63: #{transformer_forward.1} parent=39 // pred_region
          %p558 = scmp.lt.s32.totalorder %s25, 1
          %s559 = scalar_select %p558, %s25, 1
          %s560 = scalar_lea.vmem %s7, %s559
        $region64: #{transformer_forward.1} parent=39 // pred_fallthru
          _
        // Predicated region
        $region65: #{transformer_forward.1} parent=39 // pred_check
          %p561 = pneg %p243
        $region66: #{transformer_forward.1} parent=39 // pred_check_branch
          %563 = sbr.rel (%p561) target = $region68
        $region67: #{transformer_forward.1} parent=39 // pred_region
          %p564 = scmp.lt.s32.totalorder %s25, 1
          %s565 = scalar_select %p564, %s25, 1
          %s566 = smul.addr %s565, 64
          %s567 = smul.addr %s566, 4
          %s568 = scalar_lea.vmem %s8, %s567
        $region68: #{transformer_forward.1} parent=39 // pred_fallthru
          _
        // Predicated region
        $region69: #{transformer_forward.1} parent=39 // pred_check
          %p569 = pneg %p269
        $region70: #{transformer_forward.1} parent=39 // pred_check_branch
          %571 = sbr.rel (%p569) target = $region72
        $region71: #{transformer_forward.1} parent=39 // pred_region
          %p572 = scmp.lt.s32.totalorder %s25, 1
          %s573 = scalar_select %p572, %s25, 1
          %s574 = smul.addr %s573, 16
          %s575 = scalar_lea.vmem %s9, %s574
        $region72: #{transformer_forward.1} parent=39 // pred_fallthru
          _
        // Predicated region
        $region73: #{transformer_forward.1} parent=39 // pred_check
          %p576 = pneg %p295
        $region74: #{transformer_forward.1} parent=39 // pred_check_branch
          %578 = sbr.rel (%p576) target = $region76
        $region75: #{transformer_forward.1} parent=39 // pred_region
          %p579 = scmp.lt.s32.totalorder %s25, 1
          %s580 = scalar_select %p579, %s25, 1
          %s581 = smul.addr %s580, 256
          %s582 = smul.addr %s581, 4
          %s583 = scalar_lea.vmem %s10, %s582
        $region76: #{transformer_forward.1} parent=39 // pred_fallthru
          _
        // Predicated region
        $region77: #{transformer_forward.1} parent=39 // pred_check
          %p584 = pneg %p321
        $region78: #{transformer_forward.1} parent=39 // pred_check_branch
          %586 = sbr.rel (%p584) target = $region80
        $region79: #{transformer_forward.1} parent=39 // pred_region
          %p587 = scmp.lt.s32.totalorder %s25, 1
          %s588 = scalar_select %p587, %s25, 1
          %s589 = scalar_lea.vmem %s11, %s588
        $region80: #{transformer_forward.1} parent=39 // pred_fallthru
          _
        // Predicated region
        $region81: #{transformer_forward.1} parent=39 // pred_check
          %p590 = pneg %p347
        $region82: #{transformer_forward.1} parent=39 // pred_check_branch
          %592 = sbr.rel (%p590) target = $region84
        $region83: #{transformer_forward.1} parent=39 // pred_region
          %p593 = scmp.lt.s32.totalorder %s25, 1
          %s594 = scalar_select %p593, %s25, 1
          %s595 = scalar_lea.vmem %s12, %s594
        $region84: #{transformer_forward.1} parent=39 // pred_fallthru
          _
        // Predicated region
        $region85: #{transformer_forward.1} parent=39 // pred_check
          %p596 = pneg %p373
        $region86: #{transformer_forward.1} parent=39 // pred_check_branch
          %598 = sbr.rel (%p596) target = $region88
        $region87: #{transformer_forward.1} parent=39 // pred_region
          %p599 = scmp.lt.s32.totalorder %s25, 1
          %s600 = scalar_select %p599, %s25, 1
          %s601 = scalar_lea.vmem %s13, %s600
        $region88: #{transformer_forward.1} parent=39 // pred_fallthru
          _
      $region40: #{transformer_forward.1} parent=5 // pred_fallthru
        _
      %p602 = scmp.le.s32.totalorder 1, %s25
      %p603 = scmp.lt.s32.totalorder %s25, 3
      %p604 = pnand %p602, %p603
      %p605 = pneg %p604
      // Predicated region
      $region89: #{transformer_forward.1} parent=5 // pred_check
        _
      $region90: #{transformer_forward.1} parent=5 // pred_check_branch
        %607 = sbr.rel (%p604) target = $region92
      $region91: #{transformer_forward.1} parent=5 // pred_region
        %s608 = ssub.s32 %s25, 1
        %p609 = pneg %p46
        %p610 = pneg %p43
        %p611 = pneg %p67
        %p612 = pneg %p64
        %p613 = scmp.lt.s32.totalorder %s30, 1
        %s614 = scalar_select %p613, %s30, 1
        %s615 = smul.addr %s614, 4
        %s616 = smul.addr %s615, 4
        %s617 = scalar_lea.vmem %s2, %s616
        %p618 = pneg %p93
        %p619 = pneg %p90
        %p620 = scmp.lt.s32.totalorder %s30, 1
        %s621 = scalar_select %p620, %s30, 1
        %s622 = scalar_lea.vmem %s3, %s621
        %p623 = pneg %p119
        %p624 = pneg %p116
        %p625 = scmp.lt.s32.totalorder %s30, 1
        %s626 = scalar_select %p625, %s30, 1
        %s627 = smul.addr %s626, 4
        %s628 = smul.addr %s627, 4
        %s629 = scalar_lea.vmem %s4, %s628
        %p630 = pneg %p145
        %p631 = pneg %p142
        %p632 = scmp.lt.s32.totalorder %s30, 1
        %s633 = scalar_select %p632, %s30, 1
        %s634 = scalar_lea.vmem %s5, %s633
        %p635 = pneg %p171
        %p636 = pneg %p168
        %p637 = scmp.lt.s32.totalorder %s30, 1
        %s638 = scalar_select %p637, %s30, 1
        %s639 = scalar_lea.vmem %s6, %s638
        %p640 = pneg %p197
        %p641 = pneg %p194
        %p642 = scmp.lt.s32.totalorder %s30, 1
        %s643 = scalar_select %p642, %s30, 1
        %s644 = scalar_lea.vmem %s7, %s643
        %p645 = pneg %p223
        %p646 = pneg %p220
        %p647 = scmp.lt.s32.totalorder %s30, 1
        %s648 = scalar_select %p647, %s30, 1
        %s649 = smul.addr %s648, 64
        %s650 = smul.addr %s649, 4
        %s651 = scalar_lea.vmem %s8, %s650
        %p652 = pneg %p249
        %p653 = pneg %p246
        %p654 = scmp.lt.s32.totalorder %s30, 1
        %s655 = scalar_select %p654, %s30, 1
        %s656 = smul.addr %s655, 16
        %s657 = scalar_lea.vmem %s9, %s656
        %p658 = pneg %p275
        %p659 = pneg %p272
        %p660 = scmp.lt.s32.totalorder %s30, 1
        %s661 = scalar_select %p660, %s30, 1
        %s662 = smul.addr %s661, 256
        %s663 = smul.addr %s662, 4
        %s664 = scalar_lea.vmem %s10, %s663
        %p665 = pneg %p301
        %p666 = pneg %p298
        %p667 = scmp.lt.s32.totalorder %s30, 1
        %s668 = scalar_select %p667, %s30, 1
        %s669 = scalar_lea.vmem %s11, %s668
        %p670 = pneg %p327
        %p671 = pneg %p324
        %p672 = scmp.lt.s32.totalorder %s30, 1
        %s673 = scalar_select %p672, %s30, 1
        %s674 = scalar_lea.vmem %s12, %s673
        %p675 = pneg %p353
        %p676 = pneg %p350
        %p677 = scmp.lt.s32.totalorder %s30, 1
        %s678 = scalar_select %p677, %s30, 1
        %s679 = scalar_lea.vmem %s13, %s678
        %p680 = pneg %p379
        %p681 = pneg %p376
        %p682 = pneg %p400
        %p683 = pneg %p397
        %p684 = pneg %p421
        %p685 = pneg %p418
        %p686 = pneg %p442
        %p687 = pneg %p439
        %p688 = pneg %p463
        %p689 = pneg %p460
        %p690 = pneg %p484
        %p691 = pneg %p481
        %p692 = scmp.lt.s32.totalorder %s30, 1
        %s693 = scalar_select %p692, %s30, 1
        %s694 = smul.addr %s693, 4
        %s695 = smul.addr %s694, 4
        %s696 = scalar_lea.vmem %s2, %s695
        %p697 = scmp.lt.s32.totalorder %s30, 1
        %s698 = scalar_select %p697, %s30, 1
        %s699 = scalar_lea.vmem %s3, %s698
        %p700 = scmp.lt.s32.totalorder %s30, 1
        %s701 = scalar_select %p700, %s30, 1
        %s702 = smul.addr %s701, 4
        %s703 = smul.addr %s702, 4
        %s704 = scalar_lea.vmem %s4, %s703
        %p705 = scmp.lt.s32.totalorder %s30, 1
        %s706 = scalar_select %p705, %s30, 1
        %s707 = scalar_lea.vmem %s5, %s706
        %p708 = scmp.lt.s32.totalorder %s30, 1
        %s709 = scalar_select %p708, %s30, 1
        %s710 = scalar_lea.vmem %s6, %s709
        %p711 = scmp.lt.s32.totalorder %s30, 1
        %s712 = scalar_select %p711, %s30, 1
        %s713 = scalar_lea.vmem %s7, %s712
        %p714 = scmp.lt.s32.totalorder %s30, 1
        %s715 = scalar_select %p714, %s30, 1
        %s716 = smul.addr %s715, 64
        %s717 = smul.addr %s716, 4
        %s718 = scalar_lea.vmem %s8, %s717
        %p719 = scmp.lt.s32.totalorder %s30, 1
        %s720 = scalar_select %p719, %s30, 1
        %s721 = smul.addr %s720, 16
        %s722 = scalar_lea.vmem %s9, %s721
        %p723 = scmp.lt.s32.totalorder %s30, 1
        %s724 = scalar_select %p723, %s30, 1
        %s725 = smul.addr %s724, 256
        %s726 = smul.addr %s725, 4
        %s727 = scalar_lea.vmem %s10, %s726
        %p728 = scmp.lt.s32.totalorder %s30, 1
        %s729 = scalar_select %p728, %s30, 1
        %s730 = scalar_lea.vmem %s11, %s729
        %p731 = scmp.lt.s32.totalorder %s30, 1
        %s732 = scalar_select %p731, %s30, 1
        %s733 = scalar_lea.vmem %s12, %s732
        %p734 = scmp.lt.s32.totalorder %s30, 1
        %s735 = scalar_select %p734, %s30, 1
        %s736 = scalar_lea.vmem %s13, %s735
        %p738 = scmp.eq.s32.totalorder %s30, 0
        // Predicated region
        $region93: #{transformer_forward.1} parent=91 // pred_check
          %p739 = pneg %p738
        $region94: #{transformer_forward.1} parent=91 // pred_check_branch
          %741 = sbr.rel (%p739) target = $region96
        $region95: #{transformer_forward.1} parent=91 // pred_region
          %v742 = vld [vmem:[%s0] sm:$0xff]
          %v743 = vld [vmem:[%s0 + $0x8] sm:$0xff]
          %vm744 = vcmask 261120
          %745 = vst.msk [vmem:[#allocation2] sm:$0xff] %vm744, %v742
          %746 = vst.msk [vmem:[#allocation2 + $0x8] sm:$0xff] %vm744, %v743
        $region96: #{transformer_forward.1} parent=91 // pred_fallthru
          _
        %v747 = vld [vmem:[#allocation2] sm:$0xff]
        %v748 = vld [vmem:[#allocation2 + $0x8] sm:$0xff]
        %v749 = vpack.c.bf16 %v748, %v747
        %v750 = vld [vmem:[%s696] sm:$0xf]
        %v751 = vld [vmem:[%s696 + $0x4] sm:$0xf]
        %v752 = vld [vmem:[%s696 + $0x8] sm:$0xf]
        %v753 = vld [vmem:[%s696 + $0xc] sm:$0xf]
        %v754 = vld [vmem:[%s699] sm:$0x1]
        %v756 = vperm.slane %v754, 0
        %v762 = vunpack.c.l.b16 %v750
        %v763 = vunpack.c.l.b16 %v751
        %v764 = vunpack.c.l.b16 %v752
        %v765 = vunpack.c.l.b16 %v753
        %v766 = vpack.c.b16 %v763, %v762
        %v767 = vpack.c.b16 %v765, %v764
        %vm770 = vcmask 261120
        %v772 = vsel %vm770, %v749, 0
        %774 = vmatpush.bf16.msra.mxu0 0
        %775 = vmatpush.bf16.msra.mxu0 0
        %776 = vmatpush.bf16.msra.mxu0 0
        %777 = vmatpush.bf16.msra.mxu0 0
        %778 = vmatpush.bf16.msra.mxu0 0
        %779 = vmatpush.bf16.msra.mxu0 0
        %780 = vmatpush.bf16.msra.mxu0 %v767
        %781 = vmatpush.bf16.msra.mxu0 %v766
        %782 = vmatmul.bf16.gmra.mxu0 %v772
        %v783 = vpop.f32.mrf.mxu0
        %v784 = vadd.f32 %v756, %v783
        %v785 = vpop.f32.mrf.mxu0
        %v786 = vadd.f32 %v756, %v785
        %787 = vdwg.mxu0
        %790 = vrot.lane.b32.xlu0 %v784, 120
        %v791 = vpop.permute.xlu0 %790
        %792 = vrot.lane.b32.xlu0 %v786, 120
        %v793 = vpop.permute.xlu0 %792
        %796 = vrot.lane.b32.xlu0 %v784, 112
        %v797 = vpop.permute.xlu0 %796
        %798 = vrot.lane.b32.xlu0 %v786, 112
        %v799 = vpop.permute.xlu0 %798
        %802 = vrot.lane.b32.xlu0 %v784, 104
        %v803 = vpop.permute.xlu0 %802
        %804 = vrot.lane.b32.xlu0 %v786, 104
        %v805 = vpop.permute.xlu0 %804
        %v808 = vpack.c.bf16 %v784, %v784
        %v809 = vpack.c.bf16 %v786, %v786
        %v810 = vpack.c.bf16 %v791, %v791
        %v811 = vpack.c.bf16 %v793, %v793
        %v812 = vpack.c.bf16 %v797, %v797
        %v813 = vpack.c.bf16 %v799, %v799
        %v814 = vpack.c.bf16 %v803, %v803
        %v815 = vpack.c.bf16 %v805, %v805
        %v816 = vld [vmem:[%s1] sm:$0xff]
        %v817 = vld [vmem:[%s1 + $0x8] sm:$0xff]
        %v820 = vunpack.c.l.b16 %v808
        %v821 = vunpack.c.l.b16 %v809
        %v822 = vpack.c.b16 %v821, %v820
        %823 = vrot.lane.b32.xlu0 %v822, 96
        %v824 = vpop.permute.xlu0 %823
        %vm825 = vcmask 64512
        %v827 = vsel %vm825, %v822, 0
        %v830 = vsel %vm825, %v824, 0
        %832 = vmatpush.bf16.xpose.msra.mxu0 0
        %833 = vmatpush.bf16.xpose.msra.mxu0 0
        %834 = vmatpush.bf16.xpose.msra.mxu0 0
        %835 = vmatpush.bf16.xpose.msra.mxu0 0
        %836 = vmatpush.bf16.xpose.msra.mxu0 0
        %837 = vmatpush.bf16.xpose.msra.mxu0 0
        %838 = vmatpush.bf16.xpose.msra.mxu0 0
        %839 = vmatpush.bf16.xpose.msra.mxu0 %v830
        %840 = vmatmul.bf16.gmra.mxu0 %v827
        %v841 = vpop.f32.mrf.mxu0
        %v842 = vadd.f32 %v816, %v841
        %v843 = vpop.f32.mrf.mxu0
        %v844 = vadd.f32 %v817, %v843
        %845 = vdwg.mxu0
        %v848 = vunpack.c.l.b16 %v810
        %v849 = vunpack.c.l.b16 %v811
        %v850 = vpack.c.b16 %v849, %v848
        %851 = vrot.lane.b32.xlu0 %v850, 96
        %v852 = vpop.permute.xlu0 %851
        %v854 = vsel %vm825, %v850, 0
        %v857 = vsel %vm825, %v852, 0
        %859 = vmatpush.bf16.xpose.msra.mxu0 0
        %860 = vmatpush.bf16.xpose.msra.mxu0 0
        %861 = vmatpush.bf16.xpose.msra.mxu0 0
        %862 = vmatpush.bf16.xpose.msra.mxu0 0
        %863 = vmatpush.bf16.xpose.msra.mxu0 0
        %864 = vmatpush.bf16.xpose.msra.mxu0 0
        %865 = vmatpush.bf16.xpose.msra.mxu0 0
        %866 = vmatpush.bf16.xpose.msra.mxu0 %v857
        %867 = vmatmul.bf16.gmra.mxu0 %v854
        %v868 = vpop.f32.mrf.mxu0
        %v869 = vadd.f32 %v816, %v868
        %v870 = vpop.f32.mrf.mxu0
        %v871 = vadd.f32 %v817, %v870
        %872 = vdwg.mxu0
        %v875 = vunpack.c.l.b16 %v812
        %v876 = vunpack.c.l.b16 %v813
        %v877 = vpack.c.b16 %v876, %v875
        %878 = vrot.lane.b32.xlu0 %v877, 96
        %v879 = vpop.permute.xlu0 %878
        %v881 = vsel %vm825, %v877, 0
        %v884 = vsel %vm825, %v879, 0
        %886 = vmatpush.bf16.xpose.msra.mxu0 0
        %887 = vmatpush.bf16.xpose.msra.mxu0 0
        %888 = vmatpush.bf16.xpose.msra.mxu0 0
        %889 = vmatpush.bf16.xpose.msra.mxu0 0
        %890 = vmatpush.bf16.xpose.msra.mxu0 0
        %891 = vmatpush.bf16.xpose.msra.mxu0 0
        %892 = vmatpush.bf16.xpose.msra.mxu0 0
        %893 = vmatpush.bf16.xpose.msra.mxu0 %v884
        %894 = vmatmul.bf16.gmra.mxu0 %v881
        %v895 = vpop.f32.mrf.mxu0
        %v896 = vadd.f32 %v816, %v895
        %v897 = vpop.f32.mrf.mxu0
        %v898 = vadd.f32 %v817, %v897
        %899 = vdwg.mxu0
        %v902 = vunpack.c.l.b16 %v814
        %v903 = vunpack.c.l.b16 %v815
        %v904 = vpack.c.b16 %v903, %v902
        %905 = vrot.lane.b32.xlu0 %v904, 96
        %v906 = vpop.permute.xlu0 %905
        %v908 = vsel %vm825, %v904, 0
        %v911 = vsel %vm825, %v906, 0
        %913 = vmatpush.bf16.xpose.msra.mxu0 0
        %914 = vmatpush.bf16.xpose.msra.mxu0 0
        %915 = vmatpush.bf16.xpose.msra.mxu0 0
        %916 = vmatpush.bf16.xpose.msra.mxu0 0
        %917 = vmatpush.bf16.xpose.msra.mxu0 0
        %918 = vmatpush.bf16.xpose.msra.mxu0 0
        %919 = vmatpush.bf16.xpose.msra.mxu0 0
        %920 = vmatpush.bf16.xpose.msra.mxu0 %v911
        %921 = vmatmul.bf16.gmra.mxu0 %v908
        %v922 = vpop.f32.mrf.mxu0
        %v923 = vadd.f32 %v816, %v922
        %v924 = vpop.f32.mrf.mxu0
        %v925 = vadd.f32 %v817, %v924
        %926 = vdwg.mxu0
        %vm927 = vcmask 130048
        %v928 = vsel %vm927, %v842, -inf
        %929 = vmax.xlane.f32.xlu0 %v928
        %v930 = vpop.xlane.xlu0 %929
        %v931 = vsel %vm927, %v844, -inf
        %932 = vmax.xlane.f32.xlu0 %v931
        %v933 = vpop.xlane.xlu0 %932
        %v934 = vsel %vm927, %v869, -inf
        %935 = vmax.xlane.f32.xlu0 %v934
        %v936 = vpop.xlane.xlu0 %935
        %v937 = vsel %vm927, %v871, -inf
        %938 = vmax.xlane.f32.xlu0 %v937
        %v939 = vpop.xlane.xlu0 %938
        %v940 = vsel %vm927, %v896, -inf
        %941 = vmax.xlane.f32.xlu0 %v940
        %v942 = vpop.xlane.xlu0 %941
        %v943 = vsel %vm927, %v898, -inf
        %944 = vmax.xlane.f32.xlu0 %v943
        %v945 = vpop.xlane.xlu0 %944
        %v946 = vsel %vm927, %v923, -inf
        %947 = vmax.xlane.f32.xlu0 %v946
        %v948 = vpop.xlane.xlu0 %947
        %v949 = vsel %vm927, %v925, -inf
        %950 = vmax.xlane.f32.xlu0 %v949
        %v951 = vpop.xlane.xlu0 %950
        %v952 = vsub.f32 %v842, %v930
        %v953 = vsub.f32 %v844, %v933
        %v954 = vsub.f32 %v869, %v936
        %v955 = vsub.f32 %v871, %v939
        %v956 = vsub.f32 %v896, %v942
        %v957 = vsub.f32 %v898, %v945
        %v958 = vsub.f32 %v923, %v948
        %v959 = vsub.f32 %v925, %v951
        %v960 = vmul.f32 %v952, 1.442695
        %v961 = vpow.pop %v960
        %v962 = vmul.f32 %v953, 1.442695
        %v963 = vpow.pop %v962
        %v964 = vmul.f32 %v954, 1.442695
        %v965 = vpow.pop %v964
        %v966 = vmul.f32 %v955, 1.442695
        %v967 = vpow.pop %v966
        %v968 = vmul.f32 %v956, 1.442695
        %v969 = vpow.pop %v968
        %v970 = vmul.f32 %v957, 1.442695
        %v971 = vpow.pop %v970
        %v972 = vmul.f32 %v958, 1.442695
        %v973 = vpow.pop %v972
        %v974 = vmul.f32 %v959, 1.442695
        %v975 = vpow.pop %v974
        %v976 = vsel %vm927, %v961, 0.0
        %977 = vadd.xlane.f32.xlu0 %v976
        %v978 = vpop.xlane.xlu0 %977
        %v979 = vsel %vm927, %v963, 0.0
        %980 = vadd.xlane.f32.xlu0 %v979
        %v981 = vpop.xlane.xlu0 %980
        %v982 = vsel %vm927, %v965, 0.0
        %983 = vadd.xlane.f32.xlu0 %v982
        %v984 = vpop.xlane.xlu0 %983
        %v985 = vsel %vm927, %v967, 0.0
        %986 = vadd.xlane.f32.xlu0 %v985
        %v987 = vpop.xlane.xlu0 %986
        %v988 = vsel %vm927, %v969, 0.0
        %989 = vadd.xlane.f32.xlu0 %v988
        %v990 = vpop.xlane.xlu0 %989
        %v991 = vsel %vm927, %v971, 0.0
        %992 = vadd.xlane.f32.xlu0 %v991
        %v993 = vpop.xlane.xlu0 %992
        %v994 = vsel %vm927, %v973, 0.0
        %995 = vadd.xlane.f32.xlu0 %v994
        %v996 = vpop.xlane.xlu0 %995
        %v997 = vsel %vm927, %v975, 0.0
        %998 = vadd.xlane.f32.xlu0 %v997
        %v999 = vpop.xlane.xlu0 %998
        %v1000 = vrcp.pop %v978
        %v1001 = vrcp.pop %v981
        %v1002 = vrcp.pop %v984
        %v1003 = vrcp.pop %v987
        %v1004 = vrcp.pop %v990
        %v1005 = vrcp.pop %v993
        %v1006 = vrcp.pop %v996
        %v1007 = vrcp.pop %v999
        %v1008 = vmul.f32 %v961, %v1000
        %v1009 = vmul.f32 %v963, %v1001
        %v1010 = vmul.f32 %v965, %v1002
        %v1011 = vmul.f32 %v967, %v1003
        %v1012 = vmul.f32 %v969, %v1004
        %v1013 = vmul.f32 %v971, %v1005
        %v1014 = vmul.f32 %v973, %v1006
        %v1015 = vmul.f32 %v975, %v1007
        %v1016 = vpack.c.bf16 %v1008, %v1008
        %v1017 = vpack.c.bf16 %v1009, %v1009
        %v1018 = vpack.c.bf16 %v1010, %v1010
        %v1019 = vpack.c.bf16 %v1011, %v1011
        %v1020 = vpack.c.bf16 %v1012, %v1012
        %v1021 = vpack.c.bf16 %v1013, %v1013
        %v1022 = vpack.c.bf16 %v1014, %v1014
        %v1023 = vpack.c.bf16 %v1015, %v1015
        %v1026 = vunpack.c.l.b16 %v1016
        %v1027 = vunpack.c.l.b16 %v1017
        %v1028 = vpack.c.b16 %v1027, %v1026
        %1029 = vrot.lane.b32.xlu0 %v822, 64
        %v1030 = vpop.permute.xlu0 %1029
        %v1033 = vsel %vm927, %v1028, 0
        %1035 = vmatpush.bf16.msra.mxu0 0
        %1036 = vmatpush.bf16.msra.mxu0 0
        %1037 = vmatpush.bf16.msra.mxu0 0
        %1038 = vmatpush.bf16.msra.mxu0 0
        %1039 = vmatpush.bf16.msra.mxu0 0
        %1040 = vmatpush.bf16.msra.mxu0 0
        %1041 = vmatpush.bf16.msra.mxu0 0
        %1042 = vmatpush.bf16.msra.mxu0 %v1030
        %1043 = vmatmul.bf16.gmra.mxu0 %v1033
        %v1044 = vpop.f32.mrf.mxu0
        %v1045 = vadd.f32 0.0, %v1044
        %v1046 = vpop.f32.mrf.mxu0
        %v1047 = vadd.f32 0.0, %v1046
        %1048 = vdwg.mxu0
        %v1051 = vunpack.c.l.b16 %v1018
        %v1052 = vunpack.c.l.b16 %v1019
        %v1053 = vpack.c.b16 %v1052, %v1051
        %1054 = vrot.lane.b32.xlu0 %v850, 64
        %v1055 = vpop.permute.xlu0 %1054
        %v1058 = vsel %vm927, %v1053, 0
        %1060 = vmatpush.bf16.msra.mxu0 0
        %1061 = vmatpush.bf16.msra.mxu0 0
        %1062 = vmatpush.bf16.msra.mxu0 0
        %1063 = vmatpush.bf16.msra.mxu0 0
        %1064 = vmatpush.bf16.msra.mxu0 0
        %1065 = vmatpush.bf16.msra.mxu0 0
        %1066 = vmatpush.bf16.msra.mxu0 0
        %1067 = vmatpush.bf16.msra.mxu0 %v1055
        %1068 = vmatmul.bf16.gmra.mxu0 %v1058
        %v1069 = vpop.f32.mrf.mxu0
        %v1070 = vadd.f32 0.0, %v1069
        %v1071 = vpop.f32.mrf.mxu0
        %v1072 = vadd.f32 0.0, %v1071
        %1073 = vdwg.mxu0
        %v1076 = vunpack.c.l.b16 %v1020
        %v1077 = vunpack.c.l.b16 %v1021
        %v1078 = vpack.c.b16 %v1077, %v1076
        %1079 = vrot.lane.b32.xlu0 %v877, 64
        %v1080 = vpop.permute.xlu0 %1079
        %v1083 = vsel %vm927, %v1078, 0
        %1085 = vmatpush.bf16.msra.mxu0 0
        %1086 = vmatpush.bf16.msra.mxu0 0
        %1087 = vmatpush.bf16.msra.mxu0 0
        %1088 = vmatpush.bf16.msra.mxu0 0
        %1089 = vmatpush.bf16.msra.mxu0 0
        %1090 = vmatpush.bf16.msra.mxu0 0
        %1091 = vmatpush.bf16.msra.mxu0 0
        %1092 = vmatpush.bf16.msra.mxu0 %v1080
        %1093 = vmatmul.bf16.gmra.mxu0 %v1083
        %v1094 = vpop.f32.mrf.mxu0
        %v1095 = vadd.f32 0.0, %v1094
        %v1096 = vpop.f32.mrf.mxu0
        %v1097 = vadd.f32 0.0, %v1096
        %1098 = vdwg.mxu0
        %v1101 = vunpack.c.l.b16 %v1022
        %v1102 = vunpack.c.l.b16 %v1023
        %v1103 = vpack.c.b16 %v1102, %v1101
        %1104 = vrot.lane.b32.xlu0 %v904, 64
        %v1105 = vpop.permute.xlu0 %1104
        %v1108 = vsel %vm927, %v1103, 0
        %1110 = vmatpush.bf16.msra.mxu0 0
        %1111 = vmatpush.bf16.msra.mxu0 0
        %1112 = vmatpush.bf16.msra.mxu0 0
        %1113 = vmatpush.bf16.msra.mxu0 0
        %1114 = vmatpush.bf16.msra.mxu0 0
        %1115 = vmatpush.bf16.msra.mxu0 0
        %1116 = vmatpush.bf16.msra.mxu0 0
        %1117 = vmatpush.bf16.msra.mxu0 %v1105
        %1118 = vmatmul.bf16.gmra.mxu0 %v1108
        %v1119 = vpop.f32.mrf.mxu0
        %v1120 = vadd.f32 0.0, %v1119
        %v1121 = vpop.f32.mrf.mxu0
        %v1122 = vadd.f32 0.0, %v1121
        %1123 = vdwg.mxu0
        %1126 = vrot.lane.b32.xlu0 %v1070, 8
        %v1127 = vpop.permute.xlu0 %1126
        %1128 = vrot.lane.b32.xlu0 %v1072, 8
        %v1129 = vpop.permute.xlu0 %1128
        %1134 = vrot.lane.b32.xlu0 %v1095, 16
        %v1135 = vpop.permute.xlu0 %1134
        %1136 = vrot.lane.b32.xlu0 %v1097, 16
        %v1137 = vpop.permute.xlu0 %1136
        %1142 = vrot.lane.b32.xlu0 %v1120, 24
        %v1143 = vpop.permute.xlu0 %1142
        %1144 = vrot.lane.b32.xlu0 %v1122, 24
        %v1145 = vpop.permute.xlu0 %1144
        %v1148 = vsel %vm825, %v1045, %v1127
        %v1149 = vsel %vm825, %v1047, %v1129
        %v1150 = vsel %vm927, %v1148, %v1135
        %v1151 = vsel %vm927, %v1149, %v1137
        %vm1152 = vcmask 195584
        %v1153 = vsel %vm1152, %v1150, %v1143
        %v1154 = vsel %vm1152, %v1151, %v1145
        %v1155 = vpack.c.bf16 %v1154, %v1153
        %v1156 = vld [vmem:[%s704] sm:$0xf]
        %v1157 = vld [vmem:[%s704 + $0x4] sm:$0xf]
        %v1158 = vld [vmem:[%s704 + $0x8] sm:$0xf]
        %v1159 = vld [vmem:[%s704 + $0xc] sm:$0xf]
        %v1160 = vld [vmem:[%s707] sm:$0x1]
        %v1162 = vperm.slane %v1160, 0
        %v1168 = vunpack.c.l.b16 %v1156
        %v1169 = vunpack.c.l.b16 %v1157
        %v1170 = vunpack.c.l.b16 %v1158
        %v1171 = vunpack.c.l.b16 %v1159
        %v1172 = vpack.c.b16 %v1169, %v1168
        %v1173 = vpack.c.b16 %v1171, %v1170
        %v1177 = vsel %vm770, %v1155, 0
        %1179 = vmatpush.bf16.msra.mxu0 0
        %1180 = vmatpush.bf16.msra.mxu0 0
        %1181 = vmatpush.bf16.msra.mxu0 0
        %1182 = vmatpush.bf16.msra.mxu0 0
        %1183 = vmatpush.bf16.msra.mxu0 0
        %1184 = vmatpush.bf16.msra.mxu0 0
        %1185 = vmatpush.bf16.msra.mxu0 %v1173
        %1186 = vmatpush.bf16.msra.mxu0 %v1172
        %1187 = vmatmul.bf16.gmra.mxu0 %v1177
        %v1188 = vpop.f32.mrf.mxu0
        %v1189 = vadd.f32 %v1162, %v1188
        %v1190 = vpop.f32.mrf.mxu0
        %v1191 = vadd.f32 %v1162, %v1190
        %1192 = vdwg.mxu0
        %v1193 = vadd.f32 %v747, %v1189
        %v1194 = vadd.f32 %v748, %v1191
        %v1195 = vld [vmem:[%s710] sm:$0x1]
        %v1196 = vld [vmem:[%s713] sm:$0x1]
        %v1197 = vsel %vm770, %v1193, 0.0
        %1198 = vadd.xlane.f32.xlu0 %v1197
        %v1199 = vpop.xlane.xlu0 %1198
        %v1200 = vsel %vm770, %v1194, 0.0
        %1201 = vadd.xlane.f32.xlu0 %v1200
        %v1202 = vpop.xlane.xlu0 %1201
        %v1203 = vrcp.pop 32.0
        %v1204 = vmul.f32 32.0, %v1203
        %v1205 = vsub.f32 1.0, %v1204
        %v1206 = vmul.f32 %v1203, %v1205
        %v1207 = vadd.f32 %v1203, %v1206
        %vm1208 = vweird.f32 %v1203
        %v1209 = vsel %vm1208, %v1203, %v1207
        %v1210 = vmul.f32 %v1199, %v1209
        %v1211 = vmul.f32 %v1202, %v1209
        %v1212 = vsub.f32 %v1193, %v1210
        %v1213 = vsub.f32 %v1194, %v1211
        %v1214 = vmul.f32 %v1212, %v1212
        %v1215 = vmul.f32 %v1213, %v1213
        %v1216 = vsel %vm770, %v1214, 0.0
        %1217 = vadd.xlane.f32.xlu0 %v1216
        %v1218 = vpop.xlane.xlu0 %1217
        %v1219 = vsel %vm770, %v1215, 0.0
        %1220 = vadd.xlane.f32.xlu0 %v1219
        %v1221 = vpop.xlane.xlu0 %1220
        %v1222 = vmul.f32 %v1218, %v1209
        %v1223 = vmul.f32 %v1221, %v1209
        %v1224 = vadd.f32 %v1222, 1e-05
        %v1225 = vadd.f32 %v1223, 1e-05
        %v1226 = vrsqrt.pop %v1224
        %v1227 = vmul.f32 %v1226, %v1224
        %v1228 = vmul.f32 %v1227, %v1226
        %v1229 = vmul.f32 0.5, %v1228
        %v1230 = vsub.f32 1.5, %v1229
        %v1231 = vmul.f32 %v1226, %v1230
        %vm1232 = vweird.f32 %v1224
        %vm1233 = vweird.f32 %v1226
        %vm1234 = vmor %vm1232, %vm1233
        %v1235 = vsel %vm1234, %v1226, %v1231
        %v1236 = vrsqrt.pop %v1225
        %v1237 = vmul.f32 %v1236, %v1225
        %v1238 = vmul.f32 %v1237, %v1236
        %v1239 = vmul.f32 0.5, %v1238
        %v1240 = vsub.f32 1.5, %v1239
        %v1241 = vmul.f32 %v1236, %v1240
        %vm1242 = vweird.f32 %v1225
        %vm1243 = vweird.f32 %v1236
        %vm1244 = vmor %vm1242, %vm1243
        %v1245 = vsel %vm1244, %v1236, %v1241
        %v1246 = vmul.f32 %v1212, %v1235
        %v1247 = vmul.f32 %v1213, %v1245
        %v1249 = vperm.slane %v1195, 0
        %v1251 = vmul.f32 %v1246, %v1249
        %v1252 = vmul.f32 %v1247, %v1249
        %v1254 = vperm.slane %v1196, 0
        %v1256 = vadd.f32 %v1251, %v1254
        %v1257 = vadd.f32 %v1252, %v1254
        %v1258 = vpack.c.bf16 %v1257, %v1256
        %v1259 = vld [vmem:[%s718] sm:$0xff]
        %v1260 = vld [vmem:[%s718 + $0x8] sm:$0xff]
        %v1261 = vld [vmem:[%s718 + $0x10] sm:$0xff]
        %v1262 = vld [vmem:[%s718 + $0x18] sm:$0xff]
        %v1263 = vld [vmem:[%s718 + $0x20] sm:$0xff]
        %v1264 = vld [vmem:[%s718 + $0x28] sm:$0xff]
        %v1265 = vld [vmem:[%s718 + $0x30] sm:$0xff]
        %v1266 = vld [vmem:[%s718 + $0x38] sm:$0xff]
        %v1267 = vld [vmem:[%s718 + $0x40] sm:$0xff]
        %v1268 = vld [vmem:[%s718 + $0x48] sm:$0xff]
        %v1269 = vld [vmem:[%s718 + $0x50] sm:$0xff]
        %v1270 = vld [vmem:[%s718 + $0x58] sm:$0xff]
        %v1271 = vld [vmem:[%s718 + $0x60] sm:$0xff]
        %v1272 = vld [vmem:[%s718 + $0x68] sm:$0xff]
        %v1273 = vld [vmem:[%s718 + $0x70] sm:$0xff]
        %v1274 = vld [vmem:[%s718 + $0x78] sm:$0xff]
        %v1275 = vld [vmem:[%s718 + $0x80] sm:$0xff]
        %v1276 = vld [vmem:[%s718 + $0x88] sm:$0xff]
        %v1277 = vld [vmem:[%s718 + $0x90] sm:$0xff]
        %v1278 = vld [vmem:[%s718 + $0x98] sm:$0xff]
        %v1279 = vld [vmem:[%s718 + $0xa0] sm:$0xff]
        %v1280 = vld [vmem:[%s718 + $0xa8] sm:$0xff]
        %v1281 = vld [vmem:[%s718 + $0xb0] sm:$0xff]
        %v1282 = vld [vmem:[%s718 + $0xb8] sm:$0xff]
        %v1283 = vld [vmem:[%s718 + $0xc0] sm:$0xff]
        %v1284 = vld [vmem:[%s718 + $0xc8] sm:$0xff]
        %v1285 = vld [vmem:[%s718 + $0xd0] sm:$0xff]
        %v1286 = vld [vmem:[%s718 + $0xd8] sm:$0xff]
        %v1287 = vld [vmem:[%s718 + $0xe0] sm:$0xff]
        %v1288 = vld [vmem:[%s718 + $0xe8] sm:$0xff]
        %v1289 = vld [vmem:[%s718 + $0xf0] sm:$0xff]
        %v1290 = vld [vmem:[%s718 + $0xf8] sm:$0xff]
        %v1291 = vld [vmem:[%s722] sm:$0xff]
        %v1292 = vld [vmem:[%s722 + $0x8] sm:$0xff]
        %v1295 = vperm.slane %v1291, 0
        %v1296 = vperm.slane %v1291, 1
        %v1297 = vperm.slane %v1291, 2
        %v1298 = vperm.slane %v1291, 3
        %v1299 = vperm.slane %v1291, 4
        %v1300 = vperm.slane %v1291, 5
        %v1301 = vperm.slane %v1291, 6
        %v1302 = vperm.slane %v1291, 7
        %v1303 = vperm.slane %v1292, 0
        %v1304 = vperm.slane %v1292, 1
        %v1305 = vperm.slane %v1292, 2
        %v1306 = vperm.slane %v1292, 3
        %v1307 = vperm.slane %v1292, 4
        %v1308 = vperm.slane %v1292, 5
        %v1309 = vperm.slane %v1292, 6
        %v1310 = vperm.slane %v1292, 7
        %v1359 = vunpack.c.l.b16 %v1259
        %v1360 = vunpack.c.h.b16 %v1259
        %v1361 = vunpack.c.l.b16 %v1260
        %v1362 = vunpack.c.h.b16 %v1260
        %v1363 = vunpack.c.l.b16 %v1261
        %v1364 = vunpack.c.h.b16 %v1261
        %v1365 = vunpack.c.l.b16 %v1262
        %v1366 = vunpack.c.h.b16 %v1262
        %v1367 = vunpack.c.l.b16 %v1263
        %v1368 = vunpack.c.h.b16 %v1263
        %v1369 = vunpack.c.l.b16 %v1264
        %v1370 = vunpack.c.h.b16 %v1264
        %v1371 = vunpack.c.l.b16 %v1265
        %v1372 = vunpack.c.h.b16 %v1265
        %v1373 = vunpack.c.l.b16 %v1266
        %v1374 = vunpack.c.h.b16 %v1266
        %v1375 = vunpack.c.l.b16 %v1267
        %v1376 = vunpack.c.h.b16 %v1267
        %v1377 = vunpack.c.l.b16 %v1268
        %v1378 = vunpack.c.h.b16 %v1268
        %v1379 = vunpack.c.l.b16 %v1269
        %v1380 = vunpack.c.h.b16 %v1269
        %v1381 = vunpack.c.l.b16 %v1270
        %v1382 = vunpack.c.h.b16 %v1270
        %v1383 = vunpack.c.l.b16 %v1271
        %v1384 = vunpack.c.h.b16 %v1271
        %v1385 = vunpack.c.l.b16 %v1272
        %v1386 = vunpack.c.h.b16 %v1272
        %v1387 = vunpack.c.l.b16 %v1273
        %v1388 = vunpack.c.h.b16 %v1273
        %v1389 = vunpack.c.l.b16 %v1274
        %v1390 = vunpack.c.h.b16 %v1274
        %v1391 = vunpack.c.l.b16 %v1275
        %v1392 = vunpack.c.h.b16 %v1275
        %v1393 = vunpack.c.l.b16 %v1276
        %v1394 = vunpack.c.h.b16 %v1276
        %v1395 = vunpack.c.l.b16 %v1277
        %v1396 = vunpack.c.h.b16 %v1277
        %v1397 = vunpack.c.l.b16 %v1278
        %v1398 = vunpack.c.h.b16 %v1278
        %v1399 = vunpack.c.l.b16 %v1279
        %v1400 = vunpack.c.h.b16 %v1279
        %v1401 = vunpack.c.l.b16 %v1280
        %v1402 = vunpack.c.h.b16 %v1280
        %v1403 = vunpack.c.l.b16 %v1281
        %v1404 = vunpack.c.h.b16 %v1281
        %v1405 = vunpack.c.l.b16 %v1282
        %v1406 = vunpack.c.h.b16 %v1282
        %v1407 = vunpack.c.l.b16 %v1283
        %v1408 = vunpack.c.h.b16 %v1283
        %v1409 = vunpack.c.l.b16 %v1284
        %v1410 = vunpack.c.h.b16 %v1284
        %v1411 = vunpack.c.l.b16 %v1285
        %v1412 = vunpack.c.h.b16 %v1285
        %v1413 = vunpack.c.l.b16 %v1286
        %v1414 = vunpack.c.h.b16 %v1286
        %v1415 = vunpack.c.l.b16 %v1287
        %v1416 = vunpack.c.h.b16 %v1287
        %v1417 = vunpack.c.l.b16 %v1288
        %v1418 = vunpack.c.h.b16 %v1288
        %v1419 = vunpack.c.l.b16 %v1289
        %v1420 = vunpack.c.h.b16 %v1289
        %v1421 = vunpack.c.l.b16 %v1290
        %v1422 = vunpack.c.h.b16 %v1290
        %v1423 = vpack.c.b16 %v1375, %v1359
        %v1424 = vpack.c.b16 %v1376, %v1360
        %v1425 = vpack.c.b16 %v1377, %v1361
        %v1426 = vpack.c.b16 %v1378, %v1362
        %v1427 = vpack.c.b16 %v1379, %v1363
        %v1428 = vpack.c.b16 %v1380, %v1364
        %v1429 = vpack.c.b16 %v1381, %v1365
        %v1430 = vpack.c.b16 %v1382, %v1366
        %v1431 = vpack.c.b16 %v1383, %v1367
        %v1432 = vpack.c.b16 %v1384, %v1368
        %v1433 = vpack.c.b16 %v1385, %v1369
        %v1434 = vpack.c.b16 %v1386, %v1370
        %v1435 = vpack.c.b16 %v1387, %v1371
        %v1436 = vpack.c.b16 %v1388, %v1372
        %v1437 = vpack.c.b16 %v1389, %v1373
        %v1438 = vpack.c.b16 %v1390, %v1374
        %v1439 = vpack.c.b16 %v1407, %v1391
        %v1440 = vpack.c.b16 %v1408, %v1392
        %v1441 = vpack.c.b16 %v1409, %v1393
        %v1442 = vpack.c.b16 %v1410, %v1394
        %v1443 = vpack.c.b16 %v1411, %v1395
        %v1444 = vpack.c.b16 %v1412, %v1396
        %v1445 = vpack.c.b16 %v1413, %v1397
        %v1446 = vpack.c.b16 %v1414, %v1398
        %v1447 = vpack.c.b16 %v1415, %v1399
        %v1448 = vpack.c.b16 %v1416, %v1400
        %v1449 = vpack.c.b16 %v1417, %v1401
        %v1450 = vpack.c.b16 %v1418, %v1402
        %v1451 = vpack.c.b16 %v1419, %v1403
        %v1452 = vpack.c.b16 %v1420, %v1404
        %v1453 = vpack.c.b16 %v1421, %v1405
        %v1454 = vpack.c.b16 %v1422, %v1406
        %v1488 = vsel %vm770, %v1258, 0
        %1490 = vmatpush.bf16.msra.mxu0 0
        %1491 = vmatpush.bf16.msra.mxu0 0
        %1492 = vmatpush.bf16.msra.mxu0 0
        %1493 = vmatpush.bf16.msra.mxu0 0
        %1494 = vmatpush.bf16.msra.mxu0 0
        %1495 = vmatpush.bf16.msra.mxu0 0
        %1496 = vmatpush.bf16.msra.mxu0 %v1439
        %1497 = vmatpush.bf16.msra.mxu0 %v1423
        %1498 = vmatmul.bf16.gmra.mxu0 %v1488
        %v1499 = vpop.f32.mrf.mxu0
        %v1500 = vadd.f32 %v1295, %v1499
        %v1501 = vpop.f32.mrf.mxu0
        %v1502 = vadd.f32 %v1295, %v1501
        %1503 = vdwg.mxu0
        %1504 = vmatpush.bf16.msra.mxu0 0
        %1505 = vmatpush.bf16.msra.mxu0 0
        %1506 = vmatpush.bf16.msra.mxu0 0
        %1507 = vmatpush.bf16.msra.mxu0 0
        %1508 = vmatpush.bf16.msra.mxu0 0
        %1509 = vmatpush.bf16.msra.mxu0 0
        %1510 = vmatpush.bf16.msra.mxu0 %v1440
        %1511 = vmatpush.bf16.msra.mxu0 %v1424
        %1512 = vmatmul.bf16.gmra.mxu0 %v1488
        %v1513 = vpop.f32.mrf.mxu0
        %v1514 = vadd.f32 %v1296, %v1513
        %v1515 = vpop.f32.mrf.mxu0
        %v1516 = vadd.f32 %v1296, %v1515
        %1517 = vdwg.mxu0
        %1518 = vmatpush.bf16.msra.mxu0 0
        %1519 = vmatpush.bf16.msra.mxu0 0
        %1520 = vmatpush.bf16.msra.mxu0 0
        %1521 = vmatpush.bf16.msra.mxu0 0
        %1522 = vmatpush.bf16.msra.mxu0 0
        %1523 = vmatpush.bf16.msra.mxu0 0
        %1524 = vmatpush.bf16.msra.mxu0 %v1441
        %1525 = vmatpush.bf16.msra.mxu0 %v1425
        %1526 = vmatmul.bf16.gmra.mxu0 %v1488
        %v1527 = vpop.f32.mrf.mxu0
        %v1528 = vadd.f32 %v1297, %v1527
        %v1529 = vpop.f32.mrf.mxu0
        %v1530 = vadd.f32 %v1297, %v1529
        %1531 = vdwg.mxu0
        %1532 = vmatpush.bf16.msra.mxu0 0
        %1533 = vmatpush.bf16.msra.mxu0 0
        %1534 = vmatpush.bf16.msra.mxu0 0
        %1535 = vmatpush.bf16.msra.mxu0 0
        %1536 = vmatpush.bf16.msra.mxu0 0
        %1537 = vmatpush.bf16.msra.mxu0 0
        %1538 = vmatpush.bf16.msra.mxu0 %v1442
        %1539 = vmatpush.bf16.msra.mxu0 %v1426
        %1540 = vmatmul.bf16.gmra.mxu0 %v1488
        %v1541 = vpop.f32.mrf.mxu0
        %v1542 = vadd.f32 %v1298, %v1541
        %v1543 = vpop.f32.mrf.mxu0
        %v1544 = vadd.f32 %v1298, %v1543
        %1545 = vdwg.mxu0
        %1546 = vmatpush.bf16.msra.mxu0 0
        %1547 = vmatpush.bf16.msra.mxu0 0
        %1548 = vmatpush.bf16.msra.mxu0 0
        %1549 = vmatpush.bf16.msra.mxu0 0
        %1550 = vmatpush.bf16.msra.mxu0 0
        %1551 = vmatpush.bf16.msra.mxu0 0
        %1552 = vmatpush.bf16.msra.mxu0 %v1443
        %1553 = vmatpush.bf16.msra.mxu0 %v1427
        %1554 = vmatmul.bf16.gmra.mxu0 %v1488
        %v1555 = vpop.f32.mrf.mxu0
        %v1556 = vadd.f32 %v1299, %v1555
        %v1557 = vpop.f32.mrf.mxu0
        %v1558 = vadd.f32 %v1299, %v1557
        %1559 = vdwg.mxu0
        %1560 = vmatpush.bf16.msra.mxu0 0
        %1561 = vmatpush.bf16.msra.mxu0 0
        %1562 = vmatpush.bf16.msra.mxu0 0
        %1563 = vmatpush.bf16.msra.mxu0 0
        %1564 = vmatpush.bf16.msra.mxu0 0
        %1565 = vmatpush.bf16.msra.mxu0 0
        %1566 = vmatpush.bf16.msra.mxu0 %v1444
        %1567 = vmatpush.bf16.msra.mxu0 %v1428
        %1568 = vmatmul.bf16.gmra.mxu0 %v1488
        %v1569 = vpop.f32.mrf.mxu0
        %v1570 = vadd.f32 %v1300, %v1569
        %v1571 = vpop.f32.mrf.mxu0
        %v1572 = vadd.f32 %v1300, %v1571
        %1573 = vdwg.mxu0
        %1574 = vmatpush.bf16.msra.mxu0 0
        %1575 = vmatpush.bf16.msra.mxu0 0
        %1576 = vmatpush.bf16.msra.mxu0 0
        %1577 = vmatpush.bf16.msra.mxu0 0
        %1578 = vmatpush.bf16.msra.mxu0 0
        %1579 = vmatpush.bf16.msra.mxu0 0
        %1580 = vmatpush.bf16.msra.mxu0 %v1445
        %1581 = vmatpush.bf16.msra.mxu0 %v1429
        %1582 = vmatmul.bf16.gmra.mxu0 %v1488
        %v1583 = vpop.f32.mrf.mxu0
        %v1584 = vadd.f32 %v1301, %v1583
        %v1585 = vpop.f32.mrf.mxu0
        %v1586 = vadd.f32 %v1301, %v1585
        %1587 = vdwg.mxu0
        %1588 = vmatpush.bf16.msra.mxu0 0
        %1589 = vmatpush.bf16.msra.mxu0 0
        %1590 = vmatpush.bf16.msra.mxu0 0
        %1591 = vmatpush.bf16.msra.mxu0 0
        %1592 = vmatpush.bf16.msra.mxu0 0
        %1593 = vmatpush.bf16.msra.mxu0 0
        %1594 = vmatpush.bf16.msra.mxu0 %v1446
        %1595 = vmatpush.bf16.msra.mxu0 %v1430
        %1596 = vmatmul.bf16.gmra.mxu0 %v1488
        %v1597 = vpop.f32.mrf.mxu0
        %v1598 = vadd.f32 %v1302, %v1597
        %v1599 = vpop.f32.mrf.mxu0
        %v1600 = vadd.f32 %v1302, %v1599
        %1601 = vdwg.mxu0
        %1602 = vmatpush.bf16.msra.mxu0 0
        %1603 = vmatpush.bf16.msra.mxu0 0
        %1604 = vmatpush.bf16.msra.mxu0 0
        %1605 = vmatpush.bf16.msra.mxu0 0
        %1606 = vmatpush.bf16.msra.mxu0 0
        %1607 = vmatpush.bf16.msra.mxu0 0
        %1608 = vmatpush.bf16.msra.mxu0 %v1447
        %1609 = vmatpush.bf16.msra.mxu0 %v1431
        %1610 = vmatmul.bf16.gmra.mxu0 %v1488
        %v1611 = vpop.f32.mrf.mxu0
        %v1612 = vadd.f32 %v1303, %v1611
        %v1613 = vpop.f32.mrf.mxu0
        %v1614 = vadd.f32 %v1303, %v1613
        %1615 = vdwg.mxu0
        %1616 = vmatpush.bf16.msra.mxu0 0
        %1617 = vmatpush.bf16.msra.mxu0 0
        %1618 = vmatpush.bf16.msra.mxu0 0
        %1619 = vmatpush.bf16.msra.mxu0 0
        %1620 = vmatpush.bf16.msra.mxu0 0
        %1621 = vmatpush.bf16.msra.mxu0 0
        %1622 = vmatpush.bf16.msra.mxu0 %v1448
        %1623 = vmatpush.bf16.msra.mxu0 %v1432
        %1624 = vmatmul.bf16.gmra.mxu0 %v1488
        %v1625 = vpop.f32.mrf.mxu0
        %v1626 = vadd.f32 %v1304, %v1625
        %v1627 = vpop.f32.mrf.mxu0
        %v1628 = vadd.f32 %v1304, %v1627
        %1629 = vdwg.mxu0
        %1630 = vmatpush.bf16.msra.mxu0 0
        %1631 = vmatpush.bf16.msra.mxu0 0
        %1632 = vmatpush.bf16.msra.mxu0 0
        %1633 = vmatpush.bf16.msra.mxu0 0
        %1634 = vmatpush.bf16.msra.mxu0 0
        %1635 = vmatpush.bf16.msra.mxu0 0
        %1636 = vmatpush.bf16.msra.mxu0 %v1449
        %1637 = vmatpush.bf16.msra.mxu0 %v1433
        %1638 = vmatmul.bf16.gmra.mxu0 %v1488
        %v1639 = vpop.f32.mrf.mxu0
        %v1640 = vadd.f32 %v1305, %v1639
        %v1641 = vpop.f32.mrf.mxu0
        %v1642 = vadd.f32 %v1305, %v1641
        %1643 = vdwg.mxu0
        %1644 = vmatpush.bf16.msra.mxu0 0
        %1645 = vmatpush.bf16.msra.mxu0 0
        %1646 = vmatpush.bf16.msra.mxu0 0
        %1647 = vmatpush.bf16.msra.mxu0 0
        %1648 = vmatpush.bf16.msra.mxu0 0
        %1649 = vmatpush.bf16.msra.mxu0 0
        %1650 = vmatpush.bf16.msra.mxu0 %v1450
        %1651 = vmatpush.bf16.msra.mxu0 %v1434
        %1652 = vmatmul.bf16.gmra.mxu0 %v1488
        %v1653 = vpop.f32.mrf.mxu0
        %v1654 = vadd.f32 %v1306, %v1653
        %v1655 = vpop.f32.mrf.mxu0
        %v1656 = vadd.f32 %v1306, %v1655
        %1657 = vdwg.mxu0
        %1658 = vmatpush.bf16.msra.mxu0 0
        %1659 = vmatpush.bf16.msra.mxu0 0
        %1660 = vmatpush.bf16.msra.mxu0 0
        %1661 = vmatpush.bf16.msra.mxu0 0
        %1662 = vmatpush.bf16.msra.mxu0 0
        %1663 = vmatpush.bf16.msra.mxu0 0
        %1664 = vmatpush.bf16.msra.mxu0 %v1451
        %1665 = vmatpush.bf16.msra.mxu0 %v1435
        %1666 = vmatmul.bf16.gmra.mxu0 %v1488
        %v1667 = vpop.f32.mrf.mxu0
        %v1668 = vadd.f32 %v1307, %v1667
        %v1669 = vpop.f32.mrf.mxu0
        %v1670 = vadd.f32 %v1307, %v1669
        %1671 = vdwg.mxu0
        %1672 = vmatpush.bf16.msra.mxu0 0
        %1673 = vmatpush.bf16.msra.mxu0 0
        %1674 = vmatpush.bf16.msra.mxu0 0
        %1675 = vmatpush.bf16.msra.mxu0 0
        %1676 = vmatpush.bf16.msra.mxu0 0
        %1677 = vmatpush.bf16.msra.mxu0 0
        %1678 = vmatpush.bf16.msra.mxu0 %v1452
        %1679 = vmatpush.bf16.msra.mxu0 %v1436
        %1680 = vmatmul.bf16.gmra.mxu0 %v1488
        %v1681 = vpop.f32.mrf.mxu0
        %v1682 = vadd.f32 %v1308, %v1681
        %v1683 = vpop.f32.mrf.mxu0
        %v1684 = vadd.f32 %v1308, %v1683
        %1685 = vdwg.mxu0
        %1686 = vmatpush.bf16.msra.mxu0 0
        %1687 = vmatpush.bf16.msra.mxu0 0
        %1688 = vmatpush.bf16.msra.mxu0 0
        %1689 = vmatpush.bf16.msra.mxu0 0
        %1690 = vmatpush.bf16.msra.mxu0 0
        %1691 = vmatpush.bf16.msra.mxu0 0
        %1692 = vmatpush.bf16.msra.mxu0 %v1453
        %1693 = vmatpush.bf16.msra.mxu0 %v1437
        %1694 = vmatmul.bf16.gmra.mxu0 %v1488
        %v1695 = vpop.f32.mrf.mxu0
        %v1696 = vadd.f32 %v1309, %v1695
        %v1697 = vpop.f32.mrf.mxu0
        %v1698 = vadd.f32 %v1309, %v1697
        %1699 = vdwg.mxu0
        %1700 = vmatpush.bf16.msra.mxu0 0
        %1701 = vmatpush.bf16.msra.mxu0 0
        %1702 = vmatpush.bf16.msra.mxu0 0
        %1703 = vmatpush.bf16.msra.mxu0 0
        %1704 = vmatpush.bf16.msra.mxu0 0
        %1705 = vmatpush.bf16.msra.mxu0 0
        %1706 = vmatpush.bf16.msra.mxu0 %v1454
        %1707 = vmatpush.bf16.msra.mxu0 %v1438
        %1708 = vmatmul.bf16.gmra.mxu0 %v1488
        %v1709 = vpop.f32.mrf.mxu0
        %v1710 = vadd.f32 %v1310, %v1709
        %v1711 = vpop.f32.mrf.mxu0
        %v1712 = vadd.f32 %v1310, %v1711
        %1713 = vdwg.mxu0
        %v1714 = vmax.f32 %v1500, 0.0
        %v1715 = vmax.f32 %v1514, 0.0
        %v1716 = vmax.f32 %v1528, 0.0
        %v1717 = vmax.f32 %v1542, 0.0
        %v1718 = vmax.f32 %v1556, 0.0
        %v1719 = vmax.f32 %v1570, 0.0
        %v1720 = vmax.f32 %v1584, 0.0
        %v1721 = vmax.f32 %v1598, 0.0
        %v1722 = vmax.f32 %v1612, 0.0
        %v1723 = vmax.f32 %v1626, 0.0
        %v1724 = vmax.f32 %v1640, 0.0
        %v1725 = vmax.f32 %v1654, 0.0
        %v1726 = vmax.f32 %v1668, 0.0
        %v1727 = vmax.f32 %v1682, 0.0
        %v1728 = vmax.f32 %v1696, 0.0
        %v1729 = vmax.f32 %v1710, 0.0
        %v1730 = vmax.f32 %v1502, 0.0
        %v1731 = vmax.f32 %v1516, 0.0
        %v1732 = vmax.f32 %v1530, 0.0
        %v1733 = vmax.f32 %v1544, 0.0
        %v1734 = vmax.f32 %v1558, 0.0
        %v1735 = vmax.f32 %v1572, 0.0
        %v1736 = vmax.f32 %v1586, 0.0
        %v1737 = vmax.f32 %v1600, 0.0
        %v1738 = vmax.f32 %v1614, 0.0
        %v1739 = vmax.f32 %v1628, 0.0
        %v1740 = vmax.f32 %v1642, 0.0
        %v1741 = vmax.f32 %v1656, 0.0
        %v1742 = vmax.f32 %v1670, 0.0
        %v1743 = vmax.f32 %v1684, 0.0
        %v1744 = vmax.f32 %v1698, 0.0
        %v1745 = vmax.f32 %v1712, 0.0
        %v1746 = vpack.c.bf16 %v1730, %v1714
        %v1747 = vpack.c.bf16 %v1731, %v1715
        %v1748 = vpack.c.bf16 %v1732, %v1716
        %v1749 = vpack.c.bf16 %v1733, %v1717
        %v1750 = vpack.c.bf16 %v1734, %v1718
        %v1751 = vpack.c.bf16 %v1735, %v1719
        %v1752 = vpack.c.bf16 %v1736, %v1720
        %v1753 = vpack.c.bf16 %v1737, %v1721
        %v1754 = vpack.c.bf16 %v1738, %v1722
        %v1755 = vpack.c.bf16 %v1739, %v1723
        %v1756 = vpack.c.bf16 %v1740, %v1724
        %v1757 = vpack.c.bf16 %v1741, %v1725
        %v1758 = vpack.c.bf16 %v1742, %v1726
        %v1759 = vpack.c.bf16 %v1743, %v1727
        %v1760 = vpack.c.bf16 %v1744, %v1728
        %v1761 = vpack.c.bf16 %v1745, %v1729
        %v1762 = vld [vmem:[%s727] sm:$0xf]
        %v1763 = vld [vmem:[%s727 + $0x4] sm:$0xf]
        %v1764 = vld [vmem:[%s727 + $0x8] sm:$0xf]
        %v1765 = vld [vmem:[%s727 + $0xc] sm:$0xf]
        %v1766 = vld [vmem:[%s727 + $0x10] sm:$0xf]
        %v1767 = vld [vmem:[%s727 + $0x14] sm:$0xf]
        %v1768 = vld [vmem:[%s727 + $0x18] sm:$0xf]
        %v1769 = vld [vmem:[%s727 + $0x1c] sm:$0xf]
        %v1770 = vld [vmem:[%s727 + $0x20] sm:$0xf]
        %v1771 = vld [vmem:[%s727 + $0x24] sm:$0xf]
        %v1772 = vld [vmem:[%s727 + $0x28] sm:$0xf]
        %v1773 = vld [vmem:[%s727 + $0x2c] sm:$0xf]
        %v1774 = vld [vmem:[%s727 + $0x30] sm:$0xf]
        %v1775 = vld [vmem:[%s727 + $0x34] sm:$0xf]
        %v1776 = vld [vmem:[%s727 + $0x38] sm:$0xf]
        %v1777 = vld [vmem:[%s727 + $0x3c] sm:$0xf]
        %v1778 = vld [vmem:[%s727 + $0x40] sm:$0xf]
        %v1779 = vld [vmem:[%s727 + $0x44] sm:$0xf]
        %v1780 = vld [vmem:[%s727 + $0x48] sm:$0xf]
        %v1781 = vld [vmem:[%s727 + $0x4c] sm:$0xf]
        %v1782 = vld [vmem:[%s727 + $0x50] sm:$0xf]
        %v1783 = vld [vmem:[%s727 + $0x54] sm:$0xf]
        %v1784 = vld [vmem:[%s727 + $0x58] sm:$0xf]
        %v1785 = vld [vmem:[%s727 + $0x5c] sm:$0xf]
        %v1786 = vld [vmem:[%s727 + $0x60] sm:$0xf]
        %v1787 = vld [vmem:[%s727 + $0x64] sm:$0xf]
        %v1788 = vld [vmem:[%s727 + $0x68] sm:$0xf]
        %v1789 = vld [vmem:[%s727 + $0x6c] sm:$0xf]
        %v1790 = vld [vmem:[%s727 + $0x70] sm:$0xf]
        %v1791 = vld [vmem:[%s727 + $0x74] sm:$0xf]
        %v1792 = vld [vmem:[%s727 + $0x78] sm:$0xf]
        %v1793 = vld [vmem:[%s727 + $0x7c] sm:$0xf]
        %v1794 = vld [vmem:[%s727 + $0x80] sm:$0xf]
        %v1795 = vld [vmem:[%s727 + $0x84] sm:$0xf]
        %v1796 = vld [vmem:[%s727 + $0x88] sm:$0xf]
        %v1797 = vld [vmem:[%s727 + $0x8c] sm:$0xf]
        %v1798 = vld [vmem:[%s727 + $0x90] sm:$0xf]
        %v1799 = vld [vmem:[%s727 + $0x94] sm:$0xf]
        %v1800 = vld [vmem:[%s727 + $0x98] sm:$0xf]
        %v1801 = vld [vmem:[%s727 + $0x9c] sm:$0xf]
        %v1802 = vld [vmem:[%s727 + $0xa0] sm:$0xf]
        %v1803 = vld [vmem:[%s727 + $0xa4] sm:$0xf]
        %v1804 = vld [vmem:[%s727 + $0xa8] sm:$0xf]
        %v1805 = vld [vmem:[%s727 + $0xac] sm:$0xf]
        %v1806 = vld [vmem:[%s727 + $0xb0] sm:$0xf]
        %v1807 = vld [vmem:[%s727 + $0xb4] sm:$0xf]
        %v1808 = vld [vmem:[%s727 + $0xb8] sm:$0xf]
        %v1809 = vld [vmem:[%s727 + $0xbc] sm:$0xf]
        %v1810 = vld [vmem:[%s727 + $0xc0] sm:$0xf]
        %v1811 = vld [vmem:[%s727 + $0xc4] sm:$0xf]
        %v1812 = vld [vmem:[%s727 + $0xc8] sm:$0xf]
        %v1813 = vld [vmem:[%s727 + $0xcc] sm:$0xf]
        %v1814 = vld [vmem:[%s727 + $0xd0] sm:$0xf]
        %v1815 = vld [vmem:[%s727 + $0xd4] sm:$0xf]
        %v1816 = vld [vmem:[%s727 + $0xd8] sm:$0xf]
        %v1817 = vld [vmem:[%s727 + $0xdc] sm:$0xf]
        %v1818 = vld [vmem:[%s727 + $0xe0] sm:$0xf]
        %v1819 = vld [vmem:[%s727 + $0xe4] sm:$0xf]
        %v1820 = vld [vmem:[%s727 + $0xe8] sm:$0xf]
        %v1821 = vld [vmem:[%s727 + $0xec] sm:$0xf]
        %v1822 = vld [vmem:[%s727 + $0xf0] sm:$0xf]
        %v1823 = vld [vmem:[%s727 + $0xf4] sm:$0xf]
        %v1824 = vld [vmem:[%s727 + $0xf8] sm:$0xf]
        %v1825 = vld [vmem:[%s727 + $0xfc] sm:$0xf]
        %v1826 = vld [vmem:[%s727 + $0x100] sm:$0xf]
        %v1827 = vld [vmem:[%s727 + $0x104] sm:$0xf]
        %v1828 = vld [vmem:[%s727 + $0x108] sm:$0xf]
        %v1829 = vld [vmem:[%s727 + $0x10c] sm:$0xf]
        %v1830 = vld [vmem:[%s727 + $0x110] sm:$0xf]
        %v1831 = vld [vmem:[%s727 + $0x114] sm:$0xf]
        %v1832 = vld [vmem:[%s727 + $0x118] sm:$0xf]
        %v1833 = vld [vmem:[%s727 + $0x11c] sm:$0xf]
        %v1834 = vld [vmem:[%s727 + $0x120] sm:$0xf]
        %v1835 = vld [vmem:[%s727 + $0x124] sm:$0xf]
        %v1836 = vld [vmem:[%s727 + $0x128] sm:$0xf]
        %v1837 = vld [vmem:[%s727 + $0x12c] sm:$0xf]
        %v1838 = vld [vmem:[%s727 + $0x130] sm:$0xf]
        %v1839 = vld [vmem:[%s727 + $0x134] sm:$0xf]
        %v1840 = vld [vmem:[%s727 + $0x138] sm:$0xf]
        %v1841 = vld [vmem:[%s727 + $0x13c] sm:$0xf]
        %v1842 = vld [vmem:[%s727 + $0x140] sm:$0xf]
        %v1843 = vld [vmem:[%s727 + $0x144] sm:$0xf]
        %v1844 = vld [vmem:[%s727 + $0x148] sm:$0xf]
        %v1845 = vld [vmem:[%s727 + $0x14c] sm:$0xf]
        %v1846 = vld [vmem:[%s727 + $0x150] sm:$0xf]
        %v1847 = vld [vmem:[%s727 + $0x154] sm:$0xf]
        %v1848 = vld [vmem:[%s727 + $0x158] sm:$0xf]
        %v1849 = vld [vmem:[%s727 + $0x15c] sm:$0xf]
        %v1850 = vld [vmem:[%s727 + $0x160] sm:$0xf]
        %v1851 = vld [vmem:[%s727 + $0x164] sm:$0xf]
        %v1852 = vld [vmem:[%s727 + $0x168] sm:$0xf]
        %v1853 = vld [vmem:[%s727 + $0x16c] sm:$0xf]
        %v1854 = vld [vmem:[%s727 + $0x170] sm:$0xf]
        %v1855 = vld [vmem:[%s727 + $0x174] sm:$0xf]
        %v1856 = vld [vmem:[%s727 + $0x178] sm:$0xf]
        %v1857 = vld [vmem:[%s727 + $0x17c] sm:$0xf]
        %v1858 = vld [vmem:[%s727 + $0x180] sm:$0xf]
        %v1859 = vld [vmem:[%s727 + $0x184] sm:$0xf]
        %v1860 = vld [vmem:[%s727 + $0x188] sm:$0xf]
        %v1861 = vld [vmem:[%s727 + $0x18c] sm:$0xf]
        %v1862 = vld [vmem:[%s727 + $0x190] sm:$0xf]
        %v1863 = vld [vmem:[%s727 + $0x194] sm:$0xf]
        %v1864 = vld [vmem:[%s727 + $0x198] sm:$0xf]
        %v1865 = vld [vmem:[%s727 + $0x19c] sm:$0xf]
        %v1866 = vld [vmem:[%s727 + $0x1a0] sm:$0xf]
        %v1867 = vld [vmem:[%s727 + $0x1a4] sm:$0xf]
        %v1868 = vld [vmem:[%s727 + $0x1a8] sm:$0xf]
        %v1869 = vld [vmem:[%s727 + $0x1ac] sm:$0xf]
        %v1870 = vld [vmem:[%s727 + $0x1b0] sm:$0xf]
        %v1871 = vld [vmem:[%s727 + $0x1b4] sm:$0xf]
        %v1872 = vld [vmem:[%s727 + $0x1b8] sm:$0xf]
        %v1873 = vld [vmem:[%s727 + $0x1bc] sm:$0xf]
        %v1874 = vld [vmem:[%s727 + $0x1c0] sm:$0xf]
        %v1875 = vld [vmem:[%s727 + $0x1c4] sm:$0xf]
        %v1876 = vld [vmem:[%s727 + $0x1c8] sm:$0xf]
        %v1877 = vld [vmem:[%s727 + $0x1cc] sm:$0xf]
        %v1878 = vld [vmem:[%s727 + $0x1d0] sm:$0xf]
        %v1879 = vld [vmem:[%s727 + $0x1d4] sm:$0xf]
        %v1880 = vld [vmem:[%s727 + $0x1d8] sm:$0xf]
        %v1881 = vld [vmem:[%s727 + $0x1dc] sm:$0xf]
        %v1882 = vld [vmem:[%s727 + $0x1e0] sm:$0xf]
        %v1883 = vld [vmem:[%s727 + $0x1e4] sm:$0xf]
        %v1884 = vld [vmem:[%s727 + $0x1e8] sm:$0xf]
        %v1885 = vld [vmem:[%s727 + $0x1ec] sm:$0xf]
        %v1886 = vld [vmem:[%s727 + $0x1f0] sm:$0xf]
        %v1887 = vld [vmem:[%s727 + $0x1f4] sm:$0xf]
        %v1888 = vld [vmem:[%s727 + $0x1f8] sm:$0xf]
        %v1889 = vld [vmem:[%s727 + $0x1fc] sm:$0xf]
        %v1890 = vld [vmem:[%s727 + $0x200] sm:$0xf]
        %v1891 = vld [vmem:[%s727 + $0x204] sm:$0xf]
        %v1892 = vld [vmem:[%s727 + $0x208] sm:$0xf]
        %v1893 = vld [vmem:[%s727 + $0x20c] sm:$0xf]
        %v1894 = vld [vmem:[%s727 + $0x210] sm:$0xf]
        %v1895 = vld [vmem:[%s727 + $0x214] sm:$0xf]
        %v1896 = vld [vmem:[%s727 + $0x218] sm:$0xf]
        %v1897 = vld [vmem:[%s727 + $0x21c] sm:$0xf]
        %v1898 = vld [vmem:[%s727 + $0x220] sm:$0xf]
        %v1899 = vld [vmem:[%s727 + $0x224] sm:$0xf]
        %v1900 = vld [vmem:[%s727 + $0x228] sm:$0xf]
        %v1901 = vld [vmem:[%s727 + $0x22c] sm:$0xf]
        %v1902 = vld [vmem:[%s727 + $0x230] sm:$0xf]
        %v1903 = vld [vmem:[%s727 + $0x234] sm:$0xf]
        %v1904 = vld [vmem:[%s727 + $0x238] sm:$0xf]
        %v1905 = vld [vmem:[%s727 + $0x23c] sm:$0xf]
        %v1906 = vld [vmem:[%s727 + $0x240] sm:$0xf]
        %v1907 = vld [vmem:[%s727 + $0x244] sm:$0xf]
        %v1908 = vld [vmem:[%s727 + $0x248] sm:$0xf]
        %v1909 = vld [vmem:[%s727 + $0x24c] sm:$0xf]
        %v1910 = vld [vmem:[%s727 + $0x250] sm:$0xf]
        %v1911 = vld [vmem:[%s727 + $0x254] sm:$0xf]
        %v1912 = vld [vmem:[%s727 + $0x258] sm:$0xf]
        %v1913 = vld [vmem:[%s727 + $0x25c] sm:$0xf]
        %v1914 = vld [vmem:[%s727 + $0x260] sm:$0xf]
        %v1915 = vld [vmem:[%s727 + $0x264] sm:$0xf]
        %v1916 = vld [vmem:[%s727 + $0x268] sm:$0xf]
        %v1917 = vld [vmem:[%s727 + $0x26c] sm:$0xf]
        %v1918 = vld [vmem:[%s727 + $0x270] sm:$0xf]
        %v1919 = vld [vmem:[%s727 + $0x274] sm:$0xf]
        %v1920 = vld [vmem:[%s727 + $0x278] sm:$0xf]
        %v1921 = vld [vmem:[%s727 + $0x27c] sm:$0xf]
        %v1922 = vld [vmem:[%s727 + $0x280] sm:$0xf]
        %v1923 = vld [vmem:[%s727 + $0x284] sm:$0xf]
        %v1924 = vld [vmem:[%s727 + $0x288] sm:$0xf]
        %v1925 = vld [vmem:[%s727 + $0x28c] sm:$0xf]
        %v1926 = vld [vmem:[%s727 + $0x290] sm:$0xf]
        %v1927 = vld [vmem:[%s727 + $0x294] sm:$0xf]
        %v1928 = vld [vmem:[%s727 + $0x298] sm:$0xf]
        %v1929 = vld [vmem:[%s727 + $0x29c] sm:$0xf]
        %v1930 = vld [vmem:[%s727 + $0x2a0] sm:$0xf]
        %v1931 = vld [vmem:[%s727 + $0x2a4] sm:$0xf]
        %v1932 = vld [vmem:[%s727 + $0x2a8] sm:$0xf]
        %v1933 = vld [vmem:[%s727 + $0x2ac] sm:$0xf]
        %v1934 = vld [vmem:[%s727 + $0x2b0] sm:$0xf]
        %v1935 = vld [vmem:[%s727 + $0x2b4] sm:$0xf]
        %v1936 = vld [vmem:[%s727 + $0x2b8] sm:$0xf]
        %v1937 = vld [vmem:[%s727 + $0x2bc] sm:$0xf]
        %v1938 = vld [vmem:[%s727 + $0x2c0] sm:$0xf]
        %v1939 = vld [vmem:[%s727 + $0x2c4] sm:$0xf]
        %v1940 = vld [vmem:[%s727 + $0x2c8] sm:$0xf]
        %v1941 = vld [vmem:[%s727 + $0x2cc] sm:$0xf]
        %v1942 = vld [vmem:[%s727 + $0x2d0] sm:$0xf]
        %v1943 = vld [vmem:[%s727 + $0x2d4] sm:$0xf]
        %v1944 = vld [vmem:[%s727 + $0x2d8] sm:$0xf]
        %v1945 = vld [vmem:[%s727 + $0x2dc] sm:$0xf]
        %v1946 = vld [vmem:[%s727 + $0x2e0] sm:$0xf]
        %v1947 = vld [vmem:[%s727 + $0x2e4] sm:$0xf]
        %v1948 = vld [vmem:[%s727 + $0x2e8] sm:$0xf]
        %v1949 = vld [vmem:[%s727 + $0x2ec] sm:$0xf]
        %v1950 = vld [vmem:[%s727 + $0x2f0] sm:$0xf]
        %v1951 = vld [vmem:[%s727 + $0x2f4] sm:$0xf]
        %v1952 = vld [vmem:[%s727 + $0x2f8] sm:$0xf]
        %v1953 = vld [vmem:[%s727 + $0x2fc] sm:$0xf]
        %v1954 = vld [vmem:[%s727 + $0x300] sm:$0xf]
        %v1955 = vld [vmem:[%s727 + $0x304] sm:$0xf]
        %v1956 = vld [vmem:[%s727 + $0x308] sm:$0xf]
        %v1957 = vld [vmem:[%s727 + $0x30c] sm:$0xf]
        %v1958 = vld [vmem:[%s727 + $0x310] sm:$0xf]
        %v1959 = vld [vmem:[%s727 + $0x314] sm:$0xf]
        %v1960 = vld [vmem:[%s727 + $0x318] sm:$0xf]
        %v1961 = vld [vmem:[%s727 + $0x31c] sm:$0xf]
        %v1962 = vld [vmem:[%s727 + $0x320] sm:$0xf]
        %v1963 = vld [vmem:[%s727 + $0x324] sm:$0xf]
        %v1964 = vld [vmem:[%s727 + $0x328] sm:$0xf]
        %v1965 = vld [vmem:[%s727 + $0x32c] sm:$0xf]
        %v1966 = vld [vmem:[%s727 + $0x330] sm:$0xf]
        %v1967 = vld [vmem:[%s727 + $0x334] sm:$0xf]
        %v1968 = vld [vmem:[%s727 + $0x338] sm:$0xf]
        %v1969 = vld [vmem:[%s727 + $0x33c] sm:$0xf]
        %v1970 = vld [vmem:[%s727 + $0x340] sm:$0xf]
        %v1971 = vld [vmem:[%s727 + $0x344] sm:$0xf]
        %v1972 = vld [vmem:[%s727 + $0x348] sm:$0xf]
        %v1973 = vld [vmem:[%s727 + $0x34c] sm:$0xf]
        %v1974 = vld [vmem:[%s727 + $0x350] sm:$0xf]
        %v1975 = vld [vmem:[%s727 + $0x354] sm:$0xf]
        %v1976 = vld [vmem:[%s727 + $0x358] sm:$0xf]
        %v1977 = vld [vmem:[%s727 + $0x35c] sm:$0xf]
        %v1978 = vld [vmem:[%s727 + $0x360] sm:$0xf]
        %v1979 = vld [vmem:[%s727 + $0x364] sm:$0xf]
        %v1980 = vld [vmem:[%s727 + $0x368] sm:$0xf]
        %v1981 = vld [vmem:[%s727 + $0x36c] sm:$0xf]
        %v1982 = vld [vmem:[%s727 + $0x370] sm:$0xf]
        %v1983 = vld [vmem:[%s727 + $0x374] sm:$0xf]
        %v1984 = vld [vmem:[%s727 + $0x378] sm:$0xf]
        %v1985 = vld [vmem:[%s727 + $0x37c] sm:$0xf]
        %v1986 = vld [vmem:[%s727 + $0x380] sm:$0xf]
        %v1987 = vld [vmem:[%s727 + $0x384] sm:$0xf]
        %v1988 = vld [vmem:[%s727 + $0x388] sm:$0xf]
        %v1989 = vld [vmem:[%s727 + $0x38c] sm:$0xf]
        %v1990 = vld [vmem:[%s727 + $0x390] sm:$0xf]
        %v1991 = vld [vmem:[%s727 + $0x394] sm:$0xf]
        %v1992 = vld [vmem:[%s727 + $0x398] sm:$0xf]
        %v1993 = vld [vmem:[%s727 + $0x39c] sm:$0xf]
        %v1994 = vld [vmem:[%s727 + $0x3a0] sm:$0xf]
        %v1995 = vld [vmem:[%s727 + $0x3a4] sm:$0xf]
        %v1996 = vld [vmem:[%s727 + $0x3a8] sm:$0xf]
        %v1997 = vld [vmem:[%s727 + $0x3ac] sm:$0xf]
        %v1998 = vld [vmem:[%s727 + $0x3b0] sm:$0xf]
        %v1999 = vld [vmem:[%s727 + $0x3b4] sm:$0xf]
        %v2000 = vld [vmem:[%s727 + $0x3b8] sm:$0xf]
        %v2001 = vld [vmem:[%s727 + $0x3bc] sm:$0xf]
        %v2002 = vld [vmem:[%s727 + $0x3c0] sm:$0xf]
        %v2003 = vld [vmem:[%s727 + $0x3c4] sm:$0xf]
        %v2004 = vld [vmem:[%s727 + $0x3c8] sm:$0xf]
        %v2005 = vld [vmem:[%s727 + $0x3cc] sm:$0xf]
        %v2006 = vld [vmem:[%s727 + $0x3d0] sm:$0xf]
        %v2007 = vld [vmem:[%s727 + $0x3d4] sm:$0xf]
        %v2008 = vld [vmem:[%s727 + $0x3d8] sm:$0xf]
        %v2009 = vld [vmem:[%s727 + $0x3dc] sm:$0xf]
        %v2010 = vld [vmem:[%s727 + $0x3e0] sm:$0xf]
        %v2011 = vld [vmem:[%s727 + $0x3e4] sm:$0xf]
        %v2012 = vld [vmem:[%s727 + $0x3e8] sm:$0xf]
        %v2013 = vld [vmem:[%s727 + $0x3ec] sm:$0xf]
        %v2014 = vld [vmem:[%s727 + $0x3f0] sm:$0xf]
        %v2015 = vld [vmem:[%s727 + $0x3f4] sm:$0xf]
        %v2016 = vld [vmem:[%s727 + $0x3f8] sm:$0xf]
        %v2017 = vld [vmem:[%s727 + $0x3fc] sm:$0xf]
        %v2018 = vld [vmem:[%s730] sm:$0x1]
        %v2020 = vperm.slane %v2018, 0
        %v2278 = vunpack.c.l.b16 %v1762
        %v2279 = vunpack.c.l.b16 %v1763
        %v2280 = vunpack.c.l.b16 %v1764
        %v2281 = vunpack.c.l.b16 %v1765
        %v2282 = vunpack.c.l.b16 %v1766
        %v2283 = vunpack.c.l.b16 %v1767
        %v2284 = vunpack.c.l.b16 %v1768
        %v2285 = vunpack.c.l.b16 %v1769
        %v2286 = vunpack.c.l.b16 %v1770
        %v2287 = vunpack.c.l.b16 %v1771
        %v2288 = vunpack.c.l.b16 %v1772
        %v2289 = vunpack.c.l.b16 %v1773
        %v2290 = vunpack.c.l.b16 %v1774
        %v2291 = vunpack.c.l.b16 %v1775
        %v2292 = vunpack.c.l.b16 %v1776
        %v2293 = vunpack.c.l.b16 %v1777
        %v2294 = vunpack.c.l.b16 %v1778
        %v2295 = vunpack.c.l.b16 %v1779
        %v2296 = vunpack.c.l.b16 %v1780
        %v2297 = vunpack.c.l.b16 %v1781
        %v2298 = vunpack.c.l.b16 %v1782
        %v2299 = vunpack.c.l.b16 %v1783
        %v2300 = vunpack.c.l.b16 %v1784
        %v2301 = vunpack.c.l.b16 %v1785
        %v2302 = vunpack.c.l.b16 %v1786
        %v2303 = vunpack.c.l.b16 %v1787
        %v2304 = vunpack.c.l.b16 %v1788
        %v2305 = vunpack.c.l.b16 %v1789
        %v2306 = vunpack.c.l.b16 %v1790
        %v2307 = vunpack.c.l.b16 %v1791
        %v2308 = vunpack.c.l.b16 %v1792
        %v2309 = vunpack.c.l.b16 %v1793
        %v2310 = vunpack.c.l.b16 %v1794
        %v2311 = vunpack.c.l.b16 %v1795
        %v2312 = vunpack.c.l.b16 %v1796
        %v2313 = vunpack.c.l.b16 %v1797
        %v2314 = vunpack.c.l.b16 %v1798
        %v2315 = vunpack.c.l.b16 %v1799
        %v2316 = vunpack.c.l.b16 %v1800
        %v2317 = vunpack.c.l.b16 %v1801
        %v2318 = vunpack.c.l.b16 %v1802
        %v2319 = vunpack.c.l.b16 %v1803
        %v2320 = vunpack.c.l.b16 %v1804
        %v2321 = vunpack.c.l.b16 %v1805
        %v2322 = vunpack.c.l.b16 %v1806
        %v2323 = vunpack.c.l.b16 %v1807
        %v2324 = vunpack.c.l.b16 %v1808
        %v2325 = vunpack.c.l.b16 %v1809
        %v2326 = vunpack.c.l.b16 %v1810
        %v2327 = vunpack.c.l.b16 %v1811
        %v2328 = vunpack.c.l.b16 %v1812
        %v2329 = vunpack.c.l.b16 %v1813
        %v2330 = vunpack.c.l.b16 %v1814
        %v2331 = vunpack.c.l.b16 %v1815
        %v2332 = vunpack.c.l.b16 %v1816
        %v2333 = vunpack.c.l.b16 %v1817
        %v2334 = vunpack.c.l.b16 %v1818
        %v2335 = vunpack.c.l.b16 %v1819
        %v2336 = vunpack.c.l.b16 %v1820
        %v2337 = vunpack.c.l.b16 %v1821
        %v2338 = vunpack.c.l.b16 %v1822
        %v2339 = vunpack.c.l.b16 %v1823
        %v2340 = vunpack.c.l.b16 %v1824
        %v2341 = vunpack.c.l.b16 %v1825
        %v2342 = vunpack.c.l.b16 %v1826
        %v2343 = vunpack.c.l.b16 %v1827
        %v2344 = vunpack.c.l.b16 %v1828
        %v2345 = vunpack.c.l.b16 %v1829
        %v2346 = vunpack.c.l.b16 %v1830
        %v2347 = vunpack.c.l.b16 %v1831
        %v2348 = vunpack.c.l.b16 %v1832
        %v2349 = vunpack.c.l.b16 %v1833
        %v2350 = vunpack.c.l.b16 %v1834
        %v2351 = vunpack.c.l.b16 %v1835
        %v2352 = vunpack.c.l.b16 %v1836
        %v2353 = vunpack.c.l.b16 %v1837
        %v2354 = vunpack.c.l.b16 %v1838
        %v2355 = vunpack.c.l.b16 %v1839
        %v2356 = vunpack.c.l.b16 %v1840
        %v2357 = vunpack.c.l.b16 %v1841
        %v2358 = vunpack.c.l.b16 %v1842
        %v2359 = vunpack.c.l.b16 %v1843
        %v2360 = vunpack.c.l.b16 %v1844
        %v2361 = vunpack.c.l.b16 %v1845
        %v2362 = vunpack.c.l.b16 %v1846
        %v2363 = vunpack.c.l.b16 %v1847
        %v2364 = vunpack.c.l.b16 %v1848
        %v2365 = vunpack.c.l.b16 %v1849
        %v2366 = vunpack.c.l.b16 %v1850
        %v2367 = vunpack.c.l.b16 %v1851
        %v2368 = vunpack.c.l.b16 %v1852
        %v2369 = vunpack.c.l.b16 %v1853
        %v2370 = vunpack.c.l.b16 %v1854
        %v2371 = vunpack.c.l.b16 %v1855
        %v2372 = vunpack.c.l.b16 %v1856
        %v2373 = vunpack.c.l.b16 %v1857
        %v2374 = vunpack.c.l.b16 %v1858
        %v2375 = vunpack.c.l.b16 %v1859
        %v2376 = vunpack.c.l.b16 %v1860
        %v2377 = vunpack.c.l.b16 %v1861
        %v2378 = vunpack.c.l.b16 %v1862
        %v2379 = vunpack.c.l.b16 %v1863
        %v2380 = vunpack.c.l.b16 %v1864
        %v2381 = vunpack.c.l.b16 %v1865
        %v2382 = vunpack.c.l.b16 %v1866
        %v2383 = vunpack.c.l.b16 %v1867
        %v2384 = vunpack.c.l.b16 %v1868
        %v2385 = vunpack.c.l.b16 %v1869
        %v2386 = vunpack.c.l.b16 %v1870
        %v2387 = vunpack.c.l.b16 %v1871
        %v2388 = vunpack.c.l.b16 %v1872
        %v2389 = vunpack.c.l.b16 %v1873
        %v2390 = vunpack.c.l.b16 %v1874
        %v2391 = vunpack.c.l.b16 %v1875
        %v2392 = vunpack.c.l.b16 %v1876
        %v2393 = vunpack.c.l.b16 %v1877
        %v2394 = vunpack.c.l.b16 %v1878
        %v2395 = vunpack.c.l.b16 %v1879
        %v2396 = vunpack.c.l.b16 %v1880
        %v2397 = vunpack.c.l.b16 %v1881
        %v2398 = vunpack.c.l.b16 %v1882
        %v2399 = vunpack.c.l.b16 %v1883
        %v2400 = vunpack.c.l.b16 %v1884
        %v2401 = vunpack.c.l.b16 %v1885
        %v2402 = vunpack.c.l.b16 %v1886
        %v2403 = vunpack.c.l.b16 %v1887
        %v2404 = vunpack.c.l.b16 %v1888
        %v2405 = vunpack.c.l.b16 %v1889
        %v2406 = vunpack.c.l.b16 %v1890
        %v2407 = vunpack.c.l.b16 %v1891
        %v2408 = vunpack.c.l.b16 %v1892
        %v2409 = vunpack.c.l.b16 %v1893
        %v2410 = vunpack.c.l.b16 %v1894
        %v2411 = vunpack.c.l.b16 %v1895
        %v2412 = vunpack.c.l.b16 %v1896
        %v2413 = vunpack.c.l.b16 %v1897
        %v2414 = vunpack.c.l.b16 %v1898
        %v2415 = vunpack.c.l.b16 %v1899
        %v2416 = vunpack.c.l.b16 %v1900
        %v2417 = vunpack.c.l.b16 %v1901
        %v2418 = vunpack.c.l.b16 %v1902
        %v2419 = vunpack.c.l.b16 %v1903
        %v2420 = vunpack.c.l.b16 %v1904
        %v2421 = vunpack.c.l.b16 %v1905
        %v2422 = vunpack.c.l.b16 %v1906
        %v2423 = vunpack.c.l.b16 %v1907
        %v2424 = vunpack.c.l.b16 %v1908
        %v2425 = vunpack.c.l.b16 %v1909
        %v2426 = vunpack.c.l.b16 %v1910
        %v2427 = vunpack.c.l.b16 %v1911
        %v2428 = vunpack.c.l.b16 %v1912
        %v2429 = vunpack.c.l.b16 %v1913
        %v2430 = vunpack.c.l.b16 %v1914
        %v2431 = vunpack.c.l.b16 %v1915
        %v2432 = vunpack.c.l.b16 %v1916
        %v2433 = vunpack.c.l.b16 %v1917
        %v2434 = vunpack.c.l.b16 %v1918
        %v2435 = vunpack.c.l.b16 %v1919
        %v2436 = vunpack.c.l.b16 %v1920
        %v2437 = vunpack.c.l.b16 %v1921
        %v2438 = vunpack.c.l.b16 %v1922
        %v2439 = vunpack.c.l.b16 %v1923
        %v2440 = vunpack.c.l.b16 %v1924
        %v2441 = vunpack.c.l.b16 %v1925
        %v2442 = vunpack.c.l.b16 %v1926
        %v2443 = vunpack.c.l.b16 %v1927
        %v2444 = vunpack.c.l.b16 %v1928
        %v2445 = vunpack.c.l.b16 %v1929
        %v2446 = vunpack.c.l.b16 %v1930
        %v2447 = vunpack.c.l.b16 %v1931
        %v2448 = vunpack.c.l.b16 %v1932
        %v2449 = vunpack.c.l.b16 %v1933
        %v2450 = vunpack.c.l.b16 %v1934
        %v2451 = vunpack.c.l.b16 %v1935
        %v2452 = vunpack.c.l.b16 %v1936
        %v2453 = vunpack.c.l.b16 %v1937
        %v2454 = vunpack.c.l.b16 %v1938
        %v2455 = vunpack.c.l.b16 %v1939
        %v2456 = vunpack.c.l.b16 %v1940
        %v2457 = vunpack.c.l.b16 %v1941
        %v2458 = vunpack.c.l.b16 %v1942
        %v2459 = vunpack.c.l.b16 %v1943
        %v2460 = vunpack.c.l.b16 %v1944
        %v2461 = vunpack.c.l.b16 %v1945
        %v2462 = vunpack.c.l.b16 %v1946
        %v2463 = vunpack.c.l.b16 %v1947
        %v2464 = vunpack.c.l.b16 %v1948
        %v2465 = vunpack.c.l.b16 %v1949
        %v2466 = vunpack.c.l.b16 %v1950
        %v2467 = vunpack.c.l.b16 %v1951
        %v2468 = vunpack.c.l.b16 %v1952
        %v2469 = vunpack.c.l.b16 %v1953
        %v2470 = vunpack.c.l.b16 %v1954
        %v2471 = vunpack.c.l.b16 %v1955
        %v2472 = vunpack.c.l.b16 %v1956
        %v2473 = vunpack.c.l.b16 %v1957
        %v2474 = vunpack.c.l.b16 %v1958
        %v2475 = vunpack.c.l.b16 %v1959
        %v2476 = vunpack.c.l.b16 %v1960
        %v2477 = vunpack.c.l.b16 %v1961
        %v2478 = vunpack.c.l.b16 %v1962
        %v2479 = vunpack.c.l.b16 %v1963
        %v2480 = vunpack.c.l.b16 %v1964
        %v2481 = vunpack.c.l.b16 %v1965
        %v2482 = vunpack.c.l.b16 %v1966
        %v2483 = vunpack.c.l.b16 %v1967
        %v2484 = vunpack.c.l.b16 %v1968
        %v2485 = vunpack.c.l.b16 %v1969
        %v2486 = vunpack.c.l.b16 %v1970
        %v2487 = vunpack.c.l.b16 %v1971
        %v2488 = vunpack.c.l.b16 %v1972
        %v2489 = vunpack.c.l.b16 %v1973
        %v2490 = vunpack.c.l.b16 %v1974
        %v2491 = vunpack.c.l.b16 %v1975
        %v2492 = vunpack.c.l.b16 %v1976
        %v2493 = vunpack.c.l.b16 %v1977
        %v2494 = vunpack.c.l.b16 %v1978
        %v2495 = vunpack.c.l.b16 %v1979
        %v2496 = vunpack.c.l.b16 %v1980
        %v2497 = vunpack.c.l.b16 %v1981
        %v2498 = vunpack.c.l.b16 %v1982
        %v2499 = vunpack.c.l.b16 %v1983
        %v2500 = vunpack.c.l.b16 %v1984
        %v2501 = vunpack.c.l.b16 %v1985
        %v2502 = vunpack.c.l.b16 %v1986
        %v2503 = vunpack.c.l.b16 %v1987
        %v2504 = vunpack.c.l.b16 %v1988
        %v2505 = vunpack.c.l.b16 %v1989
        %v2506 = vunpack.c.l.b16 %v1990
        %v2507 = vunpack.c.l.b16 %v1991
        %v2508 = vunpack.c.l.b16 %v1992
        %v2509 = vunpack.c.l.b16 %v1993
        %v2510 = vunpack.c.l.b16 %v1994
        %v2511 = vunpack.c.l.b16 %v1995
        %v2512 = vunpack.c.l.b16 %v1996
        %v2513 = vunpack.c.l.b16 %v1997
        %v2514 = vunpack.c.l.b16 %v1998
        %v2515 = vunpack.c.l.b16 %v1999
        %v2516 = vunpack.c.l.b16 %v2000
        %v2517 = vunpack.c.l.b16 %v2001
        %v2518 = vunpack.c.l.b16 %v2002
        %v2519 = vunpack.c.l.b16 %v2003
        %v2520 = vunpack.c.l.b16 %v2004
        %v2521 = vunpack.c.l.b16 %v2005
        %v2522 = vunpack.c.l.b16 %v2006
        %v2523 = vunpack.c.l.b16 %v2007
        %v2524 = vunpack.c.l.b16 %v2008
        %v2525 = vunpack.c.l.b16 %v2009
        %v2526 = vunpack.c.l.b16 %v2010
        %v2527 = vunpack.c.l.b16 %v2011
        %v2528 = vunpack.c.l.b16 %v2012
        %v2529 = vunpack.c.l.b16 %v2013
        %v2530 = vunpack.c.l.b16 %v2014
        %v2531 = vunpack.c.l.b16 %v2015
        %v2532 = vunpack.c.l.b16 %v2016
        %v2533 = vunpack.c.l.b16 %v2017
        %v2534 = vpack.c.b16 %v2279, %v2278
        %v2535 = vpack.c.b16 %v2281, %v2280
        %v2536 = vpack.c.b16 %v2283, %v2282
        %v2537 = vpack.c.b16 %v2285, %v2284
        %v2538 = vpack.c.b16 %v2287, %v2286
        %v2539 = vpack.c.b16 %v2289, %v2288
        %v2540 = vpack.c.b16 %v2291, %v2290
        %v2541 = vpack.c.b16 %v2293, %v2292
        %v2542 = vpack.c.b16 %v2295, %v2294
        %v2543 = vpack.c.b16 %v2297, %v2296
        %v2544 = vpack.c.b16 %v2299, %v2298
        %v2545 = vpack.c.b16 %v2301, %v2300
        %v2546 = vpack.c.b16 %v2303, %v2302
        %v2547 = vpack.c.b16 %v2305, %v2304
        %v2548 = vpack.c.b16 %v2307, %v2306
        %v2549 = vpack.c.b16 %v2309, %v2308
        %v2550 = vpack.c.b16 %v2311, %v2310
        %v2551 = vpack.c.b16 %v2313, %v2312
        %v2552 = vpack.c.b16 %v2315, %v2314
        %v2553 = vpack.c.b16 %v2317, %v2316
        %v2554 = vpack.c.b16 %v2319, %v2318
        %v2555 = vpack.c.b16 %v2321, %v2320
        %v2556 = vpack.c.b16 %v2323, %v2322
        %v2557 = vpack.c.b16 %v2325, %v2324
        %v2558 = vpack.c.b16 %v2327, %v2326
        %v2559 = vpack.c.b16 %v2329, %v2328
        %v2560 = vpack.c.b16 %v2331, %v2330
        %v2561 = vpack.c.b16 %v2333, %v2332
        %v2562 = vpack.c.b16 %v2335, %v2334
        %v2563 = vpack.c.b16 %v2337, %v2336
        %v2564 = vpack.c.b16 %v2339, %v2338
        %v2565 = vpack.c.b16 %v2341, %v2340
        %v2566 = vpack.c.b16 %v2343, %v2342
        %v2567 = vpack.c.b16 %v2345, %v2344
        %v2568 = vpack.c.b16 %v2347, %v2346
        %v2569 = vpack.c.b16 %v2349, %v2348
        %v2570 = vpack.c.b16 %v2351, %v2350
        %v2571 = vpack.c.b16 %v2353, %v2352
        %v2572 = vpack.c.b16 %v2355, %v2354
        %v2573 = vpack.c.b16 %v2357, %v2356
        %v2574 = vpack.c.b16 %v2359, %v2358
        %v2575 = vpack.c.b16 %v2361, %v2360
        %v2576 = vpack.c.b16 %v2363, %v2362
        %v2577 = vpack.c.b16 %v2365, %v2364
        %v2578 = vpack.c.b16 %v2367, %v2366
        %v2579 = vpack.c.b16 %v2369, %v2368
        %v2580 = vpack.c.b16 %v2371, %v2370
        %v2581 = vpack.c.b16 %v2373, %v2372
        %v2582 = vpack.c.b16 %v2375, %v2374
        %v2583 = vpack.c.b16 %v2377, %v2376
        %v2584 = vpack.c.b16 %v2379, %v2378
        %v2585 = vpack.c.b16 %v2381, %v2380
        %v2586 = vpack.c.b16 %v2383, %v2382
        %v2587 = vpack.c.b16 %v2385, %v2384
        %v2588 = vpack.c.b16 %v2387, %v2386
        %v2589 = vpack.c.b16 %v2389, %v2388
        %v2590 = vpack.c.b16 %v2391, %v2390
        %v2591 = vpack.c.b16 %v2393, %v2392
        %v2592 = vpack.c.b16 %v2395, %v2394
        %v2593 = vpack.c.b16 %v2397, %v2396
        %v2594 = vpack.c.b16 %v2399, %v2398
        %v2595 = vpack.c.b16 %v2401, %v2400
        %v2596 = vpack.c.b16 %v2403, %v2402
        %v2597 = vpack.c.b16 %v2405, %v2404
        %v2598 = vpack.c.b16 %v2407, %v2406
        %v2599 = vpack.c.b16 %v2409, %v2408
        %v2600 = vpack.c.b16 %v2411, %v2410
        %v2601 = vpack.c.b16 %v2413, %v2412
        %v2602 = vpack.c.b16 %v2415, %v2414
        %v2603 = vpack.c.b16 %v2417, %v2416
        %v2604 = vpack.c.b16 %v2419, %v2418
        %v2605 = vpack.c.b16 %v2421, %v2420
        %v2606 = vpack.c.b16 %v2423, %v2422
        %v2607 = vpack.c.b16 %v2425, %v2424
        %v2608 = vpack.c.b16 %v2427, %v2426
        %v2609 = vpack.c.b16 %v2429, %v2428
        %v2610 = vpack.c.b16 %v2431, %v2430
        %v2611 = vpack.c.b16 %v2433, %v2432
        %v2612 = vpack.c.b16 %v2435, %v2434
        %v2613 = vpack.c.b16 %v2437, %v2436
        %v2614 = vpack.c.b16 %v2439, %v2438
        %v2615 = vpack.c.b16 %v2441, %v2440
        %v2616 = vpack.c.b16 %v2443, %v2442
        %v2617 = vpack.c.b16 %v2445, %v2444
        %v2618 = vpack.c.b16 %v2447, %v2446
        %v2619 = vpack.c.b16 %v2449, %v2448
        %v2620 = vpack.c.b16 %v2451, %v2450
        %v2621 = vpack.c.b16 %v2453, %v2452
        %v2622 = vpack.c.b16 %v2455, %v2454
        %v2623 = vpack.c.b16 %v2457, %v2456
        %v2624 = vpack.c.b16 %v2459, %v2458
        %v2625 = vpack.c.b16 %v2461, %v2460
        %v2626 = vpack.c.b16 %v2463, %v2462
        %v2627 = vpack.c.b16 %v2465, %v2464
        %v2628 = vpack.c.b16 %v2467, %v2466
        %v2629 = vpack.c.b16 %v2469, %v2468
        %v2630 = vpack.c.b16 %v2471, %v2470
        %v2631 = vpack.c.b16 %v2473, %v2472
        %v2632 = vpack.c.b16 %v2475, %v2474
        %v2633 = vpack.c.b16 %v2477, %v2476
        %v2634 = vpack.c.b16 %v2479, %v2478
        %v2635 = vpack.c.b16 %v2481, %v2480
        %v2636 = vpack.c.b16 %v2483, %v2482
        %v2637 = vpack.c.b16 %v2485, %v2484
        %v2638 = vpack.c.b16 %v2487, %v2486
        %v2639 = vpack.c.b16 %v2489, %v2488
        %v2640 = vpack.c.b16 %v2491, %v2490
        %v2641 = vpack.c.b16 %v2493, %v2492
        %v2642 = vpack.c.b16 %v2495, %v2494
        %v2643 = vpack.c.b16 %v2497, %v2496
        %v2644 = vpack.c.b16 %v2499, %v2498
        %v2645 = vpack.c.b16 %v2501, %v2500
        %v2646 = vpack.c.b16 %v2503, %v2502
        %v2647 = vpack.c.b16 %v2505, %v2504
        %v2648 = vpack.c.b16 %v2507, %v2506
        %v2649 = vpack.c.b16 %v2509, %v2508
        %v2650 = vpack.c.b16 %v2511, %v2510
        %v2651 = vpack.c.b16 %v2513, %v2512
        %v2652 = vpack.c.b16 %v2515, %v2514
        %v2653 = vpack.c.b16 %v2517, %v2516
        %v2654 = vpack.c.b16 %v2519, %v2518
        %v2655 = vpack.c.b16 %v2521, %v2520
        %v2656 = vpack.c.b16 %v2523, %v2522
        %v2657 = vpack.c.b16 %v2525, %v2524
        %v2658 = vpack.c.b16 %v2527, %v2526
        %v2659 = vpack.c.b16 %v2529, %v2528
        %v2660 = vpack.c.b16 %v2531, %v2530
        %v2661 = vpack.c.b16 %v2533, %v2532
        %2790 = vmatpush.bf16.msra.mxu0 %v2541
        %2791 = vmatpush.bf16.msra.mxu0 %v2540
        %2792 = vmatpush.bf16.msra.mxu0 %v2539
        %2793 = vmatpush.bf16.msra.mxu0 %v2538
        %2794 = vmatpush.bf16.msra.mxu0 %v2537
        %2795 = vmatpush.bf16.msra.mxu0 %v2536
        %2796 = vmatpush.bf16.msra.mxu0 %v2535
        %2797 = vmatpush.bf16.msra.mxu0 %v2534
        %2798 = vmatmul.bf16.gmra.mxu0 %v1746
        %v2799 = vpop.f32.mrf.mxu0
        %v2800 = vadd.f32 %v2020, %v2799
        %v2801 = vpop.f32.mrf.mxu0
        %v2802 = vadd.f32 %v2020, %v2801
        %2803 = vdwg.mxu0
        %2804 = vmatpush.bf16.msra.mxu0 %v2549
        %2805 = vmatpush.bf16.msra.mxu0 %v2548
        %2806 = vmatpush.bf16.msra.mxu0 %v2547
        %2807 = vmatpush.bf16.msra.mxu0 %v2546
        %2808 = vmatpush.bf16.msra.mxu0 %v2545
        %2809 = vmatpush.bf16.msra.mxu0 %v2544
        %2810 = vmatpush.bf16.msra.mxu0 %v2543
        %2811 = vmatpush.bf16.msra.mxu0 %v2542
        %2812 = vmatmul.bf16.gmra.mxu0 %v1747
        %v2813 = vpop.f32.mrf.mxu0
        %v2814 = vadd.f32 %v2800, %v2813
        %v2815 = vpop.f32.mrf.mxu0
        %v2816 = vadd.f32 %v2802, %v2815
        %2817 = vdwg.mxu0
        %2818 = vmatpush.bf16.msra.mxu0 %v2557
        %2819 = vmatpush.bf16.msra.mxu0 %v2556
        %2820 = vmatpush.bf16.msra.mxu0 %v2555
        %2821 = vmatpush.bf16.msra.mxu0 %v2554
        %2822 = vmatpush.bf16.msra.mxu0 %v2553
        %2823 = vmatpush.bf16.msra.mxu0 %v2552
        %2824 = vmatpush.bf16.msra.mxu0 %v2551
        %2825 = vmatpush.bf16.msra.mxu0 %v2550
        %2826 = vmatmul.bf16.gmra.mxu0 %v1748
        %v2827 = vpop.f32.mrf.mxu0
        %v2828 = vadd.f32 %v2814, %v2827
        %v2829 = vpop.f32.mrf.mxu0
        %v2830 = vadd.f32 %v2816, %v2829
        %2831 = vdwg.mxu0
        %2832 = vmatpush.bf16.msra.mxu0 %v2565
        %2833 = vmatpush.bf16.msra.mxu0 %v2564
        %2834 = vmatpush.bf16.msra.mxu0 %v2563
        %2835 = vmatpush.bf16.msra.mxu0 %v2562
        %2836 = vmatpush.bf16.msra.mxu0 %v2561
        %2837 = vmatpush.bf16.msra.mxu0 %v2560
        %2838 = vmatpush.bf16.msra.mxu0 %v2559
        %2839 = vmatpush.bf16.msra.mxu0 %v2558
        %2840 = vmatmul.bf16.gmra.mxu0 %v1749
        %v2841 = vpop.f32.mrf.mxu0
        %v2842 = vadd.f32 %v2828, %v2841
        %v2843 = vpop.f32.mrf.mxu0
        %v2844 = vadd.f32 %v2830, %v2843
        %2845 = vdwg.mxu0
        %2846 = vmatpush.bf16.msra.mxu0 %v2573
        %2847 = vmatpush.bf16.msra.mxu0 %v2572
        %2848 = vmatpush.bf16.msra.mxu0 %v2571
        %2849 = vmatpush.bf16.msra.mxu0 %v2570
        %2850 = vmatpush.bf16.msra.mxu0 %v2569
        %2851 = vmatpush.bf16.msra.mxu0 %v2568
        %2852 = vmatpush.bf16.msra.mxu0 %v2567
        %2853 = vmatpush.bf16.msra.mxu0 %v2566
        %2854 = vmatmul.bf16.gmra.mxu0 %v1750
        %v2855 = vpop.f32.mrf.mxu0
        %v2856 = vadd.f32 %v2842, %v2855
        %v2857 = vpop.f32.mrf.mxu0
        %v2858 = vadd.f32 %v2844, %v2857
        %2859 = vdwg.mxu0
        %2860 = vmatpush.bf16.msra.mxu0 %v2581
        %2861 = vmatpush.bf16.msra.mxu0 %v2580
        %2862 = vmatpush.bf16.msra.mxu0 %v2579
        %2863 = vmatpush.bf16.msra.mxu0 %v2578
        %2864 = vmatpush.bf16.msra.mxu0 %v2577
        %2865 = vmatpush.bf16.msra.mxu0 %v2576
        %2866 = vmatpush.bf16.msra.mxu0 %v2575
        %2867 = vmatpush.bf16.msra.mxu0 %v2574
        %2868 = vmatmul.bf16.gmra.mxu0 %v1751
        %v2869 = vpop.f32.mrf.mxu0
        %v2870 = vadd.f32 %v2856, %v2869
        %v2871 = vpop.f32.mrf.mxu0
        %v2872 = vadd.f32 %v2858, %v2871
        %2873 = vdwg.mxu0
        %2874 = vmatpush.bf16.msra.mxu0 %v2589
        %2875 = vmatpush.bf16.msra.mxu0 %v2588
        %2876 = vmatpush.bf16.msra.mxu0 %v2587
        %2877 = vmatpush.bf16.msra.mxu0 %v2586
        %2878 = vmatpush.bf16.msra.mxu0 %v2585
        %2879 = vmatpush.bf16.msra.mxu0 %v2584
        %2880 = vmatpush.bf16.msra.mxu0 %v2583
        %2881 = vmatpush.bf16.msra.mxu0 %v2582
        %2882 = vmatmul.bf16.gmra.mxu0 %v1752
        %v2883 = vpop.f32.mrf.mxu0
        %v2884 = vadd.f32 %v2870, %v2883
        %v2885 = vpop.f32.mrf.mxu0
        %v2886 = vadd.f32 %v2872, %v2885
        %2887 = vdwg.mxu0
        %2888 = vmatpush.bf16.msra.mxu0 %v2597
        %2889 = vmatpush.bf16.msra.mxu0 %v2596
        %2890 = vmatpush.bf16.msra.mxu0 %v2595
        %2891 = vmatpush.bf16.msra.mxu0 %v2594
        %2892 = vmatpush.bf16.msra.mxu0 %v2593
        %2893 = vmatpush.bf16.msra.mxu0 %v2592
        %2894 = vmatpush.bf16.msra.mxu0 %v2591
        %2895 = vmatpush.bf16.msra.mxu0 %v2590
        %2896 = vmatmul.bf16.gmra.mxu0 %v1753
        %v2897 = vpop.f32.mrf.mxu0
        %v2898 = vadd.f32 %v2884, %v2897
        %v2899 = vpop.f32.mrf.mxu0
        %v2900 = vadd.f32 %v2886, %v2899
        %2901 = vdwg.mxu0
        %2902 = vmatpush.bf16.msra.mxu0 %v2605
        %2903 = vmatpush.bf16.msra.mxu0 %v2604
        %2904 = vmatpush.bf16.msra.mxu0 %v2603
        %2905 = vmatpush.bf16.msra.mxu0 %v2602
        %2906 = vmatpush.bf16.msra.mxu0 %v2601
        %2907 = vmatpush.bf16.msra.mxu0 %v2600
        %2908 = vmatpush.bf16.msra.mxu0 %v2599
        %2909 = vmatpush.bf16.msra.mxu0 %v2598
        %2910 = vmatmul.bf16.gmra.mxu0 %v1754
        %v2911 = vpop.f32.mrf.mxu0
        %v2912 = vadd.f32 %v2898, %v2911
        %v2913 = vpop.f32.mrf.mxu0
        %v2914 = vadd.f32 %v2900, %v2913
        %2915 = vdwg.mxu0
        %2916 = vmatpush.bf16.msra.mxu0 %v2613
        %2917 = vmatpush.bf16.msra.mxu0 %v2612
        %2918 = vmatpush.bf16.msra.mxu0 %v2611
        %2919 = vmatpush.bf16.msra.mxu0 %v2610
        %2920 = vmatpush.bf16.msra.mxu0 %v2609
        %2921 = vmatpush.bf16.msra.mxu0 %v2608
        %2922 = vmatpush.bf16.msra.mxu0 %v2607
        %2923 = vmatpush.bf16.msra.mxu0 %v2606
        %2924 = vmatmul.bf16.gmra.mxu0 %v1755
        %v2925 = vpop.f32.mrf.mxu0
        %v2926 = vadd.f32 %v2912, %v2925
        %v2927 = vpop.f32.mrf.mxu0
        %v2928 = vadd.f32 %v2914, %v2927
        %2929 = vdwg.mxu0
        %2930 = vmatpush.bf16.msra.mxu0 %v2621
        %2931 = vmatpush.bf16.msra.mxu0 %v2620
        %2932 = vmatpush.bf16.msra.mxu0 %v2619
        %2933 = vmatpush.bf16.msra.mxu0 %v2618
        %2934 = vmatpush.bf16.msra.mxu0 %v2617
        %2935 = vmatpush.bf16.msra.mxu0 %v2616
        %2936 = vmatpush.bf16.msra.mxu0 %v2615
        %2937 = vmatpush.bf16.msra.mxu0 %v2614
        %2938 = vmatmul.bf16.gmra.mxu0 %v1756
        %v2939 = vpop.f32.mrf.mxu0
        %v2940 = vadd.f32 %v2926, %v2939
        %v2941 = vpop.f32.mrf.mxu0
        %v2942 = vadd.f32 %v2928, %v2941
        %2943 = vdwg.mxu0
        %2944 = vmatpush.bf16.msra.mxu0 %v2629
        %2945 = vmatpush.bf16.msra.mxu0 %v2628
        %2946 = vmatpush.bf16.msra.mxu0 %v2627
        %2947 = vmatpush.bf16.msra.mxu0 %v2626
        %2948 = vmatpush.bf16.msra.mxu0 %v2625
        %2949 = vmatpush.bf16.msra.mxu0 %v2624
        %2950 = vmatpush.bf16.msra.mxu0 %v2623
        %2951 = vmatpush.bf16.msra.mxu0 %v2622
        %2952 = vmatmul.bf16.gmra.mxu0 %v1757
        %v2953 = vpop.f32.mrf.mxu0
        %v2954 = vadd.f32 %v2940, %v2953
        %v2955 = vpop.f32.mrf.mxu0
        %v2956 = vadd.f32 %v2942, %v2955
        %2957 = vdwg.mxu0
        %2958 = vmatpush.bf16.msra.mxu0 %v2637
        %2959 = vmatpush.bf16.msra.mxu0 %v2636
        %2960 = vmatpush.bf16.msra.mxu0 %v2635
        %2961 = vmatpush.bf16.msra.mxu0 %v2634
        %2962 = vmatpush.bf16.msra.mxu0 %v2633
        %2963 = vmatpush.bf16.msra.mxu0 %v2632
        %2964 = vmatpush.bf16.msra.mxu0 %v2631
        %2965 = vmatpush.bf16.msra.mxu0 %v2630
        %2966 = vmatmul.bf16.gmra.mxu0 %v1758
        %v2967 = vpop.f32.mrf.mxu0
        %v2968 = vadd.f32 %v2954, %v2967
        %v2969 = vpop.f32.mrf.mxu0
        %v2970 = vadd.f32 %v2956, %v2969
        %2971 = vdwg.mxu0
        %2972 = vmatpush.bf16.msra.mxu0 %v2645
        %2973 = vmatpush.bf16.msra.mxu0 %v2644
        %2974 = vmatpush.bf16.msra.mxu0 %v2643
        %2975 = vmatpush.bf16.msra.mxu0 %v2642
        %2976 = vmatpush.bf16.msra.mxu0 %v2641
        %2977 = vmatpush.bf16.msra.mxu0 %v2640
        %2978 = vmatpush.bf16.msra.mxu0 %v2639
        %2979 = vmatpush.bf16.msra.mxu0 %v2638
        %2980 = vmatmul.bf16.gmra.mxu0 %v1759
        %v2981 = vpop.f32.mrf.mxu0
        %v2982 = vadd.f32 %v2968, %v2981
        %v2983 = vpop.f32.mrf.mxu0
        %v2984 = vadd.f32 %v2970, %v2983
        %2985 = vdwg.mxu0
        %2986 = vmatpush.bf16.msra.mxu0 %v2653
        %2987 = vmatpush.bf16.msra.mxu0 %v2652
        %2988 = vmatpush.bf16.msra.mxu0 %v2651
        %2989 = vmatpush.bf16.msra.mxu0 %v2650
        %2990 = vmatpush.bf16.msra.mxu0 %v2649
        %2991 = vmatpush.bf16.msra.mxu0 %v2648
        %2992 = vmatpush.bf16.msra.mxu0 %v2647
        %2993 = vmatpush.bf16.msra.mxu0 %v2646
        %2994 = vmatmul.bf16.gmra.mxu0 %v1760
        %v2995 = vpop.f32.mrf.mxu0
        %v2996 = vadd.f32 %v2982, %v2995
        %v2997 = vpop.f32.mrf.mxu0
        %v2998 = vadd.f32 %v2984, %v2997
        %2999 = vdwg.mxu0
        %3000 = vmatpush.bf16.msra.mxu0 %v2661
        %3001 = vmatpush.bf16.msra.mxu0 %v2660
        %3002 = vmatpush.bf16.msra.mxu0 %v2659
        %3003 = vmatpush.bf16.msra.mxu0 %v2658
        %3004 = vmatpush.bf16.msra.mxu0 %v2657
        %3005 = vmatpush.bf16.msra.mxu0 %v2656
        %3006 = vmatpush.bf16.msra.mxu0 %v2655
        %3007 = vmatpush.bf16.msra.mxu0 %v2654
        %3008 = vmatmul.bf16.gmra.mxu0 %v1761
        %v3009 = vpop.f32.mrf.mxu0
        %v3010 = vadd.f32 %v2996, %v3009
        %v3011 = vpop.f32.mrf.mxu0
        %v3012 = vadd.f32 %v2998, %v3011
        %3013 = vdwg.mxu0
        %v3014 = vadd.f32 %v1256, %v3010
        %v3015 = vadd.f32 %v1257, %v3012
        %v3016 = vld [vmem:[%s733] sm:$0x1]
        %v3017 = vld [vmem:[%s736] sm:$0x1]
        %v3018 = vsel %vm770, %v3014, 0.0
        %3019 = vadd.xlane.f32.xlu0 %v3018
        %v3020 = vpop.xlane.xlu0 %3019
        %v3021 = vsel %vm770, %v3015, 0.0
        %3022 = vadd.xlane.f32.xlu0 %v3021
        %v3023 = vpop.xlane.xlu0 %3022
        %v3024 = vmul.f32 %v3020, %v1209
        %v3025 = vmul.f32 %v3023, %v1209
        %v3026 = vsub.f32 %v3014, %v3024
        %v3027 = vsub.f32 %v3015, %v3025
        %v3028 = vmul.f32 %v3026, %v3026
        %v3029 = vmul.f32 %v3027, %v3027
        %v3030 = vsel %vm770, %v3028, 0.0
        %3031 = vadd.xlane.f32.xlu0 %v3030
        %v3032 = vpop.xlane.xlu0 %3031
        %v3033 = vsel %vm770, %v3029, 0.0
        %3034 = vadd.xlane.f32.xlu0 %v3033
        %v3035 = vpop.xlane.xlu0 %3034
        %v3036 = vmul.f32 %v3032, %v1209
        %v3037 = vmul.f32 %v3035, %v1209
        %v3038 = vadd.f32 %v3036, 1e-05
        %v3039 = vadd.f32 %v3037, 1e-05
        %v3040 = vrsqrt.pop %v3038
        %v3041 = vmul.f32 %v3040, %v3038
        %v3042 = vmul.f32 %v3041, %v3040
        %v3043 = vmul.f32 0.5, %v3042
        %v3044 = vsub.f32 1.5, %v3043
        %v3045 = vmul.f32 %v3040, %v3044
        %vm3046 = vweird.f32 %v3038
        %vm3047 = vweird.f32 %v3040
        %vm3048 = vmor %vm3046, %vm3047
        %v3049 = vsel %vm3048, %v3040, %v3045
        %v3050 = vrsqrt.pop %v3039
        %v3051 = vmul.f32 %v3050, %v3039
        %v3052 = vmul.f32 %v3051, %v3050
        %v3053 = vmul.f32 0.5, %v3052
        %v3054 = vsub.f32 1.5, %v3053
        %v3055 = vmul.f32 %v3050, %v3054
        %vm3056 = vweird.f32 %v3039
        %vm3057 = vweird.f32 %v3050
        %vm3058 = vmor %vm3056, %vm3057
        %v3059 = vsel %vm3058, %v3050, %v3055
        %v3060 = vmul.f32 %v3026, %v3049
        %v3061 = vmul.f32 %v3027, %v3059
        %v3063 = vperm.slane %v3016, 0
        %v3065 = vmul.f32 %v3060, %v3063
        %v3066 = vmul.f32 %v3061, %v3063
        %v3068 = vperm.slane %v3017, 0
        %v3070 = vadd.f32 %v3065, %v3068
        %v3071 = vadd.f32 %v3066, %v3068
        %3072 = vst.msk [vmem:[#allocation2] sm:$0xff] %vm770, %v3070
        %3073 = vst.msk [vmem:[#allocation2 + $0x8] sm:$0xff] %vm770, %v3071
        %p3074 = scmp.eq.s32.totalorder %s30, 1
        // Predicated region
        $region97: #{transformer_forward.1} parent=91 // pred_check
          %p3075 = pneg %p3074
        $region98: #{transformer_forward.1} parent=91 // pred_check_branch
          %3077 = sbr.rel (%p3075) target = $region100
        $region99: #{transformer_forward.1} parent=91 // pred_region
          %v3078 = vpack.c.bf16 %v3070, %v3070
          %v3079 = vpack.c.bf16 %v3071, %v3071
          %v3080 = vld [vmem:[%s14] sm:$0xf]
          %v3081 = vld [vmem:[%s14 + $0x4] sm:$0xf]
          %v3082 = vld [vmem:[%s14 + $0x8] sm:$0xf]
          %v3083 = vld [vmem:[%s14 + $0xc] sm:$0xf]
          %v3084 = vld [vmem:[%s15] sm:$0x1]
          %v3086 = vperm.slane %v3084, 0
          %v3090 = vunpack.c.l.b16 %v3078
          %v3091 = vunpack.c.l.b16 %v3079
          %v3092 = vrot.slane %v3090, 7
          %v3093 = vrot.slane %v3091, 6
          %vm3094 = vcmask 1041409
          %v3095 = vsel %vm3094, %v3093, %v3092
          %v3096 = vpack.c.b16 %v3095, %v3095
          %v3101 = vunpack.c.l.b16 %v3080
          %v3102 = vunpack.c.l.b16 %v3081
          %v3103 = vunpack.c.l.b16 %v3082
          %v3104 = vunpack.c.l.b16 %v3083
          %v3105 = vpack.c.b16 %v3102, %v3101
          %v3106 = vpack.c.b16 %v3104, %v3103
          %v3110 = vsel %vm770, %v3096, 0
          %3112 = vmatpush.bf16.msra.mxu0 0
          %3113 = vmatpush.bf16.msra.mxu0 0
          %3114 = vmatpush.bf16.msra.mxu0 0
          %3115 = vmatpush.bf16.msra.mxu0 0
          %3116 = vmatpush.bf16.msra.mxu0 0
          %3117 = vmatpush.bf16.msra.mxu0 0
          %3118 = vmatpush.bf16.msra.mxu0 %v3106
          %3119 = vmatpush.bf16.msra.mxu0 %v3105
          %3120 = vmatmul.bf16.gmra.mxu0 %v3110
          %v3121 = vpop.f32.mrf.mxu0
          %v3122 = vadd.f32 %v3086, %v3121
          %v3123 = vpop.f32.mrf.mxu0
          %3124 = vdwg.mxu0
          %v3125 = vpack.c.bf16 %v3122, %v3122
          %v3126 = vld [vmem:[%s16] sm:$0xf]
          %v3127 = vld [vmem:[%s16 + $0x4] sm:$0xf]
          %v3128 = vld [vmem:[%s16 + $0x8] sm:$0xf]
          %v3129 = vld [vmem:[%s16 + $0xc] sm:$0xf]
          %v3130 = vld [vmem:[%s17] sm:$0x1]
          %v3132 = vperm.slane %v3130, 0
          %v3138 = vunpack.c.l.b16 %v3126
          %v3139 = vunpack.c.l.b16 %v3127
          %v3140 = vunpack.c.l.b16 %v3128
          %v3141 = vunpack.c.l.b16 %v3129
          %v3142 = vpack.c.b16 %v3139, %v3138
          %v3143 = vpack.c.b16 %v3141, %v3140
          %v3147 = vsel %vm770, %v3125, 0
          %3149 = vmatpush.bf16.msra.mxu0 0
          %3150 = vmatpush.bf16.msra.mxu0 0
          %3151 = vmatpush.bf16.msra.mxu0 0
          %3152 = vmatpush.bf16.msra.mxu0 0
          %3153 = vmatpush.bf16.msra.mxu0 0
          %3154 = vmatpush.bf16.msra.mxu0 0
          %3155 = vmatpush.bf16.msra.mxu0 %v3143
          %3156 = vmatpush.bf16.msra.mxu0 %v3142
          %3157 = vmatmul.bf16.gmra.mxu0 %v3147
          %v3158 = vpop.f32.mrf.mxu0
          %v3159 = vadd.f32 %v3132, %v3158
          %v3160 = vpop.f32.mrf.mxu0
          %3161 = vdwg.mxu0
          %vm3162 = vcmask 123904
          %3163 = vst.msk [vmem:[#allocation3] sm:$0x3] %vm3162, %v3159
        $region100: #{transformer_forward.1} parent=91 // pred_fallthru
          _
        // Predicated region
        $region101: #{transformer_forward.1} parent=91 // pred_check
          %p3164 = pneg %p481
        $region102: #{transformer_forward.1} parent=91 // pred_check_branch
          %3166 = sbr.rel (%p3164) target = $region104
        $region103: #{transformer_forward.1} parent=91 // pred_region
          %3168 = vsyncadd [#allocation4], 0
          %s3170 = sshll.u32 [#allocation3], 4
          %s3171 = int_to_ptr.vmem [resolvable:$true] %s3170
          %s3172 = sshll.u32 %s18, 4
          %s3173 = int_to_ptr.hbm [resolvable:$true] %s3172
          %3175 = dma.vmem_to_hbm [thread:$0]  %s3171, 32, %s3173, [#allocation4]
        $region104: #{transformer_forward.1} parent=91 // pred_fallthru
          _
        // Predicated region
        $region105: #{transformer_forward.1} parent=91 // pred_check
          %p3176 = pneg %p481
        $region106: #{transformer_forward.1} parent=91 // pred_check_branch
          %3178 = sbr.rel (%p3176) target = $region108
        $region107: #{transformer_forward.1} parent=91 // pred_region
          %3180 = dma.done [#allocation4], 32
        $region108: #{transformer_forward.1} parent=91 // pred_fallthru
          _
      $region92: #{transformer_forward.1} parent=5 // pred_fallthru
        _
      %p3181 = scmp.le.s32.totalorder 2, %s25
      // Predicated region
      $region109: #{transformer_forward.1} parent=5 // pred_check
        %p3182 = pneg %p3181
      $region110: #{transformer_forward.1} parent=5 // pred_check_branch
        %3184 = sbr.rel (%p3182) target = $region112
      $region111: #{transformer_forward.1} parent=5 // pred_region
        %s3185 = ssub.s32 %s25, 2
      $region112: #{transformer_forward.1} parent=5 // pred_fallthru
        _
    $region6: #{transformer_forward.1} parent=1 // loop_footer
      %s29 = sadd.s32 1, %s25
    $region7: #{transformer_forward.1} parent=1 // loop_footer_branch
      %24 = sbr.rel target = $region3
    $region8: #{transformer_forward.1} parent=1 // loop_exit
      _
    %3186 = vsyncpa [#allocation4], 1
    %s3187 = scalar_lea.sflag [#allocation4], 1
    %3188 = vsyncpa %s3187, 1

</llo_original>
